<compile_context>
chip_gen: v6e
topology: v6e:2x2x1
jax: 0.10.0
libtpu: 0.0.40
codegen_flags: <defaults>
</compile_context>

<pallas_src>
import functools
import math

import jax
import jax.numpy as jnp
from jax.experimental import pallas as pl
from jax.experimental.pallas import tpu as pltpu


def _mgc_kernel(x_ref, wblk_ref, g0_ref, b0_ref, wdw_ref, gdw_ref, bdw_ref,
                o_ref, pad_ref, *, H, W, C, paths, eps):
    """One batch block (Bb samples) per grid step.

    x_ref:    (Bb, H, W*Cin)     folded channels-last input (f32, cast to bf16 for the MXU)
    wblk_ref: (W*Cin, W*C)       block-diagonal 1x1-conv weight (bf16)
    g0_ref/b0_ref: (1, W*C)      GroupNorm(1, C) affine for pw_conv, lane-tiled over W
    wdw_ref:  (L*9, W*C)         depthwise 3x3 weights, row = layer*9 + kh*3 + kw,
                                 column-edge lanes pre-masked to zero in the wrapper
    gdw_ref/bdw_ref: (L, W*C)    per-layer GroupNorm affine, lane-tiled over W
    o_ref:    (Bb, paths, H, W*C) per-path outputs, folded (lane-dense) layout
    pad_ref:  VMEM (Bb, H+16, W*C) row-halo scratch; interior rows start at ROW0=8
    """
    Bb = x_ref.shape[0]
    WCin = x_ref.shape[2]
    WC = W * C
    ROW0 = 8                        # (8,128)-aligned interior row offset
    inv_n = 1.0 / float(H * W * C)

    def group_norm(v, gamma_row, beta_row):
        # Single-pass GroupNorm(1, C), per-sample stats: var = E[x^2] - mu^2,
        # then one fused v*scale + shift pass.  rsqrt lowers to the EUP slot.
        s1 = jnp.sum(jnp.sum(v, axis=2, keepdims=True), axis=1, keepdims=True)
        s2 = jnp.sum(jnp.sum(v * v, axis=2, keepdims=True), axis=1, keepdims=True)
        mu = s1 * inv_n                                   # (Bb, 1, 1)
        var = s2 * inv_n - mu * mu
        scale = gamma_row[None] * jax.lax.rsqrt(var + eps)  # (Bb, 1, WC)
        shift = beta_row[None] - mu * scale
        return v * scale + shift

    def hardswish(v):
        return v * (jnp.clip(v + 3.0, 0.0, 6.0) * (1.0 / 6.0))

    # Per-step scratch init: only the two 1-pixel halo rows.  Interior rows are fully
    # overwritten by every depthwise layer and the halo rows are never written, so this
    # is the only init needed.  Done every step (NOT gated on program_id==0) so that a
    # "parallel"-split grid still initializes each core's private scratch.
    zero_row = jnp.zeros((Bb, 1, WC), jnp.float32)
    pad_ref[:, ROW0 - 1:ROW0, :] = zero_row
    pad_ref[:, ROW0 + H:ROW0 + H + 1, :] = zero_row

    # 1) pointwise 1x1 conv: one native bf16 MXU matmul with f32 accumulation.
    #    (Bb, H, W*Cin) -> (Bb*H, W*Cin) is a free leading-dim merge (H % 8 == 0).
    xm = x_ref[...].astype(jnp.bfloat16).reshape(Bb * H, WCin)
    y = jnp.dot(xm, wblk_ref[...], preferred_element_type=jnp.float32)
    y = y.reshape(Bb, H, WC)
    # 2) GroupNorm(1, C) of the pw_conv output (ConvActNorm norm step).
    y = group_norm(y, g0_ref[...], b0_ref[...])

    def dw_gn(z, layer):
        # Depthwise 3x3 conv (padding=1, stride=1) + GroupNorm(1, C) in folded layout.
        # Row taps: lane-aligned full-width loads from the row-halo scratch (halo rows = 0).
        # Column taps: pltpu.roll by +/-C lanes (XLU); the wrapped out-of-image lanes are
        # multiplied by zeroed weight lanes (masked in the wrapper), so no select is needed.
        base = layer * 9
        pad_ref[:, ROW0:ROW0 + H, :] = z                  # aligned interior store
        acc = None
        for kh in range(3):
            if kh == 1:
                rows = z                                  # centre rows: reuse the live value
            else:
                r0 = ROW0 + kh - 1
                rows = pad_ref[:, r0:r0 + H, :]           # full WC width, lane offset 0
            for kw in range(3):
                if kw == 0:
                    tap = pltpu.roll(rows, C, 2)          # read neighbour column w-1
                elif kw == 2:
                    tap = pltpu.roll(rows, WC - C, 2)     # read neighbour column w+1
                else:
                    tap = rows
                t = base + kh * 3 + kw
                term = tap * wdw_ref[t:t + 1, :]          # (1, WC) lane broadcast
                acc = term if acc is None else acc + term
        return group_norm(acc, gdw_ref[layer:layer + 1, :], bdw_ref[layer:layer + 1, :])

    # 3) ghost paths: path p applies (p + 1) depthwise ConvActNorm layers to y.
    layer = 0
    for p in range(paths):
        z = y
        for _ in range(p + 1):
            z = dw_gn(z, layer)
            layer += 1
        # 4) Hardswish + lane-dense (W*C-lane) store of this path's channels.
        o_ref[:, p, :, :] = hardswish(z).astype(o_ref.dtype)


def _pick_block_b(B):
    """Largest power-of-two divisor of B up to 8, preferring to keep >= 2 grid steps
    so megacore / dual-TC parts can split the batch."""
    bb = 1
    for cand in (2, 4, 8):
        if B % cand == 0:
            bb = cand
    while bb > 1 and (B // bb) < 2:
        bb //= 2
    return bb


def multi_ghost_conv(x_nhwc, w_pw, g0, b0, w_dw, g_dw, b_dw, paths=2, eps=1e-5):
    """Fused MultiGhostConv forward (stride=1, dw_size=3, Hardswish).

    x_nhwc: (B, H, W, Cin) channels-last input.
    w_pw:   (Ch, Cin, 1, 1) pointwise-conv weight.   g0/b0: (Ch,) GroupNorm affine.
    w_dw:   (L, Ch, 3, 3) depthwise weights, path-major (p0.l0, p1.l0, p1.l1, ...).
    g_dw/b_dw: (L, Ch) per-layer GroupNorm affine.

    Returns the lane-dense path-major folded output (B, paths, H, W*Ch), f32, where
    out[b, p, h, w*Ch + c] == torch NCHW output[b, p*Ch + c, h, w].
    """
    B, H, W, Cin = x_nhwc.shape
    Ch = w_pw.shape[0]
    L = w_dw.shape[0]
    assert L == paths * (paths + 1) // 2
    assert H % 8 == 0, "row blocking assumes H is a multiple of 8"
    assert (W * Ch) % 128 == 0, "folded lane dim W*Ch must be a multiple of 128"
    WC = W * Ch
    WCin = W * Cin
    f32 = jnp.float32

    # ---- one-time weight preprocessing (tiny; done by XLA outside the kernel) ----
    # Block-diagonal 1x1-conv weight in bf16: Wblk[w*Cin+i, v*Ch+o] = (w==v) * wpw[i, o].
    wpw = jnp.transpose(w_pw.reshape(Ch, Cin), (1, 0)).astype(f32)        # (Cin, Ch)
    eye = jnp.eye(W, dtype=f32)
    wblk = jnp.einsum("wv,io->wivo", eye, wpw).reshape(WCin, WC).astype(jnp.bfloat16)
    g0_t = jnp.tile(g0.reshape(1, Ch).astype(f32), (1, W))                # (1, W*Ch)
    b0_t = jnp.tile(b0.reshape(1, Ch).astype(f32), (1, W))
    # Depthwise taps flattened to (L*9, WC): row = layer*9 + kh*3 + kw, lane-tiled over W.
    wdw_t = jnp.tile(
        jnp.transpose(w_dw.reshape(L, Ch, 9).astype(f32), (0, 2, 1)).reshape(L * 9, Ch),
        (1, W))
    # Fold the column-edge (image border) masks into the tap weights:
    #   kw=0 taps read neighbour w-1 -> invalid for w=0   -> zero lanes [0, Ch)
    #   kw=2 taps read neighbour w+1 -> invalid for w=W-1 -> zero lanes [WC-Ch, WC)
    # This makes the in-kernel rolled taps need no select/mask at all.
    lane = jnp.arange(WC)
    kw_of_row = jnp.tile(jnp.arange(9) % 3, (L,))[:, None]                # (L*9, 1)
    row_mask = jnp.where(kw_of_row == 0, (lane >= Ch).astype(f32)[None],
               jnp.where(kw_of_row == 2, (lane < WC - Ch).astype(f32)[None], 1.0))
    wdw_t = wdw_t * row_mask
    gdw_t = jnp.tile(g_dw.astype(f32), (1, W))                            # (L, W*Ch)
    bdw_t = jnp.tile(b_dw.astype(f32), (1, W))

    x_f = x_nhwc.reshape(B, H, WCin)            # free reshape, no transpose

    Bb = _pick_block_b(B)
    kernel = functools.partial(_mgc_kernel, H=H, W=W, C=Ch, paths=paths, eps=eps)
    return pl.pallas_call(
        kernel,
        out_shape=jax.ShapeDtypeStruct((B, paths, H, WC), jnp.float32),
        grid=(B // Bb,),
        in_specs=[
            pl.BlockSpec((Bb, H, WCin), lambda b: (b, 0, 0)),
            pl.BlockSpec((WCin, WC), lambda b: (0, 0)),
            pl.BlockSpec((1, WC), lambda b: (0, 0)),
            pl.BlockSpec((1, WC), lambda b: (0, 0)),
            pl.BlockSpec((L * 9, WC), lambda b: (0, 0)),
            pl.BlockSpec((L, WC), lambda b: (0, 0)),
            pl.BlockSpec((L, WC), lambda b: (0, 0)),
        ],
        out_specs=pl.BlockSpec((Bb, paths, H, WC), lambda b: (b, 0, 0, 0)),
        scratch_shapes=[pltpu.VMEM((Bb, H + 16, WC), jnp.float32)],
        compiler_params=pltpu.CompilerParams(
            dimension_semantics=("parallel",)),
    )(x_f, wblk, g0_t, b0_t, wdw_t, gdw_t, bdw_t)


def multi_ghost_conv_nchw(x_nchw, w_pw, g0, b0, w_dw, g_dw, b_dw, paths=2, eps=1e-5):
    """Drop-in NCHW-compatible wrapper (adds two layout transposes around the fused
    kernel).  Prefer multi_ghost_conv (NHWC in, folded path-major out) inside
    channels-last networks to avoid the extra HBM passes."""
    B, Cin, H, W = x_nchw.shape
    Ch = w_pw.shape[0]
    x_nhwc = jnp.transpose(x_nchw, (0, 2, 3, 1))
    out = multi_ghost_conv(x_nhwc, w_pw, g0, b0, w_dw, g_dw, b_dw, paths=paths, eps=eps)
    out = out.reshape(B, paths, H, W, Ch)
    return jnp.transpose(out, (0, 1, 4, 2, 3)).reshape(B, paths * Ch, H, W)


# --------------------------- pure-JAX reference -----------------------------------
def _group_norm_ref(x, gamma, beta, eps=1e-5):
    mu = jnp.mean(x, axis=(1, 2, 3), keepdims=True)
    var = jnp.mean((x - mu) ** 2, axis=(1, 2, 3), keepdims=True)
    xn = (x - mu) * jax.lax.rsqrt(var + eps)
    return xn * gamma[None, :, None, None] + beta[None, :, None, None]


def multi_ghost_conv_reference(x_nchw, w_pw, g0, b0, w_dw, g_dw, b_dw, paths=2):
    dn = ("NCHW", "OIHW", "NCHW")
    prec = jax.lax.Precision.HIGHEST
    Ch = w_pw.shape[0]
    y = jax.lax.conv_general_dilated(x_nchw, w_pw, (1, 1), ((0, 0), (0, 0)),
                                     dimension_numbers=dn, precision=prec)
    y = _group_norm_ref(y, g0, b0)
    outs = []
    layer = 0
    for p in range(paths):
        z = y
        for _ in range(p + 1):
            wl = w_dw[layer].reshape(Ch, 1, 3, 3)
            z = jax.lax.conv_general_dilated(z, wl, (1, 1), ((1, 1), (1, 1)),
                                             dimension_numbers=dn,
                                             feature_group_count=Ch,
                                             precision=prec)
            z = _group_norm_ref(z, g_dw[layer], b_dw[layer])
            layer += 1
        outs.append(z)
    out = jnp.concatenate(outs, axis=1)
    return out * jnp.clip(out + 3.0, 0.0, 6.0) / 6.0


if __name__ == "__main__":
    # Small shapes consistent with the module: in=16, out=32, paths=2 -> hidden=16.
    # B=8 so that batch blocking (Bb=4) kicks in while keeping a 2-step parallel grid.
    B, H, W = 8, 16, 16
    in_features, out_features, paths = 16, 32, 2
    Ch = out_features // paths
    L = paths * (paths + 1) // 2            # 3 depthwise ConvActNorm layers total

    key = jax.random.PRNGKey(0)
    ks = jax.random.split(key, 7)
    x_nhwc = jax.random.normal(ks[0], (B, H, W, in_features), jnp.float32)
    w_pw = jax.random.normal(ks[1], (Ch, in_features, 1, 1), jnp.float32) / math.sqrt(in_features)
    g0 = 1.0 + 0.1 * jax.random.normal(ks[2], (Ch,), jnp.float32)
    b0 = 0.1 * jax.random.normal(ks[3], (Ch,), jnp.float32)
    w_dw = jax.random.normal(ks[4], (L, Ch, 3, 3), jnp.float32) / 3.0
    g_dw = 1.0 + 0.1 * jax.random.normal(ks[5], (L, Ch), jnp.float32)
    b_dw = 0.1 * jax.random.normal(ks[6], (L, Ch), jnp.float32)

    out = jax.block_until_ready(
        multi_ghost_conv(x_nhwc, w_pw, g0, b0, w_dw, g_dw, b_dw, paths=paths))

    # Full-f32 (HIGHEST precision) NCHW reference; compare in the kernel's folded
    # path-major layout (the layout plumbing lives on the reference side, not on the
    # kernel path).
    x_nchw = jnp.transpose(x_nhwc, (0, 3, 1, 2))
    ref_nchw = jax.block_until_ready(
        multi_ghost_conv_reference(x_nchw, w_pw, g0, b0, w_dw, g_dw, b_dw, paths=paths))
    ref = jnp.transpose(ref_nchw.reshape(B, paths, Ch, H, W),
                        (0, 1, 3, 4, 2)).reshape(B, paths, H, W * Ch)

    assert out.shape == (B, paths, H, W * Ch), out.shape
    max_err = float(jnp.max(jnp.abs(out - ref)))
    # bf16 MXU inputs (f32 accumulation; everything after the 1x1 matmul is f32) vs the
    # full-f32 reference: bf16 quantization (~2^-9 relative) bounds the error comfortably
    # inside 5e-2 for these unit-scale GroupNorm'd activations.
    assert jnp.allclose(out, ref, atol=5e-2, rtol=5e-2), max_err

    # Drop-in NCHW wrapper parity check against the module's native output contract.
    out_nchw = jax.block_until_ready(
        multi_ghost_conv_nchw(x_nchw, w_pw, g0, b0, w_dw, g_dw, b_dw, paths=paths))
    assert out_nchw.shape == (B, out_features, H, W), out_nchw.shape
    assert jnp.allclose(out_nchw, ref_nchw, atol=5e-2, rtol=5e-2)

    print("KERNEL_OK")
</pallas_src>

<mosaic_0001>
module attributes {stable_mosaic.version = 11 : i64} {
  func.func @_mgc_kernel(%arg0: i32, %arg1: memref<4x16x256xf32, #tpu.memory_space<vmem>>, %arg2: memref<256x256xbf16, #tpu.memory_space<vmem>>, %arg3: memref<1x256xf32, #tpu.memory_space<vmem>>, %arg4: memref<1x256xf32, #tpu.memory_space<vmem>>, %arg5: memref<27x256xf32, #tpu.memory_space<vmem>>, %arg6: memref<3x256xf32, #tpu.memory_space<vmem>>, %arg7: memref<3x256xf32, #tpu.memory_space<vmem>>, %arg8: memref<4x2x16x256xf32, #tpu.memory_space<vmem>>, %arg9: memref<4x32x256xf32, #tpu.memory_space<vmem>>) attributes {dimension_semantics = [#tpu.dimension_semantics<parallel>], iteration_bounds = array<i64: 2>, scalar_prefetch = 0 : i64, scratch_operands = 1 : i64, tpu.core_type = #tpu.core_type<tc>, window_params = [{transform_indices = @transform_0, window_bounds = array<i64: 4, 16, 256>}, {pipeline_mode = #tpu.pipeline_mode<synchronous>, transform_indices = @transform_1, window_bounds = array<i64: 256, 256>}, {pipeline_mode = #tpu.pipeline_mode<synchronous>, transform_indices = @transform_2, window_bounds = array<i64: 1, 256>}, {pipeline_mode = #tpu.pipeline_mode<synchronous>, transform_indices = @transform_3, window_bounds = array<i64: 1, 256>}, {pipeline_mode = #tpu.pipeline_mode<synchronous>, transform_indices = @transform_4, window_bounds = array<i64: 27, 256>}, {pipeline_mode = #tpu.pipeline_mode<synchronous>, transform_indices = @transform_5, window_bounds = array<i64: 3, 256>}, {pipeline_mode = #tpu.pipeline_mode<synchronous>, transform_indices = @transform_6, window_bounds = array<i64: 3, 256>}, {transform_indices = @transform_7, window_bounds = array<i64: 4, 2, 16, 256>}]} {
    %cst = arith.constant 0.000000e+00 : f32
    %0 = vector.broadcast %cst : f32 to vector<4x1x256xf32>
    %c0 = arith.constant 0 : index
    %c7 = arith.constant 7 : index
    %c0_0 = arith.constant 0 : index
    %1 = vector.load %arg9[%c0, %c7, %c0_0] : memref<4x32x256xf32, #tpu.memory_space<vmem>>, vector<4x1x256xf32>
    tpu.vector_store %arg9[%c0, %c7, %c0_0], %0 {strides = array<i32>} : memref<4x32x256xf32, #tpu.memory_space<vmem>>, vector<4x1x256xf32>,
    %c0_1 = arith.constant 0 : index
    %c24 = arith.constant 24 : index
    %c0_2 = arith.constant 0 : index
    %2 = vector.load %arg9[%c0_1, %c24, %c0_2] : memref<4x32x256xf32, #tpu.memory_space<vmem>>, vector<4x1x256xf32>
    tpu.vector_store %arg9[%c0_1, %c24, %c0_2], %0 {strides = array<i32>} : memref<4x32x256xf32, #tpu.memory_space<vmem>>, vector<4x1x256xf32>,
    %c0_3 = arith.constant 0 : index
    %c0_4 = arith.constant 0 : index
    %c0_5 = arith.constant 0 : index
    %3 = vector.load %arg1[%c0_3, %c0_4, %c0_5] : memref<4x16x256xf32, #tpu.memory_space<vmem>>, vector<4x16x256xf32>
    %4 = arith.truncf %3 : vector<4x16x256xf32> to vector<4x16x256xbf16>
    %5 = vector.shape_cast %4 : vector<4x16x256xbf16> to vector<64x256xbf16>
    %c0_6 = arith.constant 0 : index
    %c0_7 = arith.constant 0 : index
    %6 = vector.load %arg2[%c0_6, %c0_7] : memref<256x256xbf16, #tpu.memory_space<vmem>>, vector<256x256xbf16>
    %cst_8 = arith.constant dense<0.000000e+00> : vector<64x256xf32>
    %7 = tpu.matmul %5, %6, %cst_8 {dimension_numbers = #tpu.dot_dimension_numbers<[1], [0], [0], [1], [0, 0, 1, 1], [], []>} : vector<64x256xbf16>, vector<256x256xbf16>, vector<64x256xf32> -> vector<64x256xf32>
    %8 = vector.shape_cast %7 : vector<64x256xf32> to vector<4x16x256xf32>
    %c0_9 = arith.constant 0 : index
    %c0_10 = arith.constant 0 : index
    %9 = vector.load %arg3[%c0_9, %c0_10] : memref<1x256xf32, #tpu.memory_space<vmem>>, vector<1x256xf32>
    %c0_11 = arith.constant 0 : index
    %c0_12 = arith.constant 0 : index
    %10 = vector.load %arg4[%c0_11, %c0_12] : memref<1x256xf32, #tpu.memory_space<vmem>>, vector<1x256xf32>
    %cst_13 = arith.constant dense<0.000000e+00> : vector<4x16xf32>
    %11 = vector.multi_reduction <add>, %8, %cst_13 [2] : vector<4x16x256xf32> to vector<4x16xf32>
    %12 = vector.shape_cast %11 : vector<4x16xf32> to vector<4x16x1xf32>
    %cst_14 = arith.constant dense<0.000000e+00> : vector<4x1xf32>
    %13 = vector.multi_reduction <add>, %12, %cst_14 [1] : vector<4x16x1xf32> to vector<4x1xf32>
    %14 = vector.shape_cast %13 : vector<4x1xf32> to vector<4x1x1xf32>
    %15 = arith.mulf %8, %8 : vector<4x16x256xf32>
    %cst_15 = arith.constant dense<0.000000e+00> : vector<4x16xf32>
    %16 = vector.multi_reduction <add>, %15, %cst_15 [2] : vector<4x16x256xf32> to vector<4x16xf32>
    %17 = vector.shape_cast %16 : vector<4x16xf32> to vector<4x16x1xf32>
    %cst_16 = arith.constant dense<0.000000e+00> : vector<4x1xf32>
    %18 = vector.multi_reduction <add>, %17, %cst_16 [1] : vector<4x16x1xf32> to vector<4x1xf32>
    %19 = vector.shape_cast %18 : vector<4x1xf32> to vector<4x1x1xf32>
    %cst_17 = arith.constant 2.44140625E-4 : f32
    %20 = vector.broadcast %cst_17 : f32 to vector<4x1x1xf32>
    %21 = arith.mulf %14, %20 : vector<4x1x1xf32>
    %cst_18 = arith.constant 2.44140625E-4 : f32
    %22 = vector.broadcast %cst_18 : f32 to vector<4x1x1xf32>
    %23 = arith.mulf %19, %22 : vector<4x1x1xf32>
    %24 = arith.mulf %21, %21 : vector<4x1x1xf32>
    %25 = arith.subf %23, %24 : vector<4x1x1xf32>
    %26 = vector.shape_cast %9 : vector<1x256xf32> to vector<1x1x256xf32>
    %cst_19 = arith.constant 9.99999974E-6 : f32
    %27 = vector.broadcast %cst_19 : f32 to vector<4x1x1xf32>
    %28 = arith.addf %25, %27 : vector<4x1x1xf32>
    %29 = math.rsqrt %28 : vector<4x1x1xf32>
    %30 = vector.broadcast %26 : vector<1x1x256xf32> to vector<4x1x256xf32>
    %31 = vector.broadcast %29 : vector<4x1x1xf32> to vector<4x1x256xf32>
    %32 = arith.mulf %30, %31 : vector<4x1x256xf32>
    %33 = vector.shape_cast %10 : vector<1x256xf32> to vector<1x1x256xf32>
    %34 = vector.broadcast %21 : vector<4x1x1xf32> to vector<4x1x256xf32>
    %35 = arith.mulf %34, %32 : vector<4x1x256xf32>
    %36 = vector.broadcast %33 : vector<1x1x256xf32> to vector<4x1x256xf32>
    %37 = arith.subf %36, %35 : vector<4x1x256xf32>
    %38 = vector.broadcast %32 : vector<4x1x256xf32> to vector<4x16x256xf32>
    %39 = arith.mulf %8, %38 : vector<4x16x256xf32>
    %40 = vector.broadcast %37 : vector<4x1x256xf32> to vector<4x16x256xf32>
    %41 = arith.addf %39, %40 : vector<4x16x256xf32>
    %c0_20 = arith.constant 0 : index
    %c8 = arith.constant 8 : index
    %c0_21 = arith.constant 0 : index
    %42 = vector.load %arg9[%c0_20, %c8, %c0_21] : memref<4x32x256xf32, #tpu.memory_space<vmem>>, vector<4x16x256xf32>
    tpu.vector_store %arg9[%c0_20, %c8, %c0_21], %41 {strides = array<i32>} : memref<4x32x256xf32, #tpu.memory_space<vmem>>, vector<4x16x256xf32>,
    %c0_22 = arith.constant 0 : index
    %c7_23 = arith.constant 7 : index
    %c0_24 = arith.constant 0 : index
    %43 = vector.load %arg9[%c0_22, %c7_23, %c0_24] : memref<4x32x256xf32, #tpu.memory_space<vmem>>, vector<4x16x256xf32>
    %c16_i32 = arith.constant 16 : i32
    %44 = tpu.dynamic_rotate %43 by %c16_i32 dim 2 : vector<4x16x256xf32>, i32 -> vector<4x16x256xf32>
    %c0_25 = arith.constant 0 : index
    %c0_26 = arith.constant 0 : index
    %45 = vector.load %arg5[%c0_25, %c0_26] : memref<27x256xf32, #tpu.memory_space<vmem>>, vector<1x256xf32>
    %46 = vector.shape_cast %45 : vector<1x256xf32> to vector<1x1x256xf32>
    %47 = vector.broadcast %46 : vector<1x1x256xf32> to vector<4x16x256xf32>
    %48 = arith.mulf %44, %47 : vector<4x16x256xf32>
    %c1 = arith.constant 1 : index
    %c0_27 = arith.constant 0 : index
    %49 = vector.load %arg5[%c1, %c0_27] : memref<27x256xf32, #tpu.memory_space<vmem>>, vector<1x256xf32>
    %50 = vector.shape_cast %49 : vector<1x256xf32> to vector<1x1x256xf32>
    %51 = vector.broadcast %50 : vector<1x1x256xf32> to vector<4x16x256xf32>
    %52 = arith.mulf %43, %51 : vector<4x16x256xf32>
    %53 = arith.addf %48, %52 : vector<4x16x256xf32>
    %c240_i32 = arith.constant 240 : i32
    %54 = tpu.dynamic_rotate %43 by %c240_i32 dim 2 : vector<4x16x256xf32>, i32 -> vector<4x16x256xf32>
    %c2 = arith.constant 2 : index
    %c0_28 = arith.constant 0 : index
    %55 = vector.load %arg5[%c2, %c0_28] : memref<27x256xf32, #tpu.memory_space<vmem>>, vector<1x256xf32>
    %56 = vector.shape_cast %55 : vector<1x256xf32> to vector<1x1x256xf32>
    %57 = vector.broadcast %56 : vector<1x1x256xf32> to vector<4x16x256xf32>
    %58 = arith.mulf %54, %57 : vector<4x16x256xf32>
    %59 = arith.addf %53, %58 : vector<4x16x256xf32>
    %c16_i32_29 = arith.constant 16 : i32
    %60 = tpu.dynamic_rotate %41 by %c16_i32_29 dim 2 : vector<4x16x256xf32>, i32 -> vector<4x16x256xf32>
    %c3 = arith.constant 3 : index
    %c0_30 = arith.constant 0 : index
    %61 = vector.load %arg5[%c3, %c0_30] : memref<27x256xf32, #tpu.memory_space<vmem>>, vector<1x256xf32>
    %62 = vector.shape_cast %61 : vector<1x256xf32> to vector<1x1x256xf32>
    %63 = vector.broadcast %62 : vector<1x1x256xf32> to vector<4x16x256xf32>
    %64 = arith.mulf %60, %63 : vector<4x16x256xf32>
    %65 = arith.addf %59, %64 : vector<4x16x256xf32>
    %c4 = arith.constant 4 : index
    %c0_31 = arith.constant 0 : index
    %66 = vector.load %arg5[%c4, %c0_31] : memref<27x256xf32, #tpu.memory_space<vmem>>, vector<1x256xf32>
    %67 = vector.shape_cast %66 : vector<1x256xf32> to vector<1x1x256xf32>
    %68 = vector.broadcast %67 : vector<1x1x256xf32> to vector<4x16x256xf32>
    %69 = arith.mulf %41, %68 : vector<4x16x256xf32>
    %70 = arith.addf %65, %69 : vector<4x16x256xf32>
    %c240_i32_32 = arith.constant 240 : i32
    %71 = tpu.dynamic_rotate %41 by %c240_i32_32 dim 2 : vector<4x16x256xf32>, i32 -> vector<4x16x256xf32>
    %c5 = arith.constant 5 : index
    %c0_33 = arith.constant 0 : index
    %72 = vector.load %arg5[%c5, %c0_33] : memref<27x256xf32, #tpu.memory_space<vmem>>, vector<1x256xf32>
    %73 = vector.shape_cast %72 : vector<1x256xf32> to vector<1x1x256xf32>
    %74 = vector.broadcast %73 : vector<1x1x256xf32> to vector<4x16x256xf32>
    %75 = arith.mulf %71, %74 : vector<4x16x256xf32>
    %76 = arith.addf %70, %75 : vector<4x16x256xf32>
    %c0_34 = arith.constant 0 : index
    %c9 = arith.constant 9 : index
    %c0_35 = arith.constant 0 : index
    %77 = vector.load %arg9[%c0_34, %c9, %c0_35] : memref<4x32x256xf32, #tpu.memory_space<vmem>>, vector<4x16x256xf32>
    %c16_i32_36 = arith.constant 16 : i32
    %78 = tpu.dynamic_rotate %77 by %c16_i32_36 dim 2 : vector<4x16x256xf32>, i32 -> vector<4x16x256xf32>
    %c6 = arith.constant 6 : index
    %c0_37 = arith.constant 0 : index
    %79 = vector.load %arg5[%c6, %c0_37] : memref<27x256xf32, #tpu.memory_space<vmem>>, vector<1x256xf32>
    %80 = vector.shape_cast %79 : vector<1x256xf32> to vector<1x1x256xf32>
    %81 = vector.broadcast %80 : vector<1x1x256xf32> to vector<4x16x256xf32>
    %82 = arith.mulf %78, %81 : vector<4x16x256xf32>
    %83 = arith.addf %76, %82 : vector<4x16x256xf32>
    %c7_38 = arith.constant 7 : index
    %c0_39 = arith.constant 0 : index
    %84 = vector.load %arg5[%c7_38, %c0_39] : memref<27x256xf32, #tpu.memory_space<vmem>>, vector<1x256xf32>
    %85 = vector.shape_cast %84 : vector<1x256xf32> to vector<1x1x256xf32>
    %86 = vector.broadcast %85 : vector<1x1x256xf32> to vector<4x16x256xf32>
    %87 = arith.mulf %77, %86 : vector<4x16x256xf32>
    %88 = arith.addf %83, %87 : vector<4x16x256xf32>
    %c240_i32_40 = arith.constant 240 : i32
    %89 = tpu.dynamic_rotate %77 by %c240_i32_40 dim 2 : vector<4x16x256xf32>, i32 -> vector<4x16x256xf32>
    %c8_41 = arith.constant 8 : index
    %c0_42 = arith.constant 0 : index
    %90 = vector.load %arg5[%c8_41, %c0_42] : memref<27x256xf32, #tpu.memory_space<vmem>>, vector<1x256xf32>
    %91 = vector.shape_cast %90 : vector<1x256xf32> to vector<1x1x256xf32>
    %92 = vector.broadcast %91 : vector<1x1x256xf32> to vector<4x16x256xf32>
    %93 = arith.mulf %89, %92 : vector<4x16x256xf32>
    %94 = arith.addf %88, %93 : vector<4x16x256xf32>
    %c0_43 = arith.constant 0 : index
    %c0_44 = arith.constant 0 : index
    %95 = vector.load %arg6[%c0_43, %c0_44] : memref<3x256xf32, #tpu.memory_space<vmem>>, vector<1x256xf32>
    %c0_45 = arith.constant 0 : index
    %c0_46 = arith.constant 0 : index
    %96 = vector.load %arg7[%c0_45, %c0_46] : memref<3x256xf32, #tpu.memory_space<vmem>>, vector<1x256xf32>
    %cst_47 = arith.constant dense<0.000000e+00> : vector<4x16xf32>
    %97 = vector.multi_reduction <add>, %94, %cst_47 [2] : vector<4x16x256xf32> to vector<4x16xf32>
    %98 = vector.shape_cast %97 : vector<4x16xf32> to vector<4x16x1xf32>
    %cst_48 = arith.constant dense<0.000000e+00> : vector<4x1xf32>
    %99 = vector.multi_reduction <add>, %98, %cst_48 [1] : vector<4x16x1xf32> to vector<4x1xf32>
    %100 = vector.shape_cast %99 : vector<4x1xf32> to vector<4x1x1xf32>
    %101 = arith.mulf %94, %94 : vector<4x16x256xf32>
    %cst_49 = arith.constant dense<0.000000e+00> : vector<4x16xf32>
    %102 = vector.multi_reduction <add>, %101, %cst_49 [2] : vector<4x16x256xf32> to vector<4x16xf32>
    %103 = vector.shape_cast %102 : vector<4x16xf32> to vector<4x16x1xf32>
    %cst_50 = arith.constant dense<0.000000e+00> : vector<4x1xf32>
    %104 = vector.multi_reduction <add>, %103, %cst_50 [1] : vector<4x16x1xf32> to vector<4x1xf32>
    %105 = vector.shape_cast %104 : vector<4x1xf32> to vector<4x1x1xf32>
    %cst_51 = arith.constant 2.44140625E-4 : f32
    %106 = vector.broadcast %cst_51 : f32 to vector<4x1x1xf32>
    %107 = arith.mulf %100, %106 : vector<4x1x1xf32>
    %cst_52 = arith.constant 2.44140625E-4 : f32
    %108 = vector.broadcast %cst_52 : f32 to vector<4x1x1xf32>
    %109 = arith.mulf %105, %108 : vector<4x1x1xf32>
    %110 = arith.mulf %107, %107 : vector<4x1x1xf32>
    %111 = arith.subf %109, %110 : vector<4x1x1xf32>
    %112 = vector.shape_cast %95 : vector<1x256xf32> to vector<1x1x256xf32>
    %cst_53 = arith.constant 9.99999974E-6 : f32
    %113 = vector.broadcast %cst_53 : f32 to vector<4x1x1xf32>
    %114 = arith.addf %111, %113 : vector<4x1x1xf32>
    %115 = math.rsqrt %114 : vector<4x1x1xf32>
    %116 = vector.broadcast %112 : vector<1x1x256xf32> to vector<4x1x256xf32>
    %117 = vector.broadcast %115 : vector<4x1x1xf32> to vector<4x1x256xf32>
    %118 = arith.mulf %116, %117 : vector<4x1x256xf32>
    %119 = vector.shape_cast %96 : vector<1x256xf32> to vector<1x1x256xf32>
    %120 = vector.broadcast %107 : vector<4x1x1xf32> to vector<4x1x256xf32>
    %121 = arith.mulf %120, %118 : vector<4x1x256xf32>
    %122 = vector.broadcast %119 : vector<1x1x256xf32> to vector<4x1x256xf32>
    %123 = arith.subf %122, %121 : vector<4x1x256xf32>
    %124 = vector.broadcast %118 : vector<4x1x256xf32> to vector<4x16x256xf32>
    %125 = arith.mulf %94, %124 : vector<4x16x256xf32>
    %126 = vector.broadcast %123 : vector<4x1x256xf32> to vector<4x16x256xf32>
    %127 = arith.addf %125, %126 : vector<4x16x256xf32>
    %cst_54 = arith.constant 3.000000e+00 : f32
    %128 = vector.broadcast %cst_54 : f32 to vector<4x16x256xf32>
    %129 = arith.addf %127, %128 : vector<4x16x256xf32>
    %cst_55 = arith.constant 0.000000e+00 : f32
    %cst_56 = arith.constant 6.000000e+00 : f32
    %130 = vector.broadcast %cst_55 : f32 to vector<4x16x256xf32>
    %131 = arith.maximumf %130, %129 : vector<4x16x256xf32>
    %132 = vector.broadcast %cst_56 : f32 to vector<4x16x256xf32>
    %133 = arith.minimumf %132, %131 : vector<4x16x256xf32>
    %cst_57 = arith.constant 0.166666672 : f32
    %134 = vector.broadcast %cst_57 : f32 to vector<4x16x256xf32>
    %135 = arith.mulf %133, %134 : vector<4x16x256xf32>
    %136 = arith.mulf %127, %135 : vector<4x16x256xf32>
    %c0_58 = arith.constant 0 : index
    %c0_59 = arith.constant 0 : index
    %c0_60 = arith.constant 0 : index
    %c0_61 = arith.constant 0 : index
    %137 = vector.load %arg8[%c0_58, %c0_59, %c0_60, %c0_61] : memref<4x2x16x256xf32, #tpu.memory_space<vmem>>, vector<4x1x16x256xf32>
    %138 = vector.shape_cast %137 : vector<4x1x16x256xf32> to vector<4x16x256xf32>
    %139 = vector.shape_cast %136 : vector<4x16x256xf32> to vector<4x1x16x256xf32>
    tpu.vector_store %arg8[%c0_58, %c0_59, %c0_60, %c0_61], %139 {strides = array<i32>} : memref<4x2x16x256xf32, #tpu.memory_space<vmem>>, vector<4x1x16x256xf32>,
    %c0_62 = arith.constant 0 : index
    %c8_63 = arith.constant 8 : index
    %c0_64 = arith.constant 0 : index
    %140 = vector.load %arg9[%c0_62, %c8_63, %c0_64] : memref<4x32x256xf32, #tpu.memory_space<vmem>>, vector<4x16x256xf32>
    tpu.vector_store %arg9[%c0_62, %c8_63, %c0_64], %41 {strides = array<i32>} : memref<4x32x256xf32, #tpu.memory_space<vmem>>, vector<4x16x256xf32>,
    %c0_65 = arith.constant 0 : index
    %c7_66 = arith.constant 7 : index
    %c0_67 = arith.constant 0 : index
    %141 = vector.load %arg9[%c0_65, %c7_66, %c0_67] : memref<4x32x256xf32, #tpu.memory_space<vmem>>, vector<4x16x256xf32>
    %c16_i32_68 = arith.constant 16 : i32
    %142 = tpu.dynamic_rotate %141 by %c16_i32_68 dim 2 : vector<4x16x256xf32>, i32 -> vector<4x16x256xf32>
    %c9_69 = arith.constant 9 : index
    %c0_70 = arith.constant 0 : index
    %143 = vector.load %arg5[%c9_69, %c0_70] : memref<27x256xf32, #tpu.memory_space<vmem>>, vector<1x256xf32>
    %144 = vector.shape_cast %143 : vector<1x256xf32> to vector<1x1x256xf32>
    %145 = vector.broadcast %144 : vector<1x1x256xf32> to vector<4x16x256xf32>
    %146 = arith.mulf %142, %145 : vector<4x16x256xf32>
    %c10 = arith.constant 10 : index
    %c0_71 = arith.constant 0 : index
    %147 = vector.load %arg5[%c10, %c0_71] : memref<27x256xf32, #tpu.memory_space<vmem>>, vector<1x256xf32>
    %148 = vector.shape_cast %147 : vector<1x256xf32> to vector<1x1x256xf32>
    %149 = vector.broadcast %148 : vector<1x1x256xf32> to vector<4x16x256xf32>
    %150 = arith.mulf %141, %149 : vector<4x16x256xf32>
    %151 = arith.addf %146, %150 : vector<4x16x256xf32>
    %c240_i32_72 = arith.constant 240 : i32
    %152 = tpu.dynamic_rotate %141 by %c240_i32_72 dim 2 : vector<4x16x256xf32>, i32 -> vector<4x16x256xf32>
    %c11 = arith.constant 11 : index
    %c0_73 = arith.constant 0 : index
    %153 = vector.load %arg5[%c11, %c0_73] : memref<27x256xf32, #tpu.memory_space<vmem>>, vector<1x256xf32>
    %154 = vector.shape_cast %153 : vector<1x256xf32> to vector<1x1x256xf32>
    %155 = vector.broadcast %154 : vector<1x1x256xf32> to vector<4x16x256xf32>
    %156 = arith.mulf %152, %155 : vector<4x16x256xf32>
    %157 = arith.addf %151, %156 : vector<4x16x256xf32>
    %c16_i32_74 = arith.constant 16 : i32
    %158 = tpu.dynamic_rotate %41 by %c16_i32_74 dim 2 : vector<4x16x256xf32>, i32 -> vector<4x16x256xf32>
    %c12 = arith.constant 12 : index
    %c0_75 = arith.constant 0 : index
    %159 = vector.load %arg5[%c12, %c0_75] : memref<27x256xf32, #tpu.memory_space<vmem>>, vector<1x256xf32>
    %160 = vector.shape_cast %159 : vector<1x256xf32> to vector<1x1x256xf32>
    %161 = vector.broadcast %160 : vector<1x1x256xf32> to vector<4x16x256xf32>
    %162 = arith.mulf %158, %161 : vector<4x16x256xf32>
    %163 = arith.addf %157, %162 : vector<4x16x256xf32>
    %c13 = arith.constant 13 : index
    %c0_76 = arith.constant 0 : index
    %164 = vector.load %arg5[%c13, %c0_76] : memref<27x256xf32, #tpu.memory_space<vmem>>, vector<1x256xf32>
    %165 = vector.shape_cast %164 : vector<1x256xf32> to vector<1x1x256xf32>
    %166 = vector.broadcast %165 : vector<1x1x256xf32> to vector<4x16x256xf32>
    %167 = arith.mulf %41, %166 : vector<4x16x256xf32>
    %168 = arith.addf %163, %167 : vector<4x16x256xf32>
    %c240_i32_77 = arith.constant 240 : i32
    %169 = tpu.dynamic_rotate %41 by %c240_i32_77 dim 2 : vector<4x16x256xf32>, i32 -> vector<4x16x256xf32>
    %c14 = arith.constant 14 : index
    %c0_78 = arith.constant 0 : index
    %170 = vector.load %arg5[%c14, %c0_78] : memref<27x256xf32, #tpu.memory_space<vmem>>, vector<1x256xf32>
    %171 = vector.shape_cast %170 : vector<1x256xf32> to vector<1x1x256xf32>
    %172 = vector.broadcast %171 : vector<1x1x256xf32> to vector<4x16x256xf32>
    %173 = arith.mulf %169, %172 : vector<4x16x256xf32>
    %174 = arith.addf %168, %173 : vector<4x16x256xf32>
    %c0_79 = arith.constant 0 : index
    %c9_80 = arith.constant 9 : index
    %c0_81 = arith.constant 0 : index
    %175 = vector.load %arg9[%c0_79, %c9_80, %c0_81] : memref<4x32x256xf32, #tpu.memory_space<vmem>>, vector<4x16x256xf32>
    %c16_i32_82 = arith.constant 16 : i32
    %176 = tpu.dynamic_rotate %175 by %c16_i32_82 dim 2 : vector<4x16x256xf32>, i32 -> vector<4x16x256xf32>
    %c15 = arith.constant 15 : index
    %c0_83 = arith.constant 0 : index
    %177 = vector.load %arg5[%c15, %c0_83] : memref<27x256xf32, #tpu.memory_space<vmem>>, vector<1x256xf32>
    %178 = vector.shape_cast %177 : vector<1x256xf32> to vector<1x1x256xf32>
    %179 = vector.broadcast %178 : vector<1x1x256xf32> to vector<4x16x256xf32>
    %180 = arith.mulf %176, %179 : vector<4x16x256xf32>
    %181 = arith.addf %174, %180 : vector<4x16x256xf32>
    %c16 = arith.constant 16 : index
    %c0_84 = arith.constant 0 : index
    %182 = vector.load %arg5[%c16, %c0_84] : memref<27x256xf32, #tpu.memory_space<vmem>>, vector<1x256xf32>
    %183 = vector.shape_cast %182 : vector<1x256xf32> to vector<1x1x256xf32>
    %184 = vector.broadcast %183 : vector<1x1x256xf32> to vector<4x16x256xf32>
    %185 = arith.mulf %175, %184 : vector<4x16x256xf32>
    %186 = arith.addf %181, %185 : vector<4x16x256xf32>
    %c240_i32_85 = arith.constant 240 : i32
    %187 = tpu.dynamic_rotate %175 by %c240_i32_85 dim 2 : vector<4x16x256xf32>, i32 -> vector<4x16x256xf32>
    %c17 = arith.constant 17 : index
    %c0_86 = arith.constant 0 : index
    %188 = vector.load %arg5[%c17, %c0_86] : memref<27x256xf32, #tpu.memory_space<vmem>>, vector<1x256xf32>
    %189 = vector.shape_cast %188 : vector<1x256xf32> to vector<1x1x256xf32>
    %190 = vector.broadcast %189 : vector<1x1x256xf32> to vector<4x16x256xf32>
    %191 = arith.mulf %187, %190 : vector<4x16x256xf32>
    %192 = arith.addf %186, %191 : vector<4x16x256xf32>
    %c1_87 = arith.constant 1 : index
    %c0_88 = arith.constant 0 : index
    %193 = vector.load %arg6[%c1_87, %c0_88] : memref<3x256xf32, #tpu.memory_space<vmem>>, vector<1x256xf32>
    %c1_89 = arith.constant 1 : index
    %c0_90 = arith.constant 0 : index
    %194 = vector.load %arg7[%c1_89, %c0_90] : memref<3x256xf32, #tpu.memory_space<vmem>>, vector<1x256xf32>
    %cst_91 = arith.constant dense<0.000000e+00> : vector<4x16xf32>
    %195 = vector.multi_reduction <add>, %192, %cst_91 [2] : vector<4x16x256xf32> to vector<4x16xf32>
    %196 = vector.shape_cast %195 : vector<4x16xf32> to vector<4x16x1xf32>
    %cst_92 = arith.constant dense<0.000000e+00> : vector<4x1xf32>
    %197 = vector.multi_reduction <add>, %196, %cst_92 [1] : vector<4x16x1xf32> to vector<4x1xf32>
    %198 = vector.shape_cast %197 : vector<4x1xf32> to vector<4x1x1xf32>
    %199 = arith.mulf %192, %192 : vector<4x16x256xf32>
    %cst_93 = arith.constant dense<0.000000e+00> : vector<4x16xf32>
    %200 = vector.multi_reduction <add>, %199, %cst_93 [2] : vector<4x16x256xf32> to vector<4x16xf32>
    %201 = vector.shape_cast %200 : vector<4x16xf32> to vector<4x16x1xf32>
    %cst_94 = arith.constant dense<0.000000e+00> : vector<4x1xf32>
    %202 = vector.multi_reduction <add>, %201, %cst_94 [1] : vector<4x16x1xf32> to vector<4x1xf32>
    %203 = vector.shape_cast %202 : vector<4x1xf32> to vector<4x1x1xf32>
    %cst_95 = arith.constant 2.44140625E-4 : f32
    %204 = vector.broadcast %cst_95 : f32 to vector<4x1x1xf32>
    %205 = arith.mulf %198, %204 : vector<4x1x1xf32>
    %cst_96 = arith.constant 2.44140625E-4 : f32
    %206 = vector.broadcast %cst_96 : f32 to vector<4x1x1xf32>
    %207 = arith.mulf %203, %206 : vector<4x1x1xf32>
    %208 = arith.mulf %205, %205 : vector<4x1x1xf32>
    %209 = arith.subf %207, %208 : vector<4x1x1xf32>
    %210 = vector.shape_cast %193 : vector<1x256xf32> to vector<1x1x256xf32>
    %cst_97 = arith.constant 9.99999974E-6 : f32
    %211 = vector.broadcast %cst_97 : f32 to vector<4x1x1xf32>
    %212 = arith.addf %209, %211 : vector<4x1x1xf32>
    %213 = math.rsqrt %212 : vector<4x1x1xf32>
    %214 = vector.broadcast %210 : vector<1x1x256xf32> to vector<4x1x256xf32>
    %215 = vector.broadcast %213 : vector<4x1x1xf32> to vector<4x1x256xf32>
    %216 = arith.mulf %214, %215 : vector<4x1x256xf32>
    %217 = vector.shape_cast %194 : vector<1x256xf32> to vector<1x1x256xf32>
    %218 = vector.broadcast %205 : vector<4x1x1xf32> to vector<4x1x256xf32>
    %219 = arith.mulf %218, %216 : vector<4x1x256xf32>
    %220 = vector.broadcast %217 : vector<1x1x256xf32> to vector<4x1x256xf32>
    %221 = arith.subf %220, %219 : vector<4x1x256xf32>
    %222 = vector.broadcast %216 : vector<4x1x256xf32> to vector<4x16x256xf32>
    %223 = arith.mulf %192, %222 : vector<4x16x256xf32>
    %224 = vector.broadcast %221 : vector<4x1x256xf32> to vector<4x16x256xf32>
    %225 = arith.addf %223, %224 : vector<4x16x256xf32>
    %c0_98 = arith.constant 0 : index
    %c8_99 = arith.constant 8 : index
    %c0_100 = arith.constant 0 : index
    %226 = vector.load %arg9[%c0_98, %c8_99, %c0_100] : memref<4x32x256xf32, #tpu.memory_space<vmem>>, vector<4x16x256xf32>
    tpu.vector_store %arg9[%c0_98, %c8_99, %c0_100], %225 {strides = array<i32>} : memref<4x32x256xf32, #tpu.memory_space<vmem>>, vector<4x16x256xf32>,
    %c0_101 = arith.constant 0 : index
    %c7_102 = arith.constant 7 : index
    %c0_103 = arith.constant 0 : index
    %227 = vector.load %arg9[%c0_101, %c7_102, %c0_103] : memref<4x32x256xf32, #tpu.memory_space<vmem>>, vector<4x16x256xf32>
    %c16_i32_104 = arith.constant 16 : i32
    %228 = tpu.dynamic_rotate %227 by %c16_i32_104 dim 2 : vector<4x16x256xf32>, i32 -> vector<4x16x256xf32>
    %c18 = arith.constant 18 : index
    %c0_105 = arith.constant 0 : index
    %229 = vector.load %arg5[%c18, %c0_105] : memref<27x256xf32, #tpu.memory_space<vmem>>, vector<1x256xf32>
    %230 = vector.shape_cast %229 : vector<1x256xf32> to vector<1x1x256xf32>
    %231 = vector.broadcast %230 : vector<1x1x256xf32> to vector<4x16x256xf32>
    %232 = arith.mulf %228, %231 : vector<4x16x256xf32>
    %c19 = arith.constant 19 : index
    %c0_106 = arith.constant 0 : index
    %233 = vector.load %arg5[%c19, %c0_106] : memref<27x256xf32, #tpu.memory_space<vmem>>, vector<1x256xf32>
    %234 = vector.shape_cast %233 : vector<1x256xf32> to vector<1x1x256xf32>
    %235 = vector.broadcast %234 : vector<1x1x256xf32> to vector<4x16x256xf32>
    %236 = arith.mulf %227, %235 : vector<4x16x256xf32>
    %237 = arith.addf %232, %236 : vector<4x16x256xf32>
    %c240_i32_107 = arith.constant 240 : i32
    %238 = tpu.dynamic_rotate %227 by %c240_i32_107 dim 2 : vector<4x16x256xf32>, i32 -> vector<4x16x256xf32>
    %c20 = arith.constant 20 : index
    %c0_108 = arith.constant 0 : index
    %239 = vector.load %arg5[%c20, %c0_108] : memref<27x256xf32, #tpu.memory_space<vmem>>, vector<1x256xf32>
    %240 = vector.shape_cast %239 : vector<1x256xf32> to vector<1x1x256xf32>
    %241 = vector.broadcast %240 : vector<1x1x256xf32> to vector<4x16x256xf32>
    %242 = arith.mulf %238, %241 : vector<4x16x256xf32>
    %243 = arith.addf %237, %242 : vector<4x16x256xf32>
    %c16_i32_109 = arith.constant 16 : i32
    %244 = tpu.dynamic_rotate %225 by %c16_i32_109 dim 2 : vector<4x16x256xf32>, i32 -> vector<4x16x256xf32>
    %c21 = arith.constant 21 : index
    %c0_110 = arith.constant 0 : index
    %245 = vector.load %arg5[%c21, %c0_110] : memref<27x256xf32, #tpu.memory_space<vmem>>, vector<1x256xf32>
    %246 = vector.shape_cast %245 : vector<1x256xf32> to vector<1x1x256xf32>
    %247 = vector.broadcast %246 : vector<1x1x256xf32> to vector<4x16x256xf32>
    %248 = arith.mulf %244, %247 : vector<4x16x256xf32>
    %249 = arith.addf %243, %248 : vector<4x16x256xf32>
    %c22 = arith.constant 22 : index
    %c0_111 = arith.constant 0 : index
    %250 = vector.load %arg5[%c22, %c0_111] : memref<27x256xf32, #tpu.memory_space<vmem>>, vector<1x256xf32>
    %251 = vector.shape_cast %250 : vector<1x256xf32> to vector<1x1x256xf32>
    %252 = vector.broadcast %251 : vector<1x1x256xf32> to vector<4x16x256xf32>
    %253 = arith.mulf %225, %252 : vector<4x16x256xf32>
    %254 = arith.addf %249, %253 : vector<4x16x256xf32>
    %c240_i32_112 = arith.constant 240 : i32
    %255 = tpu.dynamic_rotate %225 by %c240_i32_112 dim 2 : vector<4x16x256xf32>, i32 -> vector<4x16x256xf32>
    %c23 = arith.constant 23 : index
    %c0_113 = arith.constant 0 : index
    %256 = vector.load %arg5[%c23, %c0_113] : memref<27x256xf32, #tpu.memory_space<vmem>>, vector<1x256xf32>
    %257 = vector.shape_cast %256 : vector<1x256xf32> to vector<1x1x256xf32>
    %258 = vector.broadcast %257 : vector<1x1x256xf32> to vector<4x16x256xf32>
    %259 = arith.mulf %255, %258 : vector<4x16x256xf32>
    %260 = arith.addf %254, %259 : vector<4x16x256xf32>
    %c0_114 = arith.constant 0 : index
    %c9_115 = arith.constant 9 : index
    %c0_116 = arith.constant 0 : index
    %261 = vector.load %arg9[%c0_114, %c9_115, %c0_116] : memref<4x32x256xf32, #tpu.memory_space<vmem>>, vector<4x16x256xf32>
    %c16_i32_117 = arith.constant 16 : i32
    %262 = tpu.dynamic_rotate %261 by %c16_i32_117 dim 2 : vector<4x16x256xf32>, i32 -> vector<4x16x256xf32>
    %c24_118 = arith.constant 24 : index
    %c0_119 = arith.constant 0 : index
    %263 = vector.load %arg5[%c24_118, %c0_119] : memref<27x256xf32, #tpu.memory_space<vmem>>, vector<1x256xf32>
    %264 = vector.shape_cast %263 : vector<1x256xf32> to vector<1x1x256xf32>
    %265 = vector.broadcast %264 : vector<1x1x256xf32> to vector<4x16x256xf32>
    %266 = arith.mulf %262, %265 : vector<4x16x256xf32>
    %267 = arith.addf %260, %266 : vector<4x16x256xf32>
    %c25 = arith.constant 25 : index
    %c0_120 = arith.constant 0 : index
    %268 = vector.load %arg5[%c25, %c0_120] : memref<27x256xf32, #tpu.memory_space<vmem>>, vector<1x256xf32>
    %269 = vector.shape_cast %268 : vector<1x256xf32> to vector<1x1x256xf32>
    %270 = vector.broadcast %269 : vector<1x1x256xf32> to vector<4x16x256xf32>
    %271 = arith.mulf %261, %270 : vector<4x16x256xf32>
    %272 = arith.addf %267, %271 : vector<4x16x256xf32>
    %c240_i32_121 = arith.constant 240 : i32
    %273 = tpu.dynamic_rotate %261 by %c240_i32_121 dim 2 : vector<4x16x256xf32>, i32 -> vector<4x16x256xf32>
    %c26 = arith.constant 26 : index
    %c0_122 = arith.constant 0 : index
    %274 = vector.load %arg5[%c26, %c0_122] : memref<27x256xf32, #tpu.memory_space<vmem>>, vector<1x256xf32>
    %275 = vector.shape_cast %274 : vector<1x256xf32> to vector<1x1x256xf32>
    %276 = vector.broadcast %275 : vector<1x1x256xf32> to vector<4x16x256xf32>
    %277 = arith.mulf %273, %276 : vector<4x16x256xf32>
    %278 = arith.addf %272, %277 : vector<4x16x256xf32>
    %c2_123 = arith.constant 2 : index
    %c0_124 = arith.constant 0 : index
    %279 = vector.load %arg6[%c2_123, %c0_124] : memref<3x256xf32, #tpu.memory_space<vmem>>, vector<1x256xf32>
    %c2_125 = arith.constant 2 : index
    %c0_126 = arith.constant 0 : index
    %280 = vector.load %arg7[%c2_125, %c0_126] : memref<3x256xf32, #tpu.memory_space<vmem>>, vector<1x256xf32>
    %cst_127 = arith.constant dense<0.000000e+00> : vector<4x16xf32>
    %281 = vector.multi_reduction <add>, %278, %cst_127 [2] : vector<4x16x256xf32> to vector<4x16xf32>
    %282 = vector.shape_cast %281 : vector<4x16xf32> to vector<4x16x1xf32>
    %cst_128 = arith.constant dense<0.000000e+00> : vector<4x1xf32>
    %283 = vector.multi_reduction <add>, %282, %cst_128 [1] : vector<4x16x1xf32> to vector<4x1xf32>
    %284 = vector.shape_cast %283 : vector<4x1xf32> to vector<4x1x1xf32>
    %285 = arith.mulf %278, %278 : vector<4x16x256xf32>
    %cst_129 = arith.constant dense<0.000000e+00> : vector<4x16xf32>
    %286 = vector.multi_reduction <add>, %285, %cst_129 [2] : vector<4x16x256xf32> to vector<4x16xf32>
    %287 = vector.shape_cast %286 : vector<4x16xf32> to vector<4x16x1xf32>
    %cst_130 = arith.constant dense<0.000000e+00> : vector<4x1xf32>
    %288 = vector.multi_reduction <add>, %287, %cst_130 [1] : vector<4x16x1xf32> to vector<4x1xf32>
    %289 = vector.shape_cast %288 : vector<4x1xf32> to vector<4x1x1xf32>
    %cst_131 = arith.constant 2.44140625E-4 : f32
    %290 = vector.broadcast %cst_131 : f32 to vector<4x1x1xf32>
    %291 = arith.mulf %284, %290 : vector<4x1x1xf32>
    %cst_132 = arith.constant 2.44140625E-4 : f32
    %292 = vector.broadcast %cst_132 : f32 to vector<4x1x1xf32>
    %293 = arith.mulf %289, %292 : vector<4x1x1xf32>
    %294 = arith.mulf %291, %291 : vector<4x1x1xf32>
    %295 = arith.subf %293, %294 : vector<4x1x1xf32>
    %296 = vector.shape_cast %279 : vector<1x256xf32> to vector<1x1x256xf32>
    %cst_133 = arith.constant 9.99999974E-6 : f32
    %297 = vector.broadcast %cst_133 : f32 to vector<4x1x1xf32>
    %298 = arith.addf %295, %297 : vector<4x1x1xf32>
    %299 = math.rsqrt %298 : vector<4x1x1xf32>
    %300 = vector.broadcast %296 : vector<1x1x256xf32> to vector<4x1x256xf32>
    %301 = vector.broadcast %299 : vector<4x1x1xf32> to vector<4x1x256xf32>
    %302 = arith.mulf %300, %301 : vector<4x1x256xf32>
    %303 = vector.shape_cast %280 : vector<1x256xf32> to vector<1x1x256xf32>
    %304 = vector.broadcast %291 : vector<4x1x1xf32> to vector<4x1x256xf32>
    %305 = arith.mulf %304, %302 : vector<4x1x256xf32>
    %306 = vector.broadcast %303 : vector<1x1x256xf32> to vector<4x1x256xf32>
    %307 = arith.subf %306, %305 : vector<4x1x256xf32>
    %308 = vector.broadcast %302 : vector<4x1x256xf32> to vector<4x16x256xf32>
    %309 = arith.mulf %278, %308 : vector<4x16x256xf32>
    %310 = vector.broadcast %307 : vector<4x1x256xf32> to vector<4x16x256xf32>
    %311 = arith.addf %309, %310 : vector<4x16x256xf32>
    %cst_134 = arith.constant 3.000000e+00 : f32
    %312 = vector.broadcast %cst_134 : f32 to vector<4x16x256xf32>
    %313 = arith.addf %311, %312 : vector<4x16x256xf32>
    %cst_135 = arith.constant 0.000000e+00 : f32
    %cst_136 = arith.constant 6.000000e+00 : f32
    %314 = vector.broadcast %cst_135 : f32 to vector<4x16x256xf32>
    %315 = arith.maximumf %314, %313 : vector<4x16x256xf32>
    %316 = vector.broadcast %cst_136 : f32 to vector<4x16x256xf32>
    %317 = arith.minimumf %316, %315 : vector<4x16x256xf32>
    %cst_137 = arith.constant 0.166666672 : f32
    %318 = vector.broadcast %cst_137 : f32 to vector<4x16x256xf32>
    %319 = arith.mulf %317, %318 : vector<4x16x256xf32>
    %320 = arith.mulf %311, %319 : vector<4x16x256xf32>
    %c0_138 = arith.constant 0 : index
    %c1_139 = arith.constant 1 : index
    %c0_140 = arith.constant 0 : index
    %c0_141 = arith.constant 0 : index
    %321 = vector.load %arg8[%c0_138, %c1_139, %c0_140, %c0_141] : memref<4x2x16x256xf32, #tpu.memory_space<vmem>>, vector<4x1x16x256xf32>
    %322 = vector.shape_cast %321 : vector<4x1x16x256xf32> to vector<4x16x256xf32>
    %323 = vector.shape_cast %320 : vector<4x16x256xf32> to vector<4x1x16x256xf32>
    tpu.vector_store %arg8[%c0_138, %c1_139, %c0_140, %c0_141], %323 {strides = array<i32>} : memref<4x2x16x256xf32, #tpu.memory_space<vmem>>, vector<4x1x16x256xf32>,
    return
  }
  func.func @transform_0(%arg0: i32) -> (i32, i32, i32) {
    %c0_i32 = arith.constant 0 : i32
    %c0_i32_0 = arith.constant 0 : i32
    %c0_i32_1 = arith.constant 0 : i32
    return %arg0, %c0_i32, %c0_i32_0 : i32, i32, i32
  }
  func.func @transform_1(%arg0: i32) -> (i32, i32) {
    %c0_i32 = arith.constant 0 : i32
    %c0_i32_0 = arith.constant 0 : i32
    %c0_i32_1 = arith.constant 0 : i32
    return %c0_i32, %c0_i32_0 : i32, i32
  }
  func.func @transform_2(%arg0: i32) -> (i32, i32) {
    %c0_i32 = arith.constant 0 : i32
    %c0_i32_0 = arith.constant 0 : i32
    %c0_i32_1 = arith.constant 0 : i32
    return %c0_i32, %c0_i32_0 : i32, i32
  }
  func.func @transform_3(%arg0: i32) -> (i32, i32) {
    %c0_i32 = arith.constant 0 : i32
    %c0_i32_0 = arith.constant 0 : i32
    %c0_i32_1 = arith.constant 0 : i32
    return %c0_i32, %c0_i32_0 : i32, i32
  }
  func.func @transform_4(%arg0: i32) -> (i32, i32) {
    %c0_i32 = arith.constant 0 : i32
    %c0_i32_0 = arith.constant 0 : i32
    %c0_i32_1 = arith.constant 0 : i32
    return %c0_i32, %c0_i32_0 : i32, i32
  }
  func.func @transform_5(%arg0: i32) -> (i32, i32) {
    %c0_i32 = arith.constant 0 : i32
    %c0_i32_0 = arith.constant 0 : i32
    %c0_i32_1 = arith.constant 0 : i32
    return %c0_i32, %c0_i32_0 : i32, i32
  }
  func.func @transform_6(%arg0: i32) -> (i32, i32) {
    %c0_i32 = arith.constant 0 : i32
    %c0_i32_0 = arith.constant 0 : i32
    %c0_i32_1 = arith.constant 0 : i32
    return %c0_i32, %c0_i32_0 : i32, i32
  }
  func.func @transform_7(%arg0: i32) -> (i32, i32, i32, i32) {
    %c0_i32 = arith.constant 0 : i32
    %c0_i32_0 = arith.constant 0 : i32
    %c0_i32_1 = arith.constant 0 : i32
    %c0_i32_2 = arith.constant 0 : i32
    return %arg0, %c0_i32, %c0_i32_0, %c0_i32_1 : i32, i32, i32, i32
  }
}

</mosaic_0001>

<llo_original>
// kernel: tpu_custom_call.1
$region0: #{tpu_custom_call.1}
  #allocation0 [shape = 'u32[]', space=smem, size = 0x4, offset = 0x4, fixed_abs, tag = 'smem constant byte address 0x4 - core index']
  #allocation1 [shape = 'u32[144,128]{1,0:T(1,128)}', space=vmem, size = 0x12000, scoped, tag = 'internal scratch']
  #allocation2 [shape = 'f32[4,32,256]{2,1,0:T(8,128)}', space=vmem, size = 0x20000, scoped, tag = 'scratch operand']
  %s0 = inlined_call_operand.hbm [shape: f32[8,16,256], index: 0, kind: input, shape index: {}]
  %s1 = inlined_call_operand.hbm [shape: bf16[256,256], index: 1, kind: input, shape index: {}]
  %s2 = inlined_call_operand.hbm [shape: f32[1,256], index: 2, kind: input, shape index: {}]
  %s3 = inlined_call_operand.hbm [shape: f32[1,256], index: 3, kind: input, shape index: {}]
  %s4 = inlined_call_operand.hbm [shape: f32[27,256], index: 4, kind: input, shape index: {}]
  %s5 = inlined_call_operand.vmem [shape: f32[3,256], index: 5, kind: input, shape index: {}]
  %s6 = inlined_call_operand.hbm [shape: f32[3,256], index: 6, kind: input, shape index: {}]
  %s7 = inlined_call_operand.hbm [shape: f32[8,2,16,256], index: 7, kind: output, shape index: {}]
  %s8 = sld [smem:[#allocation0]]
  $region85: #{tpu_custom_call.1} parent=0
    _
  %s10 = ssub.s32 1, %s8
  %s11 = scalar_select 0, %s10, %s8
  $region1: #{tpu_custom_call.1} parent=0
    #allocation3 [shape = 'u8[131072]{0}', space=vmem, size = 0x20000, scoped, tag = 'input window, operand 0']
    #allocation4 [shape = 's32[2]{0}', space=sflag, size = 0x8, scoped, tag = 'scoped memory for tpu_custom_call.1']
    #allocation5 [shape = 's32[2]{0}', space=sflag, size = 0x8, scoped, tag = 'scoped memory for tpu_custom_call.1']
    #allocation6 [shape = 'u8[131072]{0}', space=vmem, size = 0x20000, scoped, tag = 'input window, operand 1, single buffered']
    #allocation7 [shape = 's32[1]{0}', space=sflag, size = 0x4, scoped, tag = 'scoped memory for tpu_custom_call.1']
    #allocation8 [shape = 'u8[1024]{0}', space=vmem, size = 0x400, scoped, tag = 'input window, operand 2, single buffered']
    #allocation9 [shape = 'u8[1024]{0}', space=vmem, size = 0x400, scoped, tag = 'input window, operand 3, single buffered']
    #allocation10 [shape = 's32[1]{0}', space=sflag, size = 0x4, scoped, tag = 'scoped memory for tpu_custom_call.1']
    #allocation11 [shape = 'u8[32768]{0}', space=vmem, size = 0x8000, scoped, tag = 'input window, operand 4, single buffered']
    #allocation12 [shape = 'u8[4096]{0}', space=vmem, size = 0x1000, scoped, tag = 'input window, operand 6, single buffered']
    #allocation13 [shape = 's32[1]{0}', space=sflag, size = 0x4, scoped, tag = 'scoped memory for tpu_custom_call.1']
    #allocation14 [shape = 'u8[262144]{0}', space=vmem, size = 0x40000, scoped, tag = 'output window, operand 0']
    %12 = vsyncpa [#allocation4], 0
    %s13 = scalar_lea.sflag [#allocation4], 1
    %14 = vsyncpa %s13, 0
    %15 = vsyncpa [#allocation7], 0
    %16 = vsyncpa [#allocation10], 0
    %17 = vsyncpa [#allocation13], 0
    %18 = vsyncpa [#allocation5], 0
    %s19 = scalar_lea.sflag [#allocation5], 1
    %20 = vsyncpa %s19, 0
    loop: start=0, step=1, limit=4
    $region2: #{tpu_custom_call.1} parent=1 // loop_pre_header
      _
    $region3: #{tpu_custom_call.1} parent=1 // loop_header
      %s22 = sphi 0, %s26
      %p23 = scmp.ge.s32.totalorder %s22, 4
      %s32 = sphi 0, %s34
      %s35 = sphi 0, %s32
      %s36 = sphi 0, %s35
      %s52 = sphi 0, %s36
      %s56 = sphi 0, %s56
      %s58 = sphi 0, %s56
      %s59 = sphi 0, %s58
      %s73 = sphi 0, %s59
      %s77 = sphi 0, %s77
      %s79 = sphi 0, %s77
      %s80 = sphi 0, %s79
      %s94 = sphi 0, %s80
      %s98 = sphi 0, %s98
      %s100 = sphi 0, %s98
      %s101 = sphi 0, %s100
      %s115 = sphi 0, %s101
      %s119 = sphi 0, %s119
      %s121 = sphi 0, %s119
      %s122 = sphi 0, %s121
      %s136 = sphi 0, %s122
      %s140 = sphi 0, %s140
      %s142 = sphi 0, %s140
      %s143 = sphi 0, %s142
      %s157 = sphi 0, %s143
      %s161 = sphi 0, %s161
      %s163 = sphi 0, %s161
      %s164 = sphi 0, %s163
      %s178 = sphi 0, %s164
      %s184 = sphi 0, %s186
      %s187 = sphi 0, %s184
      %s188 = sphi 0, %s187
      %s204 = sphi 0, %s188
    $region4: #{tpu_custom_call.1} parent=1 // loop_header_branch
      %25 = sbr.rel (%p23) target = $region8
    $region5: #{tpu_custom_call.1} parent=1 // loop_body
      %s27 = ssub.s32 %s22, 1
      %s28 = ssub.s32 %s22, 2
      %s29 = sadd.s32 %s22, 1
      %s30 = ssub.s32 %s22, %s29
      %p31 = scmp.eq.s32.totalorder %s30, 0
      %s33 = sadd.s32 %s32, 1
      %s34 = scalar_select %p31, %s32, %s33
      %p37 = pneg %p31
      %p38 = scmp.eq.s32.totalorder %s22, 1
      %p39 = por %p37, %p38
      %p40 = scmp.ne.s32.totalorder %s32, %s35
      %p41 = scmp.eq.s32.totalorder %s22, 0
      %p42 = por %p40, %p41
      %p43 = scmp.ne.s32.totalorder %s32, %s35
      %p44 = scmp.eq.s32.totalorder %s27, 1
      %p45 = por %p43, %p44
      %p46 = scmp.ne.s32.totalorder %s35, %s36
      %p47 = scmp.eq.s32.totalorder %s27, 0
      %p48 = por %p46, %p47
      %p49 = scmp.ne.s32.totalorder %s35, %s36
      %p50 = scmp.eq.s32.totalorder %s28, 1
      %p51 = por %p49, %p50
      %p53 = scmp.ne.s32.totalorder %s36, %s52
      %p54 = scmp.eq.s32.totalorder %s28, 0
      %p55 = por %p53, %p54
      %s57 = sadd.s32 %s56, 1
      %p60 = scmp.eq.s32.totalorder %s22, 1
      %p61 = scmp.ne.s32.totalorder %s56, %s58
      %p62 = scmp.eq.s32.totalorder %s22, 0
      %p63 = por %p61, %p62
      %p64 = scmp.ne.s32.totalorder %s56, %s58
      %p65 = scmp.eq.s32.totalorder %s27, 1
      %p66 = por %p64, %p65
      %p67 = scmp.ne.s32.totalorder %s58, %s59
      %p68 = scmp.eq.s32.totalorder %s27, 0
      %p69 = por %p67, %p68
      %p70 = scmp.ne.s32.totalorder %s58, %s59
      %p71 = scmp.eq.s32.totalorder %s28, 1
      %p72 = por %p70, %p71
      %p74 = scmp.ne.s32.totalorder %s59, %s73
      %p75 = scmp.eq.s32.totalorder %s28, 0
      %p76 = por %p74, %p75
      %s78 = sadd.s32 %s77, 1
      %p81 = scmp.eq.s32.totalorder %s22, 1
      %p82 = scmp.ne.s32.totalorder %s77, %s79
      %p83 = scmp.eq.s32.totalorder %s22, 0
      %p84 = por %p82, %p83
      %p85 = scmp.ne.s32.totalorder %s77, %s79
      %p86 = scmp.eq.s32.totalorder %s27, 1
      %p87 = por %p85, %p86
      %p88 = scmp.ne.s32.totalorder %s79, %s80
      %p89 = scmp.eq.s32.totalorder %s27, 0
      %p90 = por %p88, %p89
      %p91 = scmp.ne.s32.totalorder %s79, %s80
      %p92 = scmp.eq.s32.totalorder %s28, 1
      %p93 = por %p91, %p92
      %p95 = scmp.ne.s32.totalorder %s80, %s94
      %p96 = scmp.eq.s32.totalorder %s28, 0
      %p97 = por %p95, %p96
      %s99 = sadd.s32 %s98, 1
      %p102 = scmp.eq.s32.totalorder %s22, 1
      %p103 = scmp.ne.s32.totalorder %s98, %s100
      %p104 = scmp.eq.s32.totalorder %s22, 0
      %p105 = por %p103, %p104
      %p106 = scmp.ne.s32.totalorder %s98, %s100
      %p107 = scmp.eq.s32.totalorder %s27, 1
      %p108 = por %p106, %p107
      %p109 = scmp.ne.s32.totalorder %s100, %s101
      %p110 = scmp.eq.s32.totalorder %s27, 0
      %p111 = por %p109, %p110
      %p112 = scmp.ne.s32.totalorder %s100, %s101
      %p113 = scmp.eq.s32.totalorder %s28, 1
      %p114 = por %p112, %p113
      %p116 = scmp.ne.s32.totalorder %s101, %s115
      %p117 = scmp.eq.s32.totalorder %s28, 0
      %p118 = por %p116, %p117
      %s120 = sadd.s32 %s119, 1
      %p123 = scmp.eq.s32.totalorder %s22, 1
      %p124 = scmp.ne.s32.totalorder %s119, %s121
      %p125 = scmp.eq.s32.totalorder %s22, 0
      %p126 = por %p124, %p125
      %p127 = scmp.ne.s32.totalorder %s119, %s121
      %p128 = scmp.eq.s32.totalorder %s27, 1
      %p129 = por %p127, %p128
      %p130 = scmp.ne.s32.totalorder %s121, %s122
      %p131 = scmp.eq.s32.totalorder %s27, 0
      %p132 = por %p130, %p131
      %p133 = scmp.ne.s32.totalorder %s121, %s122
      %p134 = scmp.eq.s32.totalorder %s28, 1
      %p135 = por %p133, %p134
      %p137 = scmp.ne.s32.totalorder %s122, %s136
      %p138 = scmp.eq.s32.totalorder %s28, 0
      %p139 = por %p137, %p138
      %s141 = sadd.s32 %s140, 1
      %p144 = scmp.eq.s32.totalorder %s22, 1
      %p145 = scmp.ne.s32.totalorder %s140, %s142
      %p146 = scmp.eq.s32.totalorder %s22, 0
      %p147 = por %p145, %p146
      %p148 = scmp.ne.s32.totalorder %s140, %s142
      %p149 = scmp.eq.s32.totalorder %s27, 1
      %p150 = por %p148, %p149
      %p151 = scmp.ne.s32.totalorder %s142, %s143
      %p152 = scmp.eq.s32.totalorder %s27, 0
      %p153 = por %p151, %p152
      %p154 = scmp.ne.s32.totalorder %s142, %s143
      %p155 = scmp.eq.s32.totalorder %s28, 1
      %p156 = por %p154, %p155
      %p158 = scmp.ne.s32.totalorder %s143, %s157
      %p159 = scmp.eq.s32.totalorder %s28, 0
      %p160 = por %p158, %p159
      %s162 = sadd.s32 %s161, 1
      %p165 = scmp.eq.s32.totalorder %s22, 1
      %p166 = scmp.ne.s32.totalorder %s161, %s163
      %p167 = scmp.eq.s32.totalorder %s22, 0
      %p168 = por %p166, %p167
      %p169 = scmp.ne.s32.totalorder %s161, %s163
      %p170 = scmp.eq.s32.totalorder %s27, 1
      %p171 = por %p169, %p170
      %p172 = scmp.ne.s32.totalorder %s163, %s164
      %p173 = scmp.eq.s32.totalorder %s27, 0
      %p174 = por %p172, %p173
      %p175 = scmp.ne.s32.totalorder %s163, %s164
      %p176 = scmp.eq.s32.totalorder %s28, 1
      %p177 = por %p175, %p176
      %p179 = scmp.ne.s32.totalorder %s164, %s178
      %p180 = scmp.eq.s32.totalorder %s28, 0
      %p181 = por %p179, %p180
      %s182 = ssub.s32 %s22, %s29
      %p183 = scmp.eq.s32.totalorder %s182, 0
      %s185 = sadd.s32 %s184, 1
      %s186 = scalar_select %p183, %s184, %s185
      %p189 = pneg %p183
      %p190 = scmp.eq.s32.totalorder %s22, 1
      %p191 = por %p189, %p190
      %p192 = scmp.ne.s32.totalorder %s184, %s187
      %p193 = scmp.eq.s32.totalorder %s22, 0
      %p194 = por %p192, %p193
      %p195 = scmp.ne.s32.totalorder %s184, %s187
      %p196 = scmp.eq.s32.totalorder %s27, 1
      %p197 = por %p195, %p196
      %p198 = scmp.ne.s32.totalorder %s187, %s188
      %p199 = scmp.eq.s32.totalorder %s27, 0
      %p200 = por %p198, %p199
      %p201 = scmp.ne.s32.totalorder %s187, %s188
      %p202 = scmp.eq.s32.totalorder %s28, 1
      %p203 = por %p201, %p202
      %p205 = scmp.ne.s32.totalorder %s188, %s204
      %p206 = scmp.eq.s32.totalorder %s28, 0
      %p207 = por %p205, %p206
      %p208 = scmp.le.s32.totalorder 1, %s22
      %p209 = scmp.lt.s32.totalorder %s22, 3
      %p210 = pnand %p208, %p209
      %p211 = pneg %p210
      // Predicated region
      $region9: #{tpu_custom_call.1} parent=5 // pred_check
        _
      $region10: #{tpu_custom_call.1} parent=5 // pred_check_branch
        %213 = sbr.rel (%p210) target = $region12
      $region11: #{tpu_custom_call.1} parent=5 // pred_region
        %s214 = ssub.s32 %s22, 1
        // Predicated region
        $region13: #{tpu_custom_call.1} parent=11 // pred_check
          %p215 = pneg %p69
        $region14: #{tpu_custom_call.1} parent=11 // pred_check_branch
          %217 = sbr.rel (%p215) target = $region16
        $region15: #{tpu_custom_call.1} parent=11 // pred_region
          %s219 = ssub.s32 4096, 4096
          %220 = vsyncadd [#allocation7], %s219
          %s221 = sshll.u32 [#allocation6], 4
          %s222 = int_to_ptr.vmem [resolvable:$true] %s221
          %227 = dma.hbm_to_vmem [thread:$0]  %s1, 4096, %s222, [#allocation7], 128, 128, 8
        $region16: #{tpu_custom_call.1} parent=11 // pred_fallthru
          _
        // Predicated region
        $region17: #{tpu_custom_call.1} parent=11 // pred_check
          %p228 = pneg %p90
        $region18: #{tpu_custom_call.1} parent=11 // pred_check_branch
          %230 = sbr.rel (%p228) target = $region20
        $region19: #{tpu_custom_call.1} parent=11 // pred_region
          %s232 = ssub.s32 32, 32
          %233 = vsyncadd [#allocation7], %s232
          %s235 = sshll.u32 [#allocation8], 4
          %s236 = int_to_ptr.vmem [resolvable:$true] %s235
          %238 = dma.hbm_to_vmem [thread:$0]  %s2, 32, %s236, [#allocation7]
        $region20: #{tpu_custom_call.1} parent=11 // pred_fallthru
          _
        // Predicated region
        $region21: #{tpu_custom_call.1} parent=11 // pred_check
          %p239 = pneg %p111
        $region22: #{tpu_custom_call.1} parent=11 // pred_check_branch
          %241 = sbr.rel (%p239) target = $region24
        $region23: #{tpu_custom_call.1} parent=11 // pred_region
          %s243 = ssub.s32 32, 32
          %244 = vsyncadd [#allocation10], %s243
          %s246 = sshll.u32 [#allocation9], 4
          %s247 = int_to_ptr.vmem [resolvable:$true] %s246
          %249 = dma.hbm_to_vmem [thread:$0]  %s3, 32, %s247, [#allocation10]
        $region24: #{tpu_custom_call.1} parent=11 // pred_fallthru
          _
        // Predicated region
        $region25: #{tpu_custom_call.1} parent=11 // pred_check
          %p250 = pneg %p132
        $region26: #{tpu_custom_call.1} parent=11 // pred_check_branch
          %252 = sbr.rel (%p250) target = $region28
        $region27: #{tpu_custom_call.1} parent=11 // pred_region
          %s254 = ssub.s32 1024, 1024
          %255 = vsyncadd [#allocation10], %s254
          %s256 = sshll.u32 [#allocation11], 4
          %s257 = int_to_ptr.vmem [resolvable:$true] %s256
          %262 = dma.hbm_to_vmem [thread:$0]  %s4, 1024, %s257, [#allocation10], 256, 256, 16
        $region28: #{tpu_custom_call.1} parent=11 // pred_fallthru
          _
        // Predicated region
        $region29: #{tpu_custom_call.1} parent=11 // pred_check
          %p263 = pneg %p153
        $region30: #{tpu_custom_call.1} parent=11 // pred_check_branch
          %265 = sbr.rel (%p263) target = $region32
        $region31: #{tpu_custom_call.1} parent=11 // pred_region
          _
        $region32: #{tpu_custom_call.1} parent=11 // pred_fallthru
          _
        // Predicated region
        $region33: #{tpu_custom_call.1} parent=11 // pred_check
          %p266 = pneg %p174
        $region34: #{tpu_custom_call.1} parent=11 // pred_check_branch
          %268 = sbr.rel (%p266) target = $region36
        $region35: #{tpu_custom_call.1} parent=11 // pred_region
          %s270 = ssub.s32 128, 128
          %271 = vsyncadd [#allocation13], %s270
          %s273 = sshll.u32 [#allocation12], 4
          %s274 = int_to_ptr.vmem [resolvable:$true] %s273
          %276 = dma.hbm_to_vmem [thread:$0]  %s6, 128, %s274, [#allocation13]
        $region36: #{tpu_custom_call.1} parent=11 // pred_fallthru
          _
      $region12: #{tpu_custom_call.1} parent=5 // pred_fallthru
        _
      %p277 = scmp.lt.s32.totalorder %s22, 2
      // Predicated region
      $region37: #{tpu_custom_call.1} parent=5 // pred_check
        %p278 = pneg %p277
      $region38: #{tpu_custom_call.1} parent=5 // pred_check_branch
        %280 = sbr.rel (%p278) target = $region40
      $region39: #{tpu_custom_call.1} parent=5 // pred_region
        // Predicated region
        $region41: #{tpu_custom_call.1} parent=39 // pred_check
          %p281 = pneg %p42
        $region42: #{tpu_custom_call.1} parent=39 // pred_check_branch
          %283 = sbr.rel (%p281) target = $region44
        $region43: #{tpu_custom_call.1} parent=39 // pred_region
          %s284 = sand.u32 %s32, 1
          %s285 = scalar_lea.sflag [#allocation4], %s284
          %s286 = sand.u32 %s32, 1
          %s287 = smul.addr %s286, 128
          %s288 = scalar_lea.vmem [#allocation3], %s287
          %s289 = smul.u32 4, %s22
          %s291 = ssub.s32 2048, 2048
          %292 = vsyncadd %s285, %s291
          %s293 = smul.addr %s289, 4
          %s294 = smul.addr %s293, 128
          %s295 = scalar_lea.hbm %s0, %s294
          %s296 = sshll.u32 %s288, 4
          %s297 = int_to_ptr.vmem [resolvable:$true] %s296
          %302 = dma.hbm_to_vmem [thread:$0]  %s295, 2048, %s297, %s285, 256, 256, 16
        $region44: #{tpu_custom_call.1} parent=39 // pred_fallthru
          _
      $region40: #{tpu_custom_call.1} parent=5 // pred_fallthru
        _
      %p303 = scmp.le.s32.totalorder 1, %s22
      %p304 = scmp.lt.s32.totalorder %s22, 3
      %p305 = pnand %p303, %p304
      %p306 = pneg %p305
      // Predicated region
      $region45: #{tpu_custom_call.1} parent=5 // pred_check
        _
      $region46: #{tpu_custom_call.1} parent=5 // pred_check_branch
        %308 = sbr.rel (%p305) target = $region48
      $region47: #{tpu_custom_call.1} parent=5 // pred_region
        %s309 = ssub.s32 %s22, 1
        %s310 = sand.u32 %s35, 1
        %s311 = scalar_lea.sflag [#allocation4], %s310
        %s312 = sand.u32 %s35, 1
        %s313 = smul.addr %s312, 128
        %s314 = scalar_lea.vmem [#allocation3], %s313
        // Predicated region
        $region49: #{tpu_custom_call.1} parent=47 // pred_check
          %p315 = pneg %p48
        $region50: #{tpu_custom_call.1} parent=47 // pred_check_branch
          %317 = sbr.rel (%p315) target = $region52
        $region51: #{tpu_custom_call.1} parent=47 // pred_region
          %318 = dma.done %s311, 2048
        $region52: #{tpu_custom_call.1} parent=47 // pred_fallthru
          _
        // Predicated region
        $region53: #{tpu_custom_call.1} parent=47 // pred_check
          %p319 = pneg %p69
        $region54: #{tpu_custom_call.1} parent=47 // pred_check_branch
          %321 = sbr.rel (%p319) target = $region56
        $region55: #{tpu_custom_call.1} parent=47 // pred_region
          %322 = dma.done [#allocation7], 4096
        $region56: #{tpu_custom_call.1} parent=47 // pred_fallthru
          _
        // Predicated region
        $region57: #{tpu_custom_call.1} parent=47 // pred_check
          %p323 = pneg %p90
        $region58: #{tpu_custom_call.1} parent=47 // pred_check_branch
          %325 = sbr.rel (%p323) target = $region60
        $region59: #{tpu_custom_call.1} parent=47 // pred_region
          %326 = dma.done [#allocation7], 32
        $region60: #{tpu_custom_call.1} parent=47 // pred_fallthru
          _
        // Predicated region
        $region61: #{tpu_custom_call.1} parent=47 // pred_check
          %p327 = pneg %p111
        $region62: #{tpu_custom_call.1} parent=47 // pred_check_branch
          %329 = sbr.rel (%p327) target = $region64
        $region63: #{tpu_custom_call.1} parent=47 // pred_region
          %330 = dma.done [#allocation10], 32
        $region64: #{tpu_custom_call.1} parent=47 // pred_fallthru
          _
        // Predicated region
        $region65: #{tpu_custom_call.1} parent=47 // pred_check
          %p331 = pneg %p132
        $region66: #{tpu_custom_call.1} parent=47 // pred_check_branch
          %333 = sbr.rel (%p331) target = $region68
        $region67: #{tpu_custom_call.1} parent=47 // pred_region
          %334 = dma.done [#allocation10], 1024
        $region68: #{tpu_custom_call.1} parent=47 // pred_fallthru
          _
        // Predicated region
        $region69: #{tpu_custom_call.1} parent=47 // pred_check
          %p335 = pneg %p174
        $region70: #{tpu_custom_call.1} parent=47 // pred_check_branch
          %337 = sbr.rel (%p335) target = $region72
        $region71: #{tpu_custom_call.1} parent=47 // pred_region
          %338 = dma.done [#allocation13], 128
        $region72: #{tpu_custom_call.1} parent=47 // pred_fallthru
          _
        %s339 = sand.u32 %s35, 1
        %s340 = scalar_lea.sflag [#allocation4], %s339
        %s341 = sand.u32 %s35, 1
        %s342 = smul.addr %s341, 128
        %s343 = scalar_lea.vmem [#allocation3], %s342
        %p344 = pneg %p48
        %p345 = pneg %p45
        %p346 = pneg %p69
        %p347 = pneg %p66
        %p348 = pneg %p90
        %p349 = pneg %p87
        %p350 = pneg %p111
        %p351 = pneg %p108
        %p352 = pneg %p132
        %p353 = pneg %p129
        %p354 = pneg %p153
        %p355 = pneg %p150
        %p356 = pneg %p174
        %p357 = pneg %p171
        %p358 = pneg %p200
        %p359 = pneg %p197
        %s360 = sand.u32 %s187, 1
        %s361 = scalar_lea.sflag [#allocation5], %s360
        %s362 = sand.u32 %s187, 1
        %s363 = smul.addr %s362, 256
        %s364 = scalar_lea.vmem [#allocation14], %s363
        %s365 = smul.u32 4, %s27
        %s366 = smul.u32 4, %s27
        %v367 = vlaneseq
        %vm368 = vcmp.ge.s32.totalorder %v367, 0
        %vm369 = vcmp.lt.s32.totalorder %v367, 256
        %vm370 = vmand %vm368, %vm369
        %s371 = scalar_lea.vmem [#allocation2], 7
        %372 = vst.msk [vmem:[%s371] ss:$8 sm:$0x3] %vm370, 0.0
        %373 = vst.msk [vmem:[%s371] ss:$8 sm:$0x0] %vm370, 0.0
        %s374 = scalar_lea.vmem [#allocation2], 71
        %375 = vst.msk [vmem:[%s374] ss:$8 sm:$0x3] %vm370, 0.0
        %376 = vst.msk [vmem:[%s374] ss:$8 sm:$0x0] %vm370, 0.0
        %s377 = scalar_lea.vmem [#allocation2], 135
        %378 = vst.msk [vmem:[%s377] ss:$8 sm:$0x3] %vm370, 0.0
        %379 = vst.msk [vmem:[%s377] ss:$8 sm:$0x0] %vm370, 0.0
        %s380 = scalar_lea.vmem [#allocation2], 199
        %381 = vst.msk [vmem:[%s380] ss:$8 sm:$0x3] %vm370, 0.0
        %382 = vst.msk [vmem:[%s380] ss:$8 sm:$0x0] %vm370, 0.0
        %s383 = scalar_lea.vmem [#allocation2], 48
        %384 = vst.msk [vmem:[%s383] ss:$8 sm:$0x3] %vm370, 0.0
        %385 = vst.msk [vmem:[%s383] ss:$8 sm:$0x0] %vm370, 0.0
        %s386 = scalar_lea.vmem [#allocation2], 112
        %387 = vst.msk [vmem:[%s386] ss:$8 sm:$0x3] %vm370, 0.0
        %388 = vst.msk [vmem:[%s386] ss:$8 sm:$0x0] %vm370, 0.0
        %s389 = scalar_lea.vmem [#allocation2], 176
        %390 = vst.msk [vmem:[%s389] ss:$8 sm:$0x3] %vm370, 0.0
        %391 = vst.msk [vmem:[%s389] ss:$8 sm:$0x0] %vm370, 0.0
        %s392 = scalar_lea.vmem [#allocation2], 240
        %393 = vst.msk [vmem:[%s392] ss:$8 sm:$0x3] %vm370, 0.0
        %394 = vst.msk [vmem:[%s392] ss:$8 sm:$0x0] %vm370, 0.0
        %v395 = vld [vmem:[%s314] sm:$0xff]
        %v396 = vld [vmem:[%s314 + $0x8] sm:$0xff]
        %v397 = vld [vmem:[%s314 + $0x10] sm:$0xff]
        %v398 = vld [vmem:[%s314 + $0x18] sm:$0xff]
        %v399 = vld [vmem:[%s314 + $0x20] sm:$0xff]
        %v400 = vld [vmem:[%s314 + $0x28] sm:$0xff]
        %v401 = vld [vmem:[%s314 + $0x30] sm:$0xff]
        %v402 = vld [vmem:[%s314 + $0x38] sm:$0xff]
        %v403 = vld [vmem:[%s314 + $0x40] sm:$0xff]
        %v404 = vld [vmem:[%s314 + $0x48] sm:$0xff]
        %v405 = vld [vmem:[%s314 + $0x50] sm:$0xff]
        %v406 = vld [vmem:[%s314 + $0x58] sm:$0xff]
        %v407 = vld [vmem:[%s314 + $0x60] sm:$0xff]
        %v408 = vld [vmem:[%s314 + $0x68] sm:$0xff]
        %v409 = vld [vmem:[%s314 + $0x70] sm:$0xff]
        %v410 = vld [vmem:[%s314 + $0x78] sm:$0xff]
        %v411 = vpack.c.bf16 %v397, %v395
        %v412 = vpack.c.bf16 %v398, %v396
        %v413 = vpack.c.bf16 %v401, %v399
        %v414 = vpack.c.bf16 %v402, %v400
        %v415 = vpack.c.bf16 %v405, %v403
        %v416 = vpack.c.bf16 %v406, %v404
        %v417 = vpack.c.bf16 %v409, %v407
        %v418 = vpack.c.bf16 %v410, %v408
        %v419 = vld [vmem:[#allocation6] sm:$0xff]
        %v420 = vld [vmem:[#allocation6 + $0x8] sm:$0xff]
        %v421 = vld [vmem:[#allocation6 + $0x10] sm:$0xff]
        %v422 = vld [vmem:[#allocation6 + $0x18] sm:$0xff]
        %v423 = vld [vmem:[#allocation6 + $0x20] sm:$0xff]
        %v424 = vld [vmem:[#allocation6 + $0x28] sm:$0xff]
        %v425 = vld [vmem:[#allocation6 + $0x30] sm:$0xff]
        %v426 = vld [vmem:[#allocation6 + $0x38] sm:$0xff]
        %v427 = vld [vmem:[#allocation6 + $0x40] sm:$0xff]
        %v428 = vld [vmem:[#allocation6 + $0x48] sm:$0xff]
        %v429 = vld [vmem:[#allocation6 + $0x50] sm:$0xff]
        %v430 = vld [vmem:[#allocation6 + $0x58] sm:$0xff]
        %v431 = vld [vmem:[#allocation6 + $0x60] sm:$0xff]
        %v432 = vld [vmem:[#allocation6 + $0x68] sm:$0xff]
        %v433 = vld [vmem:[#allocation6 + $0x70] sm:$0xff]
        %v434 = vld [vmem:[#allocation6 + $0x78] sm:$0xff]
        %v435 = vld [vmem:[#allocation6 + $0x80] sm:$0xff]
        %v436 = vld [vmem:[#allocation6 + $0x88] sm:$0xff]
        %v437 = vld [vmem:[#allocation6 + $0x90] sm:$0xff]
        %v438 = vld [vmem:[#allocation6 + $0x98] sm:$0xff]
        %v439 = vld [vmem:[#allocation6 + $0xa0] sm:$0xff]
        %v440 = vld [vmem:[#allocation6 + $0xa8] sm:$0xff]
        %v441 = vld [vmem:[#allocation6 + $0xb0] sm:$0xff]
        %v442 = vld [vmem:[#allocation6 + $0xb8] sm:$0xff]
        %v443 = vld [vmem:[#allocation6 + $0xc0] sm:$0xff]
        %v444 = vld [vmem:[#allocation6 + $0xc8] sm:$0xff]
        %v445 = vld [vmem:[#allocation6 + $0xd0] sm:$0xff]
        %v446 = vld [vmem:[#allocation6 + $0xd8] sm:$0xff]
        %v447 = vld [vmem:[#allocation6 + $0xe0] sm:$0xff]
        %v448 = vld [vmem:[#allocation6 + $0xe8] sm:$0xff]
        %v449 = vld [vmem:[#allocation6 + $0xf0] sm:$0xff]
        %v450 = vld [vmem:[#allocation6 + $0xf8] sm:$0xff]
        %v483 = vunpack.c.l.b16 %v419
        %v484 = vunpack.c.h.b16 %v419
        %v485 = vunpack.c.l.b16 %v420
        %v486 = vunpack.c.h.b16 %v420
        %v487 = vunpack.c.l.b16 %v421
        %v488 = vunpack.c.h.b16 %v421
        %v489 = vunpack.c.l.b16 %v422
        %v490 = vunpack.c.h.b16 %v422
        %v491 = vunpack.c.l.b16 %v423
        %v492 = vunpack.c.h.b16 %v423
        %v493 = vunpack.c.l.b16 %v424
        %v494 = vunpack.c.h.b16 %v424
        %v495 = vunpack.c.l.b16 %v425
        %v496 = vunpack.c.h.b16 %v425
        %v497 = vunpack.c.l.b16 %v426
        %v498 = vunpack.c.h.b16 %v426
        %v499 = vunpack.c.l.b16 %v427
        %v500 = vunpack.c.h.b16 %v427
        %v501 = vunpack.c.l.b16 %v428
        %v502 = vunpack.c.h.b16 %v428
        %v503 = vunpack.c.l.b16 %v429
        %v504 = vunpack.c.h.b16 %v429
        %v505 = vunpack.c.l.b16 %v430
        %v506 = vunpack.c.h.b16 %v430
        %v507 = vunpack.c.l.b16 %v431
        %v508 = vunpack.c.h.b16 %v431
        %v509 = vunpack.c.l.b16 %v432
        %v510 = vunpack.c.h.b16 %v432
        %v511 = vunpack.c.l.b16 %v433
        %v512 = vunpack.c.h.b16 %v433
        %v513 = vunpack.c.l.b16 %v434
        %v514 = vunpack.c.h.b16 %v434
        %v515 = vunpack.c.l.b16 %v435
        %v516 = vunpack.c.h.b16 %v435
        %v517 = vunpack.c.l.b16 %v436
        %v518 = vunpack.c.h.b16 %v436
        %v519 = vunpack.c.l.b16 %v437
        %v520 = vunpack.c.h.b16 %v437
        %v521 = vunpack.c.l.b16 %v438
        %v522 = vunpack.c.h.b16 %v438
        %v523 = vunpack.c.l.b16 %v439
        %v524 = vunpack.c.h.b16 %v439
        %v525 = vunpack.c.l.b16 %v440
        %v526 = vunpack.c.h.b16 %v440
        %v527 = vunpack.c.l.b16 %v441
        %v528 = vunpack.c.h.b16 %v441
        %v529 = vunpack.c.l.b16 %v442
        %v530 = vunpack.c.h.b16 %v442
        %v531 = vunpack.c.l.b16 %v443
        %v532 = vunpack.c.h.b16 %v443
        %v533 = vunpack.c.l.b16 %v444
        %v534 = vunpack.c.h.b16 %v444
        %v535 = vunpack.c.l.b16 %v445
        %v536 = vunpack.c.h.b16 %v445
        %v537 = vunpack.c.l.b16 %v446
        %v538 = vunpack.c.h.b16 %v446
        %v539 = vunpack.c.l.b16 %v447
        %v540 = vunpack.c.h.b16 %v447
        %v541 = vunpack.c.l.b16 %v448
        %v542 = vunpack.c.h.b16 %v448
        %v543 = vunpack.c.l.b16 %v449
        %v544 = vunpack.c.h.b16 %v449
        %v545 = vunpack.c.l.b16 %v450
        %v546 = vunpack.c.h.b16 %v450
        %v547 = vpack.c.b16 %v485, %v483
        %v548 = vpack.c.b16 %v486, %v484
        %v549 = vpack.c.b16 %v489, %v487
        %v550 = vpack.c.b16 %v490, %v488
        %v551 = vpack.c.b16 %v493, %v491
        %v552 = vpack.c.b16 %v494, %v492
        %v553 = vpack.c.b16 %v497, %v495
        %v554 = vpack.c.b16 %v498, %v496
        %v555 = vpack.c.b16 %v501, %v499
        %v556 = vpack.c.b16 %v502, %v500
        %v557 = vpack.c.b16 %v505, %v503
        %v558 = vpack.c.b16 %v506, %v504
        %v559 = vpack.c.b16 %v509, %v507
        %v560 = vpack.c.b16 %v510, %v508
        %v561 = vpack.c.b16 %v513, %v511
        %v562 = vpack.c.b16 %v514, %v512
        %v563 = vpack.c.b16 %v517, %v515
        %v564 = vpack.c.b16 %v518, %v516
        %v565 = vpack.c.b16 %v521, %v519
        %v566 = vpack.c.b16 %v522, %v520
        %v567 = vpack.c.b16 %v525, %v523
        %v568 = vpack.c.b16 %v526, %v524
        %v569 = vpack.c.b16 %v529, %v527
        %v570 = vpack.c.b16 %v530, %v528
        %v571 = vpack.c.b16 %v533, %v531
        %v572 = vpack.c.b16 %v534, %v532
        %v573 = vpack.c.b16 %v537, %v535
        %v574 = vpack.c.b16 %v538, %v536
        %v575 = vpack.c.b16 %v541, %v539
        %v576 = vpack.c.b16 %v542, %v540
        %v577 = vpack.c.b16 %v545, %v543
        %v578 = vpack.c.b16 %v546, %v544
        %611 = vmatprep.subr.bf16.mxu0 %v562
        %612 = vmatpush1.bf16.msra.mxu0 %v561
        %613 = vmatprep.subr.bf16.mxu0 %v560
        %614 = vmatpush1.bf16.msra.mxu0 %v559
        %615 = vmatprep.subr.bf16.mxu0 %v558
        %616 = vmatpush1.bf16.msra.mxu0 %v557
        %617 = vmatprep.subr.bf16.mxu0 %v556
        %618 = vmatpush1.bf16.msra.mxu0 %v555
        %619 = vmatprep.subr.bf16.mxu0 %v554
        %620 = vmatpush1.bf16.msra.mxu0 %v553
        %621 = vmatprep.subr.bf16.mxu0 %v552
        %622 = vmatpush1.bf16.msra.mxu0 %v551
        %623 = vmatprep.subr.bf16.mxu0 %v550
        %624 = vmatpush1.bf16.msra.mxu0 %v549
        %625 = vmatprep.subr.bf16.mxu0 %v548
        %626 = vmatpush1.bf16.msra.mxu0 %v547
        %627 = vmatprep.subr.bf16.mxu0 %v578
        %628 = vmatpush2.bf16.msra.mxu0 %v577
        %629 = vmatprep.subr.bf16.mxu0 %v576
        %630 = vmatpush2.bf16.msra.mxu0 %v575
        %631 = vmatprep.subr.bf16.mxu0 %v574
        %632 = vmatpush2.bf16.msra.mxu0 %v573
        %633 = vmatprep.subr.bf16.mxu0 %v572
        %634 = vmatpush2.bf16.msra.mxu0 %v571
        %635 = vmatprep.subr.bf16.mxu0 %v570
        %636 = vmatpush2.bf16.msra.mxu0 %v569
        %637 = vmatprep.subr.bf16.mxu0 %v568
        %638 = vmatpush2.bf16.msra.mxu0 %v567
        %639 = vmatprep.subr.bf16.mxu0 %v566
        %640 = vmatpush2.bf16.msra.mxu0 %v565
        %641 = vmatprep.subr.bf16.mxu0 %v564
        %642 = vmatpush2.bf16.msra.mxu0 %v563
        %643 = vmatprep.mubr.bf16.mxu0 %v412
        %644 = vmatmul.mubr.bf16.gmra.mxu0 %v411
        %v645 = vpop.f32.mrf.mxu0
        %v646 = vadd.f32 0.0, %v645
        %v647 = vpop.f32.mrf.mxu0
        %v648 = vadd.f32 0.0, %v647
        %v649 = vpop.f32.mrf.mxu0
        %v650 = vadd.f32 0.0, %v649
        %v651 = vpop.f32.mrf.mxu0
        %v652 = vadd.f32 0.0, %v651
        %653 = vmatprep.mubr.bf16.mxu0 %v414
        %654 = vmatmul.mubr.bf16.gmra.mxu0 %v413
        %v655 = vpop.f32.mrf.mxu0
        %v656 = vadd.f32 0.0, %v655
        %v657 = vpop.f32.mrf.mxu0
        %v658 = vadd.f32 0.0, %v657
        %v659 = vpop.f32.mrf.mxu0
        %v660 = vadd.f32 0.0, %v659
        %v661 = vpop.f32.mrf.mxu0
        %v662 = vadd.f32 0.0, %v661
        %663 = vmatprep.mubr.bf16.mxu0 %v416
        %664 = vmatmul.mubr.bf16.gmra.mxu0 %v415
        %v665 = vpop.f32.mrf.mxu0
        %v666 = vadd.f32 0.0, %v665
        %v667 = vpop.f32.mrf.mxu0
        %v668 = vadd.f32 0.0, %v667
        %v669 = vpop.f32.mrf.mxu0
        %v670 = vadd.f32 0.0, %v669
        %v671 = vpop.f32.mrf.mxu0
        %v672 = vadd.f32 0.0, %v671
        %673 = vmatprep.mubr.bf16.mxu0 %v418
        %674 = vmatmul.mubr.bf16.gmra.mxu0 %v417
        %v675 = vpop.f32.mrf.mxu0
        %v676 = vadd.f32 0.0, %v675
        %v677 = vpop.f32.mrf.mxu0
        %v678 = vadd.f32 0.0, %v677
        %v679 = vpop.f32.mrf.mxu0
        %v680 = vadd.f32 0.0, %v679
        %v681 = vpop.f32.mrf.mxu0
        %v682 = vadd.f32 0.0, %v681
        %683 = vdwg.mxu0
        %v684 = vld [vmem:[#allocation8] sm:$0x3]
        %v685 = vld [vmem:[#allocation9] sm:$0x3]
        %v686 = vadd.f32 %v646, %v648
        %687 = vadd.xlane.f32.xlu0 %v686
        %v688 = vpop.xlane.xlu0 %687
        %v689 = vadd.f32 %v650, %v652
        %690 = vadd.xlane.f32.xlu0 %v689
        %v691 = vpop.xlane.xlu0 %690
        %v692 = vadd.f32 %v656, %v658
        %693 = vadd.xlane.f32.xlu0 %v692
        %v694 = vpop.xlane.xlu0 %693
        %v695 = vadd.f32 %v660, %v662
        %696 = vadd.xlane.f32.xlu0 %v695
        %v697 = vpop.xlane.xlu0 %696
        %v698 = vadd.f32 %v666, %v668
        %699 = vadd.xlane.f32.xlu0 %v698
        %v700 = vpop.xlane.xlu0 %699
        %v701 = vadd.f32 %v670, %v672
        %702 = vadd.xlane.f32.xlu0 %v701
        %v703 = vpop.xlane.xlu0 %702
        %v704 = vadd.f32 %v676, %v678
        %705 = vadd.xlane.f32.xlu0 %v704
        %v706 = vpop.xlane.xlu0 %705
        %v707 = vadd.f32 %v680, %v682
        %708 = vadd.xlane.f32.xlu0 %v707
        %v709 = vpop.xlane.xlu0 %708
        %v710 = vadd.f32 %v688, %v691
        %v711 = vrot.slane %v710, 4
        %v712 = vadd.f32 %v710, %v711
        %v713 = vrot.slane %v712, 2
        %v714 = vadd.f32 %v712, %v713
        %v715 = vrot.slane %v714, 1
        %v716 = vadd.f32 %v714, %v715
        %v717 = vadd.f32 %v694, %v697
        %v718 = vrot.slane %v717, 4
        %v719 = vadd.f32 %v717, %v718
        %v720 = vrot.slane %v719, 2
        %v721 = vadd.f32 %v719, %v720
        %v722 = vrot.slane %v721, 1
        %v723 = vadd.f32 %v721, %v722
        %v724 = vadd.f32 %v700, %v703
        %v725 = vrot.slane %v724, 4
        %v726 = vadd.f32 %v724, %v725
        %v727 = vrot.slane %v726, 2
        %v728 = vadd.f32 %v726, %v727
        %v729 = vrot.slane %v728, 1
        %v730 = vadd.f32 %v728, %v729
        %v731 = vadd.f32 %v706, %v709
        %v732 = vrot.slane %v731, 4
        %v733 = vadd.f32 %v731, %v732
        %v734 = vrot.slane %v733, 2
        %v735 = vadd.f32 %v733, %v734
        %v736 = vrot.slane %v735, 1
        %v737 = vadd.f32 %v735, %v736
        %v738 = vmul.f32 %v646, %v646
        %v739 = vmul.f32 %v648, %v648
        %v740 = vmul.f32 %v650, %v650
        %v741 = vmul.f32 %v652, %v652
        %v742 = vmul.f32 %v656, %v656
        %v743 = vmul.f32 %v658, %v658
        %v744 = vmul.f32 %v660, %v660
        %v745 = vmul.f32 %v662, %v662
        %v746 = vmul.f32 %v666, %v666
        %v747 = vmul.f32 %v668, %v668
        %v748 = vmul.f32 %v670, %v670
        %v749 = vmul.f32 %v672, %v672
        %v750 = vmul.f32 %v676, %v676
        %v751 = vmul.f32 %v678, %v678
        %v752 = vmul.f32 %v680, %v680
        %v753 = vmul.f32 %v682, %v682
        %v754 = vadd.f32 %v738, %v739
        %755 = vadd.xlane.f32.xlu0 %v754
        %v756 = vpop.xlane.xlu0 %755
        %v757 = vadd.f32 %v740, %v741
        %758 = vadd.xlane.f32.xlu0 %v757
        %v759 = vpop.xlane.xlu0 %758
        %v760 = vadd.f32 %v742, %v743
        %761 = vadd.xlane.f32.xlu0 %v760
        %v762 = vpop.xlane.xlu0 %761
        %v763 = vadd.f32 %v744, %v745
        %764 = vadd.xlane.f32.xlu0 %v763
        %v765 = vpop.xlane.xlu0 %764
        %v766 = vadd.f32 %v746, %v747
        %767 = vadd.xlane.f32.xlu0 %v766
        %v768 = vpop.xlane.xlu0 %767
        %v769 = vadd.f32 %v748, %v749
        %770 = vadd.xlane.f32.xlu0 %v769
        %v771 = vpop.xlane.xlu0 %770
        %v772 = vadd.f32 %v750, %v751
        %773 = vadd.xlane.f32.xlu0 %v772
        %v774 = vpop.xlane.xlu0 %773
        %v775 = vadd.f32 %v752, %v753
        %776 = vadd.xlane.f32.xlu0 %v775
        %v777 = vpop.xlane.xlu0 %776
        %v778 = vadd.f32 %v756, %v759
        %v779 = vrot.slane %v778, 4
        %v780 = vadd.f32 %v778, %v779
        %v781 = vrot.slane %v780, 2
        %v782 = vadd.f32 %v780, %v781
        %v783 = vrot.slane %v782, 1
        %v784 = vadd.f32 %v782, %v783
        %v785 = vadd.f32 %v762, %v765
        %v786 = vrot.slane %v785, 4
        %v787 = vadd.f32 %v785, %v786
        %v788 = vrot.slane %v787, 2
        %v789 = vadd.f32 %v787, %v788
        %v790 = vrot.slane %v789, 1
        %v791 = vadd.f32 %v789, %v790
        %v792 = vadd.f32 %v768, %v771
        %v793 = vrot.slane %v792, 4
        %v794 = vadd.f32 %v792, %v793
        %v795 = vrot.slane %v794, 2
        %v796 = vadd.f32 %v794, %v795
        %v797 = vrot.slane %v796, 1
        %v798 = vadd.f32 %v796, %v797
        %v799 = vadd.f32 %v774, %v777
        %v800 = vrot.slane %v799, 4
        %v801 = vadd.f32 %v799, %v800
        %v802 = vrot.slane %v801, 2
        %v803 = vadd.f32 %v801, %v802
        %v804 = vrot.slane %v803, 1
        %v805 = vadd.f32 %v803, %v804
        %v806 = vmul.f32 %v716, 0.00024414063
        %v807 = vmul.f32 %v723, 0.00024414063
        %v808 = vmul.f32 %v730, 0.00024414063
        %v809 = vmul.f32 %v737, 0.00024414063
        %v810 = vmul.f32 %v784, 0.00024414063
        %v811 = vmul.f32 %v791, 0.00024414063
        %v812 = vmul.f32 %v798, 0.00024414063
        %v813 = vmul.f32 %v805, 0.00024414063
        %v814 = vmul.f32 %v806, %v806
        %v815 = vmul.f32 %v807, %v807
        %v816 = vmul.f32 %v808, %v808
        %v817 = vmul.f32 %v809, %v809
        %v818 = vsub.f32 %v810, %v814
        %v819 = vsub.f32 %v811, %v815
        %v820 = vsub.f32 %v812, %v816
        %v821 = vsub.f32 %v813, %v817
        %v822 = vadd.f32 %v818, 1e-05
        %v823 = vadd.f32 %v819, 1e-05
        %v824 = vadd.f32 %v820, 1e-05
        %v825 = vadd.f32 %v821, 1e-05
        %v826 = vrsqrt.pop %v822
        %v827 = vrsqrt.pop %v823
        %v828 = vrsqrt.pop %v824
        %v829 = vrsqrt.pop %v825
        %v830 = vmul.f32 %v684, %v826
        %v831 = vmul.f32 %v684, %v827
        %v832 = vmul.f32 %v684, %v828
        %v833 = vmul.f32 %v684, %v829
        %v834 = vmul.f32 %v806, %v830
        %v835 = vmul.f32 %v807, %v831
        %v836 = vmul.f32 %v808, %v832
        %v837 = vmul.f32 %v809, %v833
        %v838 = vsub.f32 %v685, %v834
        %v839 = vsub.f32 %v685, %v835
        %v840 = vsub.f32 %v685, %v836
        %v841 = vsub.f32 %v685, %v837
        %v846 = vlaneseq
        %v847 = vshrl.u32 %v846, 7
        %v848 = vsub.s32 0, %v847
        %v849 = vrot.slane %v830, %v848
        %v850 = vlaneseq
        %v851 = vshrl.u32 %v850, 7
        %v852 = vsub.s32 1, %v851
        %v853 = vrot.slane %v830, %v852
        %v854 = vlaneseq
        %v855 = vshrl.u32 %v854, 7
        %v856 = vsub.s32 0, %v855
        %v857 = vrot.slane %v831, %v856
        %v858 = vlaneseq
        %v859 = vshrl.u32 %v858, 7
        %v860 = vsub.s32 1, %v859
        %v861 = vrot.slane %v831, %v860
        %v862 = vlaneseq
        %v863 = vshrl.u32 %v862, 7
        %v864 = vsub.s32 0, %v863
        %v865 = vrot.slane %v832, %v864
        %v866 = vlaneseq
        %v867 = vshrl.u32 %v866, 7
        %v868 = vsub.s32 1, %v867
        %v869 = vrot.slane %v832, %v868
        %v870 = vlaneseq
        %v871 = vshrl.u32 %v870, 7
        %v872 = vsub.s32 0, %v871
        %v873 = vrot.slane %v833, %v872
        %v874 = vlaneseq
        %v875 = vshrl.u32 %v874, 7
        %v876 = vsub.s32 1, %v875
        %v877 = vrot.slane %v833, %v876
        %v886 = vmul.f32 %v646, %v849
        %v887 = vmul.f32 %v648, %v853
        %v888 = vmul.f32 %v650, %v849
        %v889 = vmul.f32 %v652, %v853
        %v890 = vmul.f32 %v656, %v857
        %v891 = vmul.f32 %v658, %v861
        %v892 = vmul.f32 %v660, %v857
        %v893 = vmul.f32 %v662, %v861
        %v894 = vmul.f32 %v666, %v865
        %v895 = vmul.f32 %v668, %v869
        %v896 = vmul.f32 %v670, %v865
        %v897 = vmul.f32 %v672, %v869
        %v898 = vmul.f32 %v676, %v873
        %v899 = vmul.f32 %v678, %v877
        %v900 = vmul.f32 %v680, %v873
        %v901 = vmul.f32 %v682, %v877
        %v906 = vlaneseq
        %v907 = vshrl.u32 %v906, 7
        %v908 = vsub.s32 0, %v907
        %v909 = vrot.slane %v838, %v908
        %v910 = vlaneseq
        %v911 = vshrl.u32 %v910, 7
        %v912 = vsub.s32 1, %v911
        %v913 = vrot.slane %v838, %v912
        %v914 = vlaneseq
        %v915 = vshrl.u32 %v914, 7
        %v916 = vsub.s32 0, %v915
        %v917 = vrot.slane %v839, %v916
        %v918 = vlaneseq
        %v919 = vshrl.u32 %v918, 7
        %v920 = vsub.s32 1, %v919
        %v921 = vrot.slane %v839, %v920
        %v922 = vlaneseq
        %v923 = vshrl.u32 %v922, 7
        %v924 = vsub.s32 0, %v923
        %v925 = vrot.slane %v840, %v924
        %v926 = vlaneseq
        %v927 = vshrl.u32 %v926, 7
        %v928 = vsub.s32 1, %v927
        %v929 = vrot.slane %v840, %v928
        %v930 = vlaneseq
        %v931 = vshrl.u32 %v930, 7
        %v932 = vsub.s32 0, %v931
        %v933 = vrot.slane %v841, %v932
        %v934 = vlaneseq
        %v935 = vshrl.u32 %v934, 7
        %v936 = vsub.s32 1, %v935
        %v937 = vrot.slane %v841, %v936
        %v946 = vadd.f32 %v886, %v909
        %v947 = vadd.f32 %v887, %v913
        %v948 = vadd.f32 %v888, %v909
        %v949 = vadd.f32 %v889, %v913
        %v950 = vadd.f32 %v890, %v917
        %v951 = vadd.f32 %v891, %v921
        %v952 = vadd.f32 %v892, %v917
        %v953 = vadd.f32 %v893, %v921
        %v954 = vadd.f32 %v894, %v925
        %v955 = vadd.f32 %v895, %v929
        %v956 = vadd.f32 %v896, %v925
        %v957 = vadd.f32 %v897, %v929
        %v958 = vadd.f32 %v898, %v933
        %v959 = vadd.f32 %v899, %v937
        %v960 = vadd.f32 %v900, %v933
        %v961 = vadd.f32 %v901, %v937
        %962 = vst [vmem:[#allocation2 + $0x10] sm:$0xff] %v946
        %963 = vst [vmem:[#allocation2 + $0x18] sm:$0xff] %v947
        %964 = vst [vmem:[#allocation2 + $0x20] sm:$0xff] %v948
        %965 = vst [vmem:[#allocation2 + $0x28] sm:$0xff] %v949
        %966 = vst [vmem:[#allocation2 + $0x50] sm:$0xff] %v950
        %967 = vst [vmem:[#allocation2 + $0x58] sm:$0xff] %v951
        %968 = vst [vmem:[#allocation2 + $0x60] sm:$0xff] %v952
        %969 = vst [vmem:[#allocation2 + $0x68] sm:$0xff] %v953
        %970 = vst [vmem:[#allocation2 + $0x90] sm:$0xff] %v954
        %971 = vst [vmem:[#allocation2 + $0x98] sm:$0xff] %v955
        %972 = vst [vmem:[#allocation2 + $0xa0] sm:$0xff] %v956
        %973 = vst [vmem:[#allocation2 + $0xa8] sm:$0xff] %v957
        %974 = vst [vmem:[#allocation2 + $0xd0] sm:$0xff] %v958
        %975 = vst [vmem:[#allocation2 + $0xd8] sm:$0xff] %v959
        %976 = vst [vmem:[#allocation2 + $0xe0] sm:$0xff] %v960
        %977 = vst [vmem:[#allocation2 + $0xe8] sm:$0xff] %v961
        %v978 = vld [vmem:[#allocation2] sm:$0x80]
        %v979 = vld [vmem:[#allocation2 + $0x8] sm:$0x80]
        %v980 = vld [vmem:[#allocation2 + $0x10] sm:$0xff]
        %v981 = vld [vmem:[#allocation2 + $0x18] sm:$0xff]
        %v982 = vld [vmem:[#allocation2 + $0x20] sm:$0x7f]
        %v983 = vld [vmem:[#allocation2 + $0x28] sm:$0x7f]
        %v984 = vld [vmem:[#allocation2 + $0x40] sm:$0x80]
        %v985 = vld [vmem:[#allocation2 + $0x48] sm:$0x80]
        %v986 = vld [vmem:[#allocation2 + $0x50] sm:$0xff]
        %v987 = vld [vmem:[#allocation2 + $0x58] sm:$0xff]
        %v988 = vld [vmem:[#allocation2 + $0x60] sm:$0x7f]
        %v989 = vld [vmem:[#allocation2 + $0x68] sm:$0x7f]
        %v990 = vld [vmem:[#allocation2 + $0x80] sm:$0x80]
        %v991 = vld [vmem:[#allocation2 + $0x88] sm:$0x80]
        %v992 = vld [vmem:[#allocation2 + $0x90] sm:$0xff]
        %v993 = vld [vmem:[#allocation2 + $0x98] sm:$0xff]
        %v994 = vld [vmem:[#allocation2 + $0xa0] sm:$0x7f]
        %v995 = vld [vmem:[#allocation2 + $0xa8] sm:$0x7f]
        %v996 = vld [vmem:[#allocation2 + $0xc0] sm:$0x80]
        %v997 = vld [vmem:[#allocation2 + $0xc8] sm:$0x80]
        %v998 = vld [vmem:[#allocation2 + $0xd0] sm:$0xff]
        %v999 = vld [vmem:[#allocation2 + $0xd8] sm:$0xff]
        %v1000 = vld [vmem:[#allocation2 + $0xe0] sm:$0x7f]
        %v1001 = vld [vmem:[#allocation2 + $0xe8] sm:$0x7f]
        %vm1026 = vcmask 1040384
        %v1027 = vrot.slane %v978, 7
        %v1028 = vrot.slane %v980, 7
        %v1029 = vsel %vm1026, %v1027, %v1028
        %v1030 = vrot.slane %v979, 7
        %v1031 = vrot.slane %v981, 7
        %v1032 = vsel %vm1026, %v1030, %v1031
        %v1033 = vrot.slane %v982, 7
        %v1034 = vsel %vm1026, %v1028, %v1033
        %v1035 = vrot.slane %v983, 7
        %v1036 = vsel %vm1026, %v1031, %v1035
        %v1037 = vrot.slane %v984, 7
        %v1038 = vrot.slane %v986, 7
        %v1039 = vsel %vm1026, %v1037, %v1038
        %v1040 = vrot.slane %v985, 7
        %v1041 = vrot.slane %v987, 7
        %v1042 = vsel %vm1026, %v1040, %v1041
        %v1043 = vrot.slane %v988, 7
        %v1044 = vsel %vm1026, %v1038, %v1043
        %v1045 = vrot.slane %v989, 7
        %v1046 = vsel %vm1026, %v1041, %v1045
        %v1047 = vrot.slane %v990, 7
        %v1048 = vrot.slane %v992, 7
        %v1049 = vsel %vm1026, %v1047, %v1048
        %v1050 = vrot.slane %v991, 7
        %v1051 = vrot.slane %v993, 7
        %v1052 = vsel %vm1026, %v1050, %v1051
        %v1053 = vrot.slane %v994, 7
        %v1054 = vsel %vm1026, %v1048, %v1053
        %v1055 = vrot.slane %v995, 7
        %v1056 = vsel %vm1026, %v1051, %v1055
        %v1057 = vrot.slane %v996, 7
        %v1058 = vrot.slane %v998, 7
        %v1059 = vsel %vm1026, %v1057, %v1058
        %v1060 = vrot.slane %v997, 7
        %v1061 = vrot.slane %v999, 7
        %v1062 = vsel %vm1026, %v1060, %v1061
        %v1063 = vrot.slane %v1000, 7
        %v1064 = vsel %vm1026, %v1058, %v1063
        %v1065 = vrot.slane %v1001, 7
        %v1066 = vsel %vm1026, %v1061, %v1065
        %1083 = vrot.lane.b32.xlu0 %v1029, 16
        %v1084 = vpop.permute.xlu0 %1083
        %1085 = vrot.lane.b32.xlu0 %v1034, 16
        %v1086 = vpop.permute.xlu0 %1085
        %1087 = vrot.lane.b32.xlu0 %v1039, 16
        %v1088 = vpop.permute.xlu0 %1087
        %1089 = vrot.lane.b32.xlu0 %v1044, 16
        %v1090 = vpop.permute.xlu0 %1089
        %1091 = vrot.lane.b32.xlu0 %v1049, 16
        %v1092 = vpop.permute.xlu0 %1091
        %1093 = vrot.lane.b32.xlu0 %v1054, 16
        %v1094 = vpop.permute.xlu0 %1093
        %1095 = vrot.lane.b32.xlu0 %v1059, 16
        %v1096 = vpop.permute.xlu0 %1095
        %1097 = vrot.lane.b32.xlu0 %v1064, 16
        %v1098 = vpop.permute.xlu0 %1097
        %1099 = vrot.lane.b32.xlu0 %v1032, 16
        %v1100 = vpop.permute.xlu0 %1099
        %1101 = vrot.lane.b32.xlu0 %v1036, 16
        %v1102 = vpop.permute.xlu0 %1101
        %1103 = vrot.lane.b32.xlu0 %v1042, 16
        %v1104 = vpop.permute.xlu0 %1103
        %1105 = vrot.lane.b32.xlu0 %v1046, 16
        %v1106 = vpop.permute.xlu0 %1105
        %1107 = vrot.lane.b32.xlu0 %v1052, 16
        %v1108 = vpop.permute.xlu0 %1107
        %1109 = vrot.lane.b32.xlu0 %v1056, 16
        %v1110 = vpop.permute.xlu0 %1109
        %1111 = vrot.lane.b32.xlu0 %v1062, 16
        %v1112 = vpop.permute.xlu0 %1111
        %1113 = vrot.lane.b32.xlu0 %v1066, 16
        %v1114 = vpop.permute.xlu0 %1113
        %v1115 = vlaneseq
        %v1116 = vand.u32 %v1115, 127
        %vm1117 = vcmp.lt.s32.totalorder %v1116, 16
        %v1118 = vsel %vm1117, %v1084, %v1100
        %v1119 = vsel %vm1117, %v1086, %v1102
        %v1120 = vsel %vm1117, %v1088, %v1104
        %v1121 = vsel %vm1117, %v1090, %v1106
        %v1122 = vsel %vm1117, %v1092, %v1108
        %v1123 = vsel %vm1117, %v1094, %v1110
        %v1124 = vsel %vm1117, %v1096, %v1112
        %v1125 = vsel %vm1117, %v1098, %v1114
        %v1126 = vsel %vm1117, %v1100, %v1084
        %v1127 = vsel %vm1117, %v1102, %v1086
        %v1128 = vsel %vm1117, %v1104, %v1088
        %v1129 = vsel %vm1117, %v1106, %v1090
        %v1130 = vsel %vm1117, %v1108, %v1092
        %v1131 = vsel %vm1117, %v1110, %v1094
        %v1132 = vsel %vm1117, %v1112, %v1096
        %v1133 = vsel %vm1117, %v1114, %v1098
        %v1134 = vld [vmem:[#allocation11] ss:$8 sm:$0x3]
        %v1136 = vlaneseq
        %v1137 = vshrl.u32 %v1136, 7
        %v1138 = vsub.s32 0, %v1137
        %v1139 = vrot.slane %v1134, %v1138
        %v1140 = vlaneseq
        %v1141 = vshrl.u32 %v1140, 7
        %v1142 = vsub.s32 1, %v1141
        %v1143 = vrot.slane %v1134, %v1142
        %v1146 = vmul.f32 %v1126, %v1139
        %v1147 = vmul.f32 %v1118, %v1143
        %v1148 = vmul.f32 %v1127, %v1139
        %v1149 = vmul.f32 %v1119, %v1143
        %v1150 = vmul.f32 %v1128, %v1139
        %v1151 = vmul.f32 %v1120, %v1143
        %v1152 = vmul.f32 %v1129, %v1139
        %v1153 = vmul.f32 %v1121, %v1143
        %v1154 = vmul.f32 %v1130, %v1139
        %v1155 = vmul.f32 %v1122, %v1143
        %v1156 = vmul.f32 %v1131, %v1139
        %v1157 = vmul.f32 %v1123, %v1143
        %v1158 = vmul.f32 %v1132, %v1139
        %v1159 = vmul.f32 %v1124, %v1143
        %v1160 = vmul.f32 %v1133, %v1139
        %v1161 = vmul.f32 %v1125, %v1143
        %s1162 = scalar_lea.vmem [#allocation11], 1
        %v1163 = vld [vmem:[%s1162] ss:$8 sm:$0x3]
        %v1165 = vlaneseq
        %v1166 = vshrl.u32 %v1165, 7
        %v1167 = vsub.s32 0, %v1166
        %v1168 = vrot.slane %v1163, %v1167
        %v1169 = vlaneseq
        %v1170 = vshrl.u32 %v1169, 7
        %v1171 = vsub.s32 1, %v1170
        %v1172 = vrot.slane %v1163, %v1171
        %v1175 = vmul.f32 %v978, %v1168
        %v1176 = vmul.f32 %v979, %v1172
        %v1177 = vmul.f32 %v980, %v1168
        %v1178 = vmul.f32 %v981, %v1172
        %v1179 = vmul.f32 %v982, %v1168
        %v1180 = vmul.f32 %v983, %v1172
        %v1181 = vmul.f32 %v984, %v1168
        %v1182 = vmul.f32 %v985, %v1172
        %v1183 = vmul.f32 %v986, %v1168
        %v1184 = vmul.f32 %v987, %v1172
        %v1185 = vmul.f32 %v988, %v1168
        %v1186 = vmul.f32 %v989, %v1172
        %v1187 = vmul.f32 %v990, %v1168
        %v1188 = vmul.f32 %v991, %v1172
        %v1189 = vmul.f32 %v992, %v1168
        %v1190 = vmul.f32 %v993, %v1172
        %v1191 = vmul.f32 %v994, %v1168
        %v1192 = vmul.f32 %v995, %v1172
        %v1193 = vmul.f32 %v996, %v1168
        %v1194 = vmul.f32 %v997, %v1172
        %v1195 = vmul.f32 %v998, %v1168
        %v1196 = vmul.f32 %v999, %v1172
        %v1197 = vmul.f32 %v1000, %v1168
        %v1198 = vmul.f32 %v1001, %v1172
        %v1223 = vrot.slane %v1175, 7
        %v1224 = vrot.slane %v1177, 7
        %v1225 = vsel %vm1026, %v1223, %v1224
        %v1226 = vrot.slane %v1176, 7
        %v1227 = vrot.slane %v1178, 7
        %v1228 = vsel %vm1026, %v1226, %v1227
        %v1229 = vrot.slane %v1179, 7
        %v1230 = vsel %vm1026, %v1224, %v1229
        %v1231 = vrot.slane %v1180, 7
        %v1232 = vsel %vm1026, %v1227, %v1231
        %v1233 = vrot.slane %v1181, 7
        %v1234 = vrot.slane %v1183, 7
        %v1235 = vsel %vm1026, %v1233, %v1234
        %v1236 = vrot.slane %v1182, 7
        %v1237 = vrot.slane %v1184, 7
        %v1238 = vsel %vm1026, %v1236, %v1237
        %v1239 = vrot.slane %v1185, 7
        %v1240 = vsel %vm1026, %v1234, %v1239
        %v1241 = vrot.slane %v1186, 7
        %v1242 = vsel %vm1026, %v1237, %v1241
        %v1243 = vrot.slane %v1187, 7
        %v1244 = vrot.slane %v1189, 7
        %v1245 = vsel %vm1026, %v1243, %v1244
        %v1246 = vrot.slane %v1188, 7
        %v1247 = vrot.slane %v1190, 7
        %v1248 = vsel %vm1026, %v1246, %v1247
        %v1249 = vrot.slane %v1191, 7
        %v1250 = vsel %vm1026, %v1244, %v1249
        %v1251 = vrot.slane %v1192, 7
        %v1252 = vsel %vm1026, %v1247, %v1251
        %v1253 = vrot.slane %v1193, 7
        %v1254 = vrot.slane %v1195, 7
        %v1255 = vsel %vm1026, %v1253, %v1254
        %v1256 = vrot.slane %v1194, 7
        %v1257 = vrot.slane %v1196, 7
        %v1258 = vsel %vm1026, %v1256, %v1257
        %v1259 = vrot.slane %v1197, 7
        %v1260 = vsel %vm1026, %v1254, %v1259
        %v1261 = vrot.slane %v1198, 7
        %v1262 = vsel %vm1026, %v1257, %v1261
        %v1279 = vadd.f32 %v1146, %v1225
        %v1280 = vadd.f32 %v1147, %v1228
        %v1281 = vadd.f32 %v1148, %v1230
        %v1282 = vadd.f32 %v1149, %v1232
        %v1283 = vadd.f32 %v1150, %v1235
        %v1284 = vadd.f32 %v1151, %v1238
        %v1285 = vadd.f32 %v1152, %v1240
        %v1286 = vadd.f32 %v1153, %v1242
        %v1287 = vadd.f32 %v1154, %v1245
        %v1288 = vadd.f32 %v1155, %v1248
        %v1289 = vadd.f32 %v1156, %v1250
        %v1290 = vadd.f32 %v1157, %v1252
        %v1291 = vadd.f32 %v1158, %v1255
        %v1292 = vadd.f32 %v1159, %v1258
        %v1293 = vadd.f32 %v1160, %v1260
        %v1294 = vadd.f32 %v1161, %v1262
        %1295 = vrot.lane.b32.xlu0 %v1029, 112
        %v1296 = vpop.permute.xlu0 %1295
        %1297 = vrot.lane.b32.xlu0 %v1034, 112
        %v1298 = vpop.permute.xlu0 %1297
        %1299 = vrot.lane.b32.xlu0 %v1039, 112
        %v1300 = vpop.permute.xlu0 %1299
        %1301 = vrot.lane.b32.xlu0 %v1044, 112
        %v1302 = vpop.permute.xlu0 %1301
        %1303 = vrot.lane.b32.xlu0 %v1049, 112
        %v1304 = vpop.permute.xlu0 %1303
        %1305 = vrot.lane.b32.xlu0 %v1054, 112
        %v1306 = vpop.permute.xlu0 %1305
        %1307 = vrot.lane.b32.xlu0 %v1059, 112
        %v1308 = vpop.permute.xlu0 %1307
        %1309 = vrot.lane.b32.xlu0 %v1064, 112
        %v1310 = vpop.permute.xlu0 %1309
        %1311 = vrot.lane.b32.xlu0 %v1032, 112
        %v1312 = vpop.permute.xlu0 %1311
        %1313 = vrot.lane.b32.xlu0 %v1036, 112
        %v1314 = vpop.permute.xlu0 %1313
        %1315 = vrot.lane.b32.xlu0 %v1042, 112
        %v1316 = vpop.permute.xlu0 %1315
        %1317 = vrot.lane.b32.xlu0 %v1046, 112
        %v1318 = vpop.permute.xlu0 %1317
        %1319 = vrot.lane.b32.xlu0 %v1052, 112
        %v1320 = vpop.permute.xlu0 %1319
        %1321 = vrot.lane.b32.xlu0 %v1056, 112
        %v1322 = vpop.permute.xlu0 %1321
        %1323 = vrot.lane.b32.xlu0 %v1062, 112
        %v1324 = vpop.permute.xlu0 %1323
        %1325 = vrot.lane.b32.xlu0 %v1066, 112
        %v1326 = vpop.permute.xlu0 %1325
        %vm1327 = vcmp.lt.s32.totalorder %v1116, 112
        %v1328 = vsel %vm1327, %v1296, %v1312
        %v1329 = vsel %vm1327, %v1298, %v1314
        %v1330 = vsel %vm1327, %v1300, %v1316
        %v1331 = vsel %vm1327, %v1302, %v1318
        %v1332 = vsel %vm1327, %v1304, %v1320
        %v1333 = vsel %vm1327, %v1306, %v1322
        %v1334 = vsel %vm1327, %v1308, %v1324
        %v1335 = vsel %vm1327, %v1310, %v1326
        %v1336 = vsel %vm1327, %v1312, %v1296
        %v1337 = vsel %vm1327, %v1314, %v1298
        %v1338 = vsel %vm1327, %v1316, %v1300
        %v1339 = vsel %vm1327, %v1318, %v1302
        %v1340 = vsel %vm1327, %v1320, %v1304
        %v1341 = vsel %vm1327, %v1322, %v1306
        %v1342 = vsel %vm1327, %v1324, %v1308
        %v1343 = vsel %vm1327, %v1326, %v1310
        %s1344 = scalar_lea.vmem [#allocation11], 2
        %v1345 = vld [vmem:[%s1344] ss:$8 sm:$0x3]
        %v1347 = vlaneseq
        %v1348 = vshrl.u32 %v1347, 7
        %v1349 = vsub.s32 0, %v1348
        %v1350 = vrot.slane %v1345, %v1349
        %v1351 = vlaneseq
        %v1352 = vshrl.u32 %v1351, 7
        %v1353 = vsub.s32 1, %v1352
        %v1354 = vrot.slane %v1345, %v1353
        %v1357 = vmul.f32 %v1328, %v1350
        %v1358 = vmul.f32 %v1336, %v1354
        %v1359 = vmul.f32 %v1329, %v1350
        %v1360 = vmul.f32 %v1337, %v1354
        %v1361 = vmul.f32 %v1330, %v1350
        %v1362 = vmul.f32 %v1338, %v1354
        %v1363 = vmul.f32 %v1331, %v1350
        %v1364 = vmul.f32 %v1339, %v1354
        %v1365 = vmul.f32 %v1332, %v1350
        %v1366 = vmul.f32 %v1340, %v1354
        %v1367 = vmul.f32 %v1333, %v1350
        %v1368 = vmul.f32 %v1341, %v1354
        %v1369 = vmul.f32 %v1334, %v1350
        %v1370 = vmul.f32 %v1342, %v1354
        %v1371 = vmul.f32 %v1335, %v1350
        %v1372 = vmul.f32 %v1343, %v1354
        %v1373 = vadd.f32 %v1279, %v1357
        %v1374 = vadd.f32 %v1280, %v1358
        %v1375 = vadd.f32 %v1281, %v1359
        %v1376 = vadd.f32 %v1282, %v1360
        %v1377 = vadd.f32 %v1283, %v1361
        %v1378 = vadd.f32 %v1284, %v1362
        %v1379 = vadd.f32 %v1285, %v1363
        %v1380 = vadd.f32 %v1286, %v1364
        %v1381 = vadd.f32 %v1287, %v1365
        %v1382 = vadd.f32 %v1288, %v1366
        %v1383 = vadd.f32 %v1289, %v1367
        %v1384 = vadd.f32 %v1290, %v1368
        %v1385 = vadd.f32 %v1291, %v1369
        %v1386 = vadd.f32 %v1292, %v1370
        %v1387 = vadd.f32 %v1293, %v1371
        %v1388 = vadd.f32 %v1294, %v1372
        %1389 = vrot.lane.b32.xlu0 %v946, 16
        %v1390 = vpop.permute.xlu0 %1389
        %1391 = vrot.lane.b32.xlu0 %v948, 16
        %v1392 = vpop.permute.xlu0 %1391
        %1393 = vrot.lane.b32.xlu0 %v950, 16
        %v1394 = vpop.permute.xlu0 %1393
        %1395 = vrot.lane.b32.xlu0 %v952, 16
        %v1396 = vpop.permute.xlu0 %1395
        %1397 = vrot.lane.b32.xlu0 %v954, 16
        %v1398 = vpop.permute.xlu0 %1397
        %1399 = vrot.lane.b32.xlu0 %v956, 16
        %v1400 = vpop.permute.xlu0 %1399
        %1401 = vrot.lane.b32.xlu0 %v958, 16
        %v1402 = vpop.permute.xlu0 %1401
        %1403 = vrot.lane.b32.xlu0 %v960, 16
        %v1404 = vpop.permute.xlu0 %1403
        %1405 = vrot.lane.b32.xlu0 %v947, 16
        %v1406 = vpop.permute.xlu0 %1405
        %1407 = vrot.lane.b32.xlu0 %v949, 16
        %v1408 = vpop.permute.xlu0 %1407
        %1409 = vrot.lane.b32.xlu0 %v951, 16
        %v1410 = vpop.permute.xlu0 %1409
        %1411 = vrot.lane.b32.xlu0 %v953, 16
        %v1412 = vpop.permute.xlu0 %1411
        %1413 = vrot.lane.b32.xlu0 %v955, 16
        %v1414 = vpop.permute.xlu0 %1413
        %1415 = vrot.lane.b32.xlu0 %v957, 16
        %v1416 = vpop.permute.xlu0 %1415
        %1417 = vrot.lane.b32.xlu0 %v959, 16
        %v1418 = vpop.permute.xlu0 %1417
        %1419 = vrot.lane.b32.xlu0 %v961, 16
        %v1420 = vpop.permute.xlu0 %1419
        %v1421 = vsel %vm1117, %v1390, %v1406
        %v1422 = vsel %vm1117, %v1392, %v1408
        %v1423 = vsel %vm1117, %v1394, %v1410
        %v1424 = vsel %vm1117, %v1396, %v1412
        %v1425 = vsel %vm1117, %v1398, %v1414
        %v1426 = vsel %vm1117, %v1400, %v1416
        %v1427 = vsel %vm1117, %v1402, %v1418
        %v1428 = vsel %vm1117, %v1404, %v1420
        %v1429 = vsel %vm1117, %v1406, %v1390
        %v1430 = vsel %vm1117, %v1408, %v1392
        %v1431 = vsel %vm1117, %v1410, %v1394
        %v1432 = vsel %vm1117, %v1412, %v1396
        %v1433 = vsel %vm1117, %v1414, %v1398
        %v1434 = vsel %vm1117, %v1416, %v1400
        %v1435 = vsel %vm1117, %v1418, %v1402
        %v1436 = vsel %vm1117, %v1420, %v1404
        %s1437 = scalar_lea.vmem [#allocation11], 3
        %v1438 = vld [vmem:[%s1437] ss:$8 sm:$0x3]
        %v1440 = vlaneseq
        %v1441 = vshrl.u32 %v1440, 7
        %v1442 = vsub.s32 0, %v1441
        %v1443 = vrot.slane %v1438, %v1442
        %v1444 = vlaneseq
        %v1445 = vshrl.u32 %v1444, 7
        %v1446 = vsub.s32 1, %v1445
        %v1447 = vrot.slane %v1438, %v1446
        %v1450 = vmul.f32 %v1429, %v1443
        %v1451 = vmul.f32 %v1421, %v1447
        %v1452 = vmul.f32 %v1430, %v1443
        %v1453 = vmul.f32 %v1422, %v1447
        %v1454 = vmul.f32 %v1431, %v1443
        %v1455 = vmul.f32 %v1423, %v1447
        %v1456 = vmul.f32 %v1432, %v1443
        %v1457 = vmul.f32 %v1424, %v1447
        %v1458 = vmul.f32 %v1433, %v1443
        %v1459 = vmul.f32 %v1425, %v1447
        %v1460 = vmul.f32 %v1434, %v1443
        %v1461 = vmul.f32 %v1426, %v1447
        %v1462 = vmul.f32 %v1435, %v1443
        %v1463 = vmul.f32 %v1427, %v1447
        %v1464 = vmul.f32 %v1436, %v1443
        %v1465 = vmul.f32 %v1428, %v1447
        %v1466 = vadd.f32 %v1373, %v1450
        %v1467 = vadd.f32 %v1374, %v1451
        %v1468 = vadd.f32 %v1375, %v1452
        %v1469 = vadd.f32 %v1376, %v1453
        %v1470 = vadd.f32 %v1377, %v1454
        %v1471 = vadd.f32 %v1378, %v1455
        %v1472 = vadd.f32 %v1379, %v1456
        %v1473 = vadd.f32 %v1380, %v1457
        %v1474 = vadd.f32 %v1381, %v1458
        %v1475 = vadd.f32 %v1382, %v1459
        %v1476 = vadd.f32 %v1383, %v1460
        %v1477 = vadd.f32 %v1384, %v1461
        %v1478 = vadd.f32 %v1385, %v1462
        %v1479 = vadd.f32 %v1386, %v1463
        %v1480 = vadd.f32 %v1387, %v1464
        %v1481 = vadd.f32 %v1388, %v1465
        %s1482 = scalar_lea.vmem [#allocation11], 4
        %v1483 = vld [vmem:[%s1482] ss:$8 sm:$0x3]
        %v1485 = vlaneseq
        %v1486 = vshrl.u32 %v1485, 7
        %v1487 = vsub.s32 0, %v1486
        %v1488 = vrot.slane %v1483, %v1487
        %v1489 = vlaneseq
        %v1490 = vshrl.u32 %v1489, 7
        %v1491 = vsub.s32 1, %v1490
        %v1492 = vrot.slane %v1483, %v1491
        %v1495 = vmul.f32 %v946, %v1488
        %v1496 = vmul.f32 %v947, %v1492
        %v1497 = vmul.f32 %v948, %v1488
        %v1498 = vmul.f32 %v949, %v1492
        %v1499 = vmul.f32 %v950, %v1488
        %v1500 = vmul.f32 %v951, %v1492
        %v1501 = vmul.f32 %v952, %v1488
        %v1502 = vmul.f32 %v953, %v1492
        %v1503 = vmul.f32 %v954, %v1488
        %v1504 = vmul.f32 %v955, %v1492
        %v1505 = vmul.f32 %v956, %v1488
        %v1506 = vmul.f32 %v957, %v1492
        %v1507 = vmul.f32 %v958, %v1488
        %v1508 = vmul.f32 %v959, %v1492
        %v1509 = vmul.f32 %v960, %v1488
        %v1510 = vmul.f32 %v961, %v1492
        %v1511 = vadd.f32 %v1466, %v1495
        %v1512 = vadd.f32 %v1467, %v1496
        %v1513 = vadd.f32 %v1468, %v1497
        %v1514 = vadd.f32 %v1469, %v1498
        %v1515 = vadd.f32 %v1470, %v1499
        %v1516 = vadd.f32 %v1471, %v1500
        %v1517 = vadd.f32 %v1472, %v1501
        %v1518 = vadd.f32 %v1473, %v1502
        %v1519 = vadd.f32 %v1474, %v1503
        %v1520 = vadd.f32 %v1475, %v1504
        %v1521 = vadd.f32 %v1476, %v1505
        %v1522 = vadd.f32 %v1477, %v1506
        %v1523 = vadd.f32 %v1478, %v1507
        %v1524 = vadd.f32 %v1479, %v1508
        %v1525 = vadd.f32 %v1480, %v1509
        %v1526 = vadd.f32 %v1481, %v1510
        %1527 = vrot.lane.b32.xlu0 %v946, 112
        %v1528 = vpop.permute.xlu0 %1527
        %1529 = vrot.lane.b32.xlu0 %v948, 112
        %v1530 = vpop.permute.xlu0 %1529
        %1531 = vrot.lane.b32.xlu0 %v950, 112
        %v1532 = vpop.permute.xlu0 %1531
        %1533 = vrot.lane.b32.xlu0 %v952, 112
        %v1534 = vpop.permute.xlu0 %1533
        %1535 = vrot.lane.b32.xlu0 %v954, 112
        %v1536 = vpop.permute.xlu0 %1535
        %1537 = vrot.lane.b32.xlu0 %v956, 112
        %v1538 = vpop.permute.xlu0 %1537
        %1539 = vrot.lane.b32.xlu0 %v958, 112
        %v1540 = vpop.permute.xlu0 %1539
        %1541 = vrot.lane.b32.xlu0 %v960, 112
        %v1542 = vpop.permute.xlu0 %1541
        %1543 = vrot.lane.b32.xlu0 %v947, 112
        %v1544 = vpop.permute.xlu0 %1543
        %1545 = vrot.lane.b32.xlu0 %v949, 112
        %v1546 = vpop.permute.xlu0 %1545
        %1547 = vrot.lane.b32.xlu0 %v951, 112
        %v1548 = vpop.permute.xlu0 %1547
        %1549 = vrot.lane.b32.xlu0 %v953, 112
        %v1550 = vpop.permute.xlu0 %1549
        %1551 = vrot.lane.b32.xlu0 %v955, 112
        %v1552 = vpop.permute.xlu0 %1551
        %1553 = vrot.lane.b32.xlu0 %v957, 112
        %v1554 = vpop.permute.xlu0 %1553
        %1555 = vrot.lane.b32.xlu0 %v959, 112
        %v1556 = vpop.permute.xlu0 %1555
        %1557 = vrot.lane.b32.xlu0 %v961, 112
        %v1558 = vpop.permute.xlu0 %1557
        %v1559 = vsel %vm1327, %v1528, %v1544
        %v1560 = vsel %vm1327, %v1530, %v1546
        %v1561 = vsel %vm1327, %v1532, %v1548
        %v1562 = vsel %vm1327, %v1534, %v1550
        %v1563 = vsel %vm1327, %v1536, %v1552
        %v1564 = vsel %vm1327, %v1538, %v1554
        %v1565 = vsel %vm1327, %v1540, %v1556
        %v1566 = vsel %vm1327, %v1542, %v1558
        %v1567 = vsel %vm1327, %v1544, %v1528
        %v1568 = vsel %vm1327, %v1546, %v1530
        %v1569 = vsel %vm1327, %v1548, %v1532
        %v1570 = vsel %vm1327, %v1550, %v1534
        %v1571 = vsel %vm1327, %v1552, %v1536
        %v1572 = vsel %vm1327, %v1554, %v1538
        %v1573 = vsel %vm1327, %v1556, %v1540
        %v1574 = vsel %vm1327, %v1558, %v1542
        %s1575 = scalar_lea.vmem [#allocation11], 5
        %v1576 = vld [vmem:[%s1575] ss:$8 sm:$0x3]
        %v1578 = vlaneseq
        %v1579 = vshrl.u32 %v1578, 7
        %v1580 = vsub.s32 0, %v1579
        %v1581 = vrot.slane %v1576, %v1580
        %v1582 = vlaneseq
        %v1583 = vshrl.u32 %v1582, 7
        %v1584 = vsub.s32 1, %v1583
        %v1585 = vrot.slane %v1576, %v1584
        %v1588 = vmul.f32 %v1559, %v1581
        %v1589 = vmul.f32 %v1567, %v1585
        %v1590 = vmul.f32 %v1560, %v1581
        %v1591 = vmul.f32 %v1568, %v1585
        %v1592 = vmul.f32 %v1561, %v1581
        %v1593 = vmul.f32 %v1569, %v1585
        %v1594 = vmul.f32 %v1562, %v1581
        %v1595 = vmul.f32 %v1570, %v1585
        %v1596 = vmul.f32 %v1563, %v1581
        %v1597 = vmul.f32 %v1571, %v1585
        %v1598 = vmul.f32 %v1564, %v1581
        %v1599 = vmul.f32 %v1572, %v1585
        %v1600 = vmul.f32 %v1565, %v1581
        %v1601 = vmul.f32 %v1573, %v1585
        %v1602 = vmul.f32 %v1566, %v1581
        %v1603 = vmul.f32 %v1574, %v1585
        %v1604 = vadd.f32 %v1511, %v1588
        %v1605 = vadd.f32 %v1512, %v1589
        %v1606 = vadd.f32 %v1513, %v1590
        %v1607 = vadd.f32 %v1514, %v1591
        %v1608 = vadd.f32 %v1515, %v1592
        %v1609 = vadd.f32 %v1516, %v1593
        %v1610 = vadd.f32 %v1517, %v1594
        %v1611 = vadd.f32 %v1518, %v1595
        %v1612 = vadd.f32 %v1519, %v1596
        %v1613 = vadd.f32 %v1520, %v1597
        %v1614 = vadd.f32 %v1521, %v1598
        %v1615 = vadd.f32 %v1522, %v1599
        %v1616 = vadd.f32 %v1523, %v1600
        %v1617 = vadd.f32 %v1524, %v1601
        %v1618 = vadd.f32 %v1525, %v1602
        %v1619 = vadd.f32 %v1526, %v1603
        %v1620 = vld [vmem:[#allocation2 + $0x10] sm:$0xfe]
        %v1621 = vld [vmem:[#allocation2 + $0x18] sm:$0xfe]
        %v1622 = vld [vmem:[#allocation2 + $0x20] sm:$0xff]
        %v1623 = vld [vmem:[#allocation2 + $0x28] sm:$0xff]
        %v1624 = vld [vmem:[#allocation2 + $0x30] sm:$0x1]
        %v1625 = vld [vmem:[#allocation2 + $0x38] sm:$0x1]
        %v1626 = vld [vmem:[#allocation2 + $0x50] sm:$0xfe]
        %v1627 = vld [vmem:[#allocation2 + $0x58] sm:$0xfe]
        %v1628 = vld [vmem:[#allocation2 + $0x60] sm:$0xff]
        %v1629 = vld [vmem:[#allocation2 + $0x68] sm:$0xff]
        %v1630 = vld [vmem:[#allocation2 + $0x70] sm:$0x1]
        %v1631 = vld [vmem:[#allocation2 + $0x78] sm:$0x1]
        %v1632 = vld [vmem:[#allocation2 + $0x90] sm:$0xfe]
        %v1633 = vld [vmem:[#allocation2 + $0x98] sm:$0xfe]
        %v1634 = vld [vmem:[#allocation2 + $0xa0] sm:$0xff]
        %v1635 = vld [vmem:[#allocation2 + $0xa8] sm:$0xff]
        %v1636 = vld [vmem:[#allocation2 + $0xb0] sm:$0x1]
        %v1637 = vld [vmem:[#allocation2 + $0xb8] sm:$0x1]
        %v1638 = vld [vmem:[#allocation2 + $0xd0] sm:$0xfe]
        %v1639 = vld [vmem:[#allocation2 + $0xd8] sm:$0xfe]
        %v1640 = vld [vmem:[#allocation2 + $0xe0] sm:$0xff]
        %v1641 = vld [vmem:[#allocation2 + $0xe8] sm:$0xff]
        %v1642 = vld [vmem:[#allocation2 + $0xf0] sm:$0x1]
        %v1643 = vld [vmem:[#allocation2 + $0xf8] sm:$0x1]
        %vm1668 = vcmask 1046528
        %v1669 = vrot.slane %v1620, 1
        %v1670 = vrot.slane %v1622, 1
        %v1671 = vsel %vm1668, %v1669, %v1670
        %v1672 = vrot.slane %v1621, 1
        %v1673 = vrot.slane %v1623, 1
        %v1674 = vsel %vm1668, %v1672, %v1673
        %v1675 = vrot.slane %v1624, 1
        %v1676 = vsel %vm1668, %v1670, %v1675
        %v1677 = vrot.slane %v1625, 1
        %v1678 = vsel %vm1668, %v1673, %v1677
        %v1679 = vrot.slane %v1626, 1
        %v1680 = vrot.slane %v1628, 1
        %v1681 = vsel %vm1668, %v1679, %v1680
        %v1682 = vrot.slane %v1627, 1
        %v1683 = vrot.slane %v1629, 1
        %v1684 = vsel %vm1668, %v1682, %v1683
        %v1685 = vrot.slane %v1630, 1
        %v1686 = vsel %vm1668, %v1680, %v1685
        %v1687 = vrot.slane %v1631, 1
        %v1688 = vsel %vm1668, %v1683, %v1687
        %v1689 = vrot.slane %v1632, 1
        %v1690 = vrot.slane %v1634, 1
        %v1691 = vsel %vm1668, %v1689, %v1690
        %v1692 = vrot.slane %v1633, 1
        %v1693 = vrot.slane %v1635, 1
        %v1694 = vsel %vm1668, %v1692, %v1693
        %v1695 = vrot.slane %v1636, 1
        %v1696 = vsel %vm1668, %v1690, %v1695
        %v1697 = vrot.slane %v1637, 1
        %v1698 = vsel %vm1668, %v1693, %v1697
        %v1699 = vrot.slane %v1638, 1
        %v1700 = vrot.slane %v1640, 1
        %v1701 = vsel %vm1668, %v1699, %v1700
        %v1702 = vrot.slane %v1639, 1
        %v1703 = vrot.slane %v1641, 1
        %v1704 = vsel %vm1668, %v1702, %v1703
        %v1705 = vrot.slane %v1642, 1
        %v1706 = vsel %vm1668, %v1700, %v1705
        %v1707 = vrot.slane %v1643, 1
        %v1708 = vsel %vm1668, %v1703, %v1707
        %1725 = vrot.lane.b32.xlu0 %v1671, 16
        %v1726 = vpop.permute.xlu0 %1725
        %1727 = vrot.lane.b32.xlu0 %v1676, 16
        %v1728 = vpop.permute.xlu0 %1727
        %1729 = vrot.lane.b32.xlu0 %v1681, 16
        %v1730 = vpop.permute.xlu0 %1729
        %1731 = vrot.lane.b32.xlu0 %v1686, 16
        %v1732 = vpop.permute.xlu0 %1731
        %1733 = vrot.lane.b32.xlu0 %v1691, 16
        %v1734 = vpop.permute.xlu0 %1733
        %1735 = vrot.lane.b32.xlu0 %v1696, 16
        %v1736 = vpop.permute.xlu0 %1735
        %1737 = vrot.lane.b32.xlu0 %v1701, 16
        %v1738 = vpop.permute.xlu0 %1737
        %1739 = vrot.lane.b32.xlu0 %v1706, 16
        %v1740 = vpop.permute.xlu0 %1739
        %1741 = vrot.lane.b32.xlu0 %v1674, 16
        %v1742 = vpop.permute.xlu0 %1741
        %1743 = vrot.lane.b32.xlu0 %v1678, 16
        %v1744 = vpop.permute.xlu0 %1743
        %1745 = vrot.lane.b32.xlu0 %v1684, 16
        %v1746 = vpop.permute.xlu0 %1745
        %1747 = vrot.lane.b32.xlu0 %v1688, 16
        %v1748 = vpop.permute.xlu0 %1747
        %1749 = vrot.lane.b32.xlu0 %v1694, 16
        %v1750 = vpop.permute.xlu0 %1749
        %1751 = vrot.lane.b32.xlu0 %v1698, 16
        %v1752 = vpop.permute.xlu0 %1751
        %1753 = vrot.lane.b32.xlu0 %v1704, 16
        %v1754 = vpop.permute.xlu0 %1753
        %1755 = vrot.lane.b32.xlu0 %v1708, 16
        %v1756 = vpop.permute.xlu0 %1755
        %v1757 = vsel %vm1117, %v1726, %v1742
        %v1758 = vsel %vm1117, %v1728, %v1744
        %v1759 = vsel %vm1117, %v1730, %v1746
        %v1760 = vsel %vm1117, %v1732, %v1748
        %v1761 = vsel %vm1117, %v1734, %v1750
        %v1762 = vsel %vm1117, %v1736, %v1752
        %v1763 = vsel %vm1117, %v1738, %v1754
        %v1764 = vsel %vm1117, %v1740, %v1756
        %v1765 = vsel %vm1117, %v1742, %v1726
        %v1766 = vsel %vm1117, %v1744, %v1728
        %v1767 = vsel %vm1117, %v1746, %v1730
        %v1768 = vsel %vm1117, %v1748, %v1732
        %v1769 = vsel %vm1117, %v1750, %v1734
        %v1770 = vsel %vm1117, %v1752, %v1736
        %v1771 = vsel %vm1117, %v1754, %v1738
        %v1772 = vsel %vm1117, %v1756, %v1740
        %s1773 = scalar_lea.vmem [#allocation11], 6
        %v1774 = vld [vmem:[%s1773] ss:$8 sm:$0x3]
        %v1776 = vlaneseq
        %v1777 = vshrl.u32 %v1776, 7
        %v1778 = vsub.s32 0, %v1777
        %v1779 = vrot.slane %v1774, %v1778
        %v1780 = vlaneseq
        %v1781 = vshrl.u32 %v1780, 7
        %v1782 = vsub.s32 1, %v1781
        %v1783 = vrot.slane %v1774, %v1782
        %v1786 = vmul.f32 %v1765, %v1779
        %v1787 = vmul.f32 %v1757, %v1783
        %v1788 = vmul.f32 %v1766, %v1779
        %v1789 = vmul.f32 %v1758, %v1783
        %v1790 = vmul.f32 %v1767, %v1779
        %v1791 = vmul.f32 %v1759, %v1783
        %v1792 = vmul.f32 %v1768, %v1779
        %v1793 = vmul.f32 %v1760, %v1783
        %v1794 = vmul.f32 %v1769, %v1779
        %v1795 = vmul.f32 %v1761, %v1783
        %v1796 = vmul.f32 %v1770, %v1779
        %v1797 = vmul.f32 %v1762, %v1783
        %v1798 = vmul.f32 %v1771, %v1779
        %v1799 = vmul.f32 %v1763, %v1783
        %v1800 = vmul.f32 %v1772, %v1779
        %v1801 = vmul.f32 %v1764, %v1783
        %v1802 = vadd.f32 %v1604, %v1786
        %v1803 = vadd.f32 %v1605, %v1787
        %v1804 = vadd.f32 %v1606, %v1788
        %v1805 = vadd.f32 %v1607, %v1789
        %v1806 = vadd.f32 %v1608, %v1790
        %v1807 = vadd.f32 %v1609, %v1791
        %v1808 = vadd.f32 %v1610, %v1792
        %v1809 = vadd.f32 %v1611, %v1793
        %v1810 = vadd.f32 %v1612, %v1794
        %v1811 = vadd.f32 %v1613, %v1795
        %v1812 = vadd.f32 %v1614, %v1796
        %v1813 = vadd.f32 %v1615, %v1797
        %v1814 = vadd.f32 %v1616, %v1798
        %v1815 = vadd.f32 %v1617, %v1799
        %v1816 = vadd.f32 %v1618, %v1800
        %v1817 = vadd.f32 %v1619, %v1801
        %s1818 = scalar_lea.vmem [#allocation11], 7
        %v1819 = vld [vmem:[%s1818] ss:$8 sm:$0x3]
        %v1821 = vlaneseq
        %v1822 = vshrl.u32 %v1821, 7
        %v1823 = vsub.s32 0, %v1822
        %v1824 = vrot.slane %v1819, %v1823
        %v1825 = vlaneseq
        %v1826 = vshrl.u32 %v1825, 7
        %v1827 = vsub.s32 1, %v1826
        %v1828 = vrot.slane %v1819, %v1827
        %v1831 = vmul.f32 %v1620, %v1824
        %v1832 = vmul.f32 %v1621, %v1828
        %v1833 = vmul.f32 %v1622, %v1824
        %v1834 = vmul.f32 %v1623, %v1828
        %v1835 = vmul.f32 %v1624, %v1824
        %v1836 = vmul.f32 %v1625, %v1828
        %v1837 = vmul.f32 %v1626, %v1824
        %v1838 = vmul.f32 %v1627, %v1828
        %v1839 = vmul.f32 %v1628, %v1824
        %v1840 = vmul.f32 %v1629, %v1828
        %v1841 = vmul.f32 %v1630, %v1824
        %v1842 = vmul.f32 %v1631, %v1828
        %v1843 = vmul.f32 %v1632, %v1824
        %v1844 = vmul.f32 %v1633, %v1828
        %v1845 = vmul.f32 %v1634, %v1824
        %v1846 = vmul.f32 %v1635, %v1828
        %v1847 = vmul.f32 %v1636, %v1824
        %v1848 = vmul.f32 %v1637, %v1828
        %v1849 = vmul.f32 %v1638, %v1824
        %v1850 = vmul.f32 %v1639, %v1828
        %v1851 = vmul.f32 %v1640, %v1824
        %v1852 = vmul.f32 %v1641, %v1828
        %v1853 = vmul.f32 %v1642, %v1824
        %v1854 = vmul.f32 %v1643, %v1828
        %v1879 = vrot.slane %v1831, 1
        %v1880 = vrot.slane %v1833, 1
        %v1881 = vsel %vm1668, %v1879, %v1880
        %v1882 = vrot.slane %v1832, 1
        %v1883 = vrot.slane %v1834, 1
        %v1884 = vsel %vm1668, %v1882, %v1883
        %v1885 = vrot.slane %v1835, 1
        %v1886 = vsel %vm1668, %v1880, %v1885
        %v1887 = vrot.slane %v1836, 1
        %v1888 = vsel %vm1668, %v1883, %v1887
        %v1889 = vrot.slane %v1837, 1
        %v1890 = vrot.slane %v1839, 1
        %v1891 = vsel %vm1668, %v1889, %v1890
        %v1892 = vrot.slane %v1838, 1
        %v1893 = vrot.slane %v1840, 1
        %v1894 = vsel %vm1668, %v1892, %v1893
        %v1895 = vrot.slane %v1841, 1
        %v1896 = vsel %vm1668, %v1890, %v1895
        %v1897 = vrot.slane %v1842, 1
        %v1898 = vsel %vm1668, %v1893, %v1897
        %v1899 = vrot.slane %v1843, 1
        %v1900 = vrot.slane %v1845, 1
        %v1901 = vsel %vm1668, %v1899, %v1900
        %v1902 = vrot.slane %v1844, 1
        %v1903 = vrot.slane %v1846, 1
        %v1904 = vsel %vm1668, %v1902, %v1903
        %v1905 = vrot.slane %v1847, 1
        %v1906 = vsel %vm1668, %v1900, %v1905
        %v1907 = vrot.slane %v1848, 1
        %v1908 = vsel %vm1668, %v1903, %v1907
        %v1909 = vrot.slane %v1849, 1
        %v1910 = vrot.slane %v1851, 1
        %v1911 = vsel %vm1668, %v1909, %v1910
        %v1912 = vrot.slane %v1850, 1
        %v1913 = vrot.slane %v1852, 1
        %v1914 = vsel %vm1668, %v1912, %v1913
        %v1915 = vrot.slane %v1853, 1
        %v1916 = vsel %vm1668, %v1910, %v1915
        %v1917 = vrot.slane %v1854, 1
        %v1918 = vsel %vm1668, %v1913, %v1917
        %v1935 = vadd.f32 %v1802, %v1881
        %v1936 = vadd.f32 %v1803, %v1884
        %v1937 = vadd.f32 %v1804, %v1886
        %v1938 = vadd.f32 %v1805, %v1888
        %v1939 = vadd.f32 %v1806, %v1891
        %v1940 = vadd.f32 %v1807, %v1894
        %v1941 = vadd.f32 %v1808, %v1896
        %v1942 = vadd.f32 %v1809, %v1898
        %v1943 = vadd.f32 %v1810, %v1901
        %v1944 = vadd.f32 %v1811, %v1904
        %v1945 = vadd.f32 %v1812, %v1906
        %v1946 = vadd.f32 %v1813, %v1908
        %v1947 = vadd.f32 %v1814, %v1911
        %v1948 = vadd.f32 %v1815, %v1914
        %v1949 = vadd.f32 %v1816, %v1916
        %v1950 = vadd.f32 %v1817, %v1918
        %1951 = vrot.lane.b32.xlu0 %v1671, 112
        %v1952 = vpop.permute.xlu0 %1951
        %1953 = vrot.lane.b32.xlu0 %v1676, 112
        %v1954 = vpop.permute.xlu0 %1953
        %1955 = vrot.lane.b32.xlu0 %v1681, 112
        %v1956 = vpop.permute.xlu0 %1955
        %1957 = vrot.lane.b32.xlu0 %v1686, 112
        %v1958 = vpop.permute.xlu0 %1957
        %1959 = vrot.lane.b32.xlu0 %v1691, 112
        %v1960 = vpop.permute.xlu0 %1959
        %1961 = vrot.lane.b32.xlu0 %v1696, 112
        %v1962 = vpop.permute.xlu0 %1961
        %1963 = vrot.lane.b32.xlu0 %v1701, 112
        %v1964 = vpop.permute.xlu0 %1963
        %1965 = vrot.lane.b32.xlu0 %v1706, 112
        %v1966 = vpop.permute.xlu0 %1965
        %1967 = vrot.lane.b32.xlu0 %v1674, 112
        %v1968 = vpop.permute.xlu0 %1967
        %1969 = vrot.lane.b32.xlu0 %v1678, 112
        %v1970 = vpop.permute.xlu0 %1969
        %1971 = vrot.lane.b32.xlu0 %v1684, 112
        %v1972 = vpop.permute.xlu0 %1971
        %1973 = vrot.lane.b32.xlu0 %v1688, 112
        %v1974 = vpop.permute.xlu0 %1973
        %1975 = vrot.lane.b32.xlu0 %v1694, 112
        %v1976 = vpop.permute.xlu0 %1975
        %1977 = vrot.lane.b32.xlu0 %v1698, 112
        %v1978 = vpop.permute.xlu0 %1977
        %1979 = vrot.lane.b32.xlu0 %v1704, 112
        %v1980 = vpop.permute.xlu0 %1979
        %1981 = vrot.lane.b32.xlu0 %v1708, 112
        %v1982 = vpop.permute.xlu0 %1981
        %v1983 = vsel %vm1327, %v1952, %v1968
        %v1984 = vsel %vm1327, %v1954, %v1970
        %v1985 = vsel %vm1327, %v1956, %v1972
        %v1986 = vsel %vm1327, %v1958, %v1974
        %v1987 = vsel %vm1327, %v1960, %v1976
        %v1988 = vsel %vm1327, %v1962, %v1978
        %v1989 = vsel %vm1327, %v1964, %v1980
        %v1990 = vsel %vm1327, %v1966, %v1982
        %v1991 = vsel %vm1327, %v1968, %v1952
        %v1992 = vsel %vm1327, %v1970, %v1954
        %v1993 = vsel %vm1327, %v1972, %v1956
        %v1994 = vsel %vm1327, %v1974, %v1958
        %v1995 = vsel %vm1327, %v1976, %v1960
        %v1996 = vsel %vm1327, %v1978, %v1962
        %v1997 = vsel %vm1327, %v1980, %v1964
        %v1998 = vsel %vm1327, %v1982, %v1966
        %s1999 = scalar_lea.vmem [#allocation11], 16
        %v2000 = vld [vmem:[%s1999] ss:$8 sm:$0x3]
        %v2002 = vlaneseq
        %v2003 = vshrl.u32 %v2002, 7
        %v2004 = vsub.s32 0, %v2003
        %v2005 = vrot.slane %v2000, %v2004
        %v2006 = vlaneseq
        %v2007 = vshrl.u32 %v2006, 7
        %v2008 = vsub.s32 1, %v2007
        %v2009 = vrot.slane %v2000, %v2008
        %v2012 = vmul.f32 %v1983, %v2005
        %v2013 = vmul.f32 %v1991, %v2009
        %v2014 = vmul.f32 %v1984, %v2005
        %v2015 = vmul.f32 %v1992, %v2009
        %v2016 = vmul.f32 %v1985, %v2005
        %v2017 = vmul.f32 %v1993, %v2009
        %v2018 = vmul.f32 %v1986, %v2005
        %v2019 = vmul.f32 %v1994, %v2009
        %v2020 = vmul.f32 %v1987, %v2005
        %v2021 = vmul.f32 %v1995, %v2009
        %v2022 = vmul.f32 %v1988, %v2005
        %v2023 = vmul.f32 %v1996, %v2009
        %v2024 = vmul.f32 %v1989, %v2005
        %v2025 = vmul.f32 %v1997, %v2009
        %v2026 = vmul.f32 %v1990, %v2005
        %v2027 = vmul.f32 %v1998, %v2009
        %v2028 = vadd.f32 %v1935, %v2012
        %v2029 = vadd.f32 %v1936, %v2013
        %v2030 = vadd.f32 %v1937, %v2014
        %v2031 = vadd.f32 %v1938, %v2015
        %v2032 = vadd.f32 %v1939, %v2016
        %v2033 = vadd.f32 %v1940, %v2017
        %v2034 = vadd.f32 %v1941, %v2018
        %v2035 = vadd.f32 %v1942, %v2019
        %v2036 = vadd.f32 %v1943, %v2020
        %v2037 = vadd.f32 %v1944, %v2021
        %v2038 = vadd.f32 %v1945, %v2022
        %v2039 = vadd.f32 %v1946, %v2023
        %v2040 = vadd.f32 %v1947, %v2024
        %v2041 = vadd.f32 %v1948, %v2025
        %v2042 = vadd.f32 %v1949, %v2026
        %v2043 = vadd.f32 %v1950, %v2027
        %v2044 = vld [vmem:[%s5] ss:$4 sm:$0x3]
        %v2045 = vld [vmem:[#allocation12] ss:$4 sm:$0x3]
        %v2046 = vadd.f32 %v2028, %v2029
        %2047 = vadd.xlane.f32.xlu0 %v2046
        %v2048 = vpop.xlane.xlu0 %2047
        %v2049 = vadd.f32 %v2030, %v2031
        %2050 = vadd.xlane.f32.xlu0 %v2049
        %v2051 = vpop.xlane.xlu0 %2050
        %v2052 = vadd.f32 %v2032, %v2033
        %2053 = vadd.xlane.f32.xlu0 %v2052
        %v2054 = vpop.xlane.xlu0 %2053
        %v2055 = vadd.f32 %v2034, %v2035
        %2056 = vadd.xlane.f32.xlu0 %v2055
        %v2057 = vpop.xlane.xlu0 %2056
        %v2058 = vadd.f32 %v2036, %v2037
        %2059 = vadd.xlane.f32.xlu0 %v2058
        %v2060 = vpop.xlane.xlu0 %2059
        %v2061 = vadd.f32 %v2038, %v2039
        %2062 = vadd.xlane.f32.xlu0 %v2061
        %v2063 = vpop.xlane.xlu0 %2062
        %v2064 = vadd.f32 %v2040, %v2041
        %2065 = vadd.xlane.f32.xlu0 %v2064
        %v2066 = vpop.xlane.xlu0 %2065
        %v2067 = vadd.f32 %v2042, %v2043
        %2068 = vadd.xlane.f32.xlu0 %v2067
        %v2069 = vpop.xlane.xlu0 %2068
        %v2070 = vadd.f32 %v2048, %v2051
        %v2071 = vrot.slane %v2070, 4
        %v2072 = vadd.f32 %v2070, %v2071
        %v2073 = vrot.slane %v2072, 2
        %v2074 = vadd.f32 %v2072, %v2073
        %v2075 = vrot.slane %v2074, 1
        %v2076 = vadd.f32 %v2074, %v2075
        %v2077 = vadd.f32 %v2054, %v2057
        %v2078 = vrot.slane %v2077, 4
        %v2079 = vadd.f32 %v2077, %v2078
        %v2080 = vrot.slane %v2079, 2
        %v2081 = vadd.f32 %v2079, %v2080
        %v2082 = vrot.slane %v2081, 1
        %v2083 = vadd.f32 %v2081, %v2082
        %v2084 = vadd.f32 %v2060, %v2063
        %v2085 = vrot.slane %v2084, 4
        %v2086 = vadd.f32 %v2084, %v2085
        %v2087 = vrot.slane %v2086, 2
        %v2088 = vadd.f32 %v2086, %v2087
        %v2089 = vrot.slane %v2088, 1
        %v2090 = vadd.f32 %v2088, %v2089
        %v2091 = vadd.f32 %v2066, %v2069
        %v2092 = vrot.slane %v2091, 4
        %v2093 = vadd.f32 %v2091, %v2092
        %v2094 = vrot.slane %v2093, 2
        %v2095 = vadd.f32 %v2093, %v2094
        %v2096 = vrot.slane %v2095, 1
        %v2097 = vadd.f32 %v2095, %v2096
        %v2098 = vmul.f32 %v2028, %v2028
        %v2099 = vmul.f32 %v2029, %v2029
        %v2100 = vmul.f32 %v2030, %v2030
        %v2101 = vmul.f32 %v2031, %v2031
        %v2102 = vmul.f32 %v2032, %v2032
        %v2103 = vmul.f32 %v2033, %v2033
        %v2104 = vmul.f32 %v2034, %v2034
        %v2105 = vmul.f32 %v2035, %v2035
        %v2106 = vmul.f32 %v2036, %v2036
        %v2107 = vmul.f32 %v2037, %v2037
        %v2108 = vmul.f32 %v2038, %v2038
        %v2109 = vmul.f32 %v2039, %v2039
        %v2110 = vmul.f32 %v2040, %v2040
        %v2111 = vmul.f32 %v2041, %v2041
        %v2112 = vmul.f32 %v2042, %v2042
        %v2113 = vmul.f32 %v2043, %v2043
        %v2114 = vadd.f32 %v2098, %v2099
        %2115 = vadd.xlane.f32.xlu0 %v2114
        %v2116 = vpop.xlane.xlu0 %2115
        %v2117 = vadd.f32 %v2100, %v2101
        %2118 = vadd.xlane.f32.xlu0 %v2117
        %v2119 = vpop.xlane.xlu0 %2118
        %v2120 = vadd.f32 %v2102, %v2103
        %2121 = vadd.xlane.f32.xlu0 %v2120
        %v2122 = vpop.xlane.xlu0 %2121
        %v2123 = vadd.f32 %v2104, %v2105
        %2124 = vadd.xlane.f32.xlu0 %v2123
        %v2125 = vpop.xlane.xlu0 %2124
        %v2126 = vadd.f32 %v2106, %v2107
        %2127 = vadd.xlane.f32.xlu0 %v2126
        %v2128 = vpop.xlane.xlu0 %2127
        %v2129 = vadd.f32 %v2108, %v2109
        %2130 = vadd.xlane.f32.xlu0 %v2129
        %v2131 = vpop.xlane.xlu0 %2130
        %v2132 = vadd.f32 %v2110, %v2111
        %2133 = vadd.xlane.f32.xlu0 %v2132
        %v2134 = vpop.xlane.xlu0 %2133
        %v2135 = vadd.f32 %v2112, %v2113
        %2136 = vadd.xlane.f32.xlu0 %v2135
        %v2137 = vpop.xlane.xlu0 %2136
        %v2138 = vadd.f32 %v2116, %v2119
        %v2139 = vrot.slane %v2138, 4
        %v2140 = vadd.f32 %v2138, %v2139
        %v2141 = vrot.slane %v2140, 2
        %v2142 = vadd.f32 %v2140, %v2141
        %v2143 = vrot.slane %v2142, 1
        %v2144 = vadd.f32 %v2142, %v2143
        %v2145 = vadd.f32 %v2122, %v2125
        %v2146 = vrot.slane %v2145, 4
        %v2147 = vadd.f32 %v2145, %v2146
        %v2148 = vrot.slane %v2147, 2
        %v2149 = vadd.f32 %v2147, %v2148
        %v2150 = vrot.slane %v2149, 1
        %v2151 = vadd.f32 %v2149, %v2150
        %v2152 = vadd.f32 %v2128, %v2131
        %v2153 = vrot.slane %v2152, 4
        %v2154 = vadd.f32 %v2152, %v2153
        %v2155 = vrot.slane %v2154, 2
        %v2156 = vadd.f32 %v2154, %v2155
        %v2157 = vrot.slane %v2156, 1
        %v2158 = vadd.f32 %v2156, %v2157
        %v2159 = vadd.f32 %v2134, %v2137
        %v2160 = vrot.slane %v2159, 4
        %v2161 = vadd.f32 %v2159, %v2160
        %v2162 = vrot.slane %v2161, 2
        %v2163 = vadd.f32 %v2161, %v2162
        %v2164 = vrot.slane %v2163, 1
        %v2165 = vadd.f32 %v2163, %v2164
        %v2166 = vmul.f32 %v2076, 0.00024414063
        %v2167 = vmul.f32 %v2083, 0.00024414063
        %v2168 = vmul.f32 %v2090, 0.00024414063
        %v2169 = vmul.f32 %v2097, 0.00024414063
        %v2170 = vmul.f32 %v2144, 0.00024414063
        %v2171 = vmul.f32 %v2151, 0.00024414063
        %v2172 = vmul.f32 %v2158, 0.00024414063
        %v2173 = vmul.f32 %v2165, 0.00024414063
        %v2174 = vmul.f32 %v2166, %v2166
        %v2175 = vmul.f32 %v2167, %v2167
        %v2176 = vmul.f32 %v2168, %v2168
        %v2177 = vmul.f32 %v2169, %v2169
        %v2178 = vsub.f32 %v2170, %v2174
        %v2179 = vsub.f32 %v2171, %v2175
        %v2180 = vsub.f32 %v2172, %v2176
        %v2181 = vsub.f32 %v2173, %v2177
        %v2182 = vadd.f32 %v2178, 1e-05
        %v2183 = vadd.f32 %v2179, 1e-05
        %v2184 = vadd.f32 %v2180, 1e-05
        %v2185 = vadd.f32 %v2181, 1e-05
        %v2186 = vrsqrt.pop %v2182
        %v2187 = vrsqrt.pop %v2183
        %v2188 = vrsqrt.pop %v2184
        %v2189 = vrsqrt.pop %v2185
        %v2190 = vmul.f32 %v2044, %v2186
        %v2191 = vmul.f32 %v2044, %v2187
        %v2192 = vmul.f32 %v2044, %v2188
        %v2193 = vmul.f32 %v2044, %v2189
        %v2194 = vmul.f32 %v2166, %v2190
        %v2195 = vmul.f32 %v2167, %v2191
        %v2196 = vmul.f32 %v2168, %v2192
        %v2197 = vmul.f32 %v2169, %v2193
        %v2198 = vsub.f32 %v2045, %v2194
        %v2199 = vsub.f32 %v2045, %v2195
        %v2200 = vsub.f32 %v2045, %v2196
        %v2201 = vsub.f32 %v2045, %v2197
        %v2206 = vlaneseq
        %v2207 = vshrl.u32 %v2206, 7
        %v2208 = vsub.s32 0, %v2207
        %v2209 = vrot.slane %v2190, %v2208
        %v2210 = vlaneseq
        %v2211 = vshrl.u32 %v2210, 7
        %v2212 = vsub.s32 1, %v2211
        %v2213 = vrot.slane %v2190, %v2212
        %v2214 = vlaneseq
        %v2215 = vshrl.u32 %v2214, 7
        %v2216 = vsub.s32 0, %v2215
        %v2217 = vrot.slane %v2191, %v2216
        %v2218 = vlaneseq
        %v2219 = vshrl.u32 %v2218, 7
        %v2220 = vsub.s32 1, %v2219
        %v2221 = vrot.slane %v2191, %v2220
        %v2222 = vlaneseq
        %v2223 = vshrl.u32 %v2222, 7
        %v2224 = vsub.s32 0, %v2223
        %v2225 = vrot.slane %v2192, %v2224
        %v2226 = vlaneseq
        %v2227 = vshrl.u32 %v2226, 7
        %v2228 = vsub.s32 1, %v2227
        %v2229 = vrot.slane %v2192, %v2228
        %v2230 = vlaneseq
        %v2231 = vshrl.u32 %v2230, 7
        %v2232 = vsub.s32 0, %v2231
        %v2233 = vrot.slane %v2193, %v2232
        %v2234 = vlaneseq
        %v2235 = vshrl.u32 %v2234, 7
        %v2236 = vsub.s32 1, %v2235
        %v2237 = vrot.slane %v2193, %v2236
        %v2246 = vmul.f32 %v2028, %v2209
        %v2247 = vmul.f32 %v2029, %v2213
        %v2248 = vmul.f32 %v2030, %v2209
        %v2249 = vmul.f32 %v2031, %v2213
        %v2250 = vmul.f32 %v2032, %v2217
        %v2251 = vmul.f32 %v2033, %v2221
        %v2252 = vmul.f32 %v2034, %v2217
        %v2253 = vmul.f32 %v2035, %v2221
        %v2254 = vmul.f32 %v2036, %v2225
        %v2255 = vmul.f32 %v2037, %v2229
        %v2256 = vmul.f32 %v2038, %v2225
        %v2257 = vmul.f32 %v2039, %v2229
        %v2258 = vmul.f32 %v2040, %v2233
        %v2259 = vmul.f32 %v2041, %v2237
        %v2260 = vmul.f32 %v2042, %v2233
        %v2261 = vmul.f32 %v2043, %v2237
        %v2266 = vlaneseq
        %v2267 = vshrl.u32 %v2266, 7
        %v2268 = vsub.s32 0, %v2267
        %v2269 = vrot.slane %v2198, %v2268
        %v2270 = vlaneseq
        %v2271 = vshrl.u32 %v2270, 7
        %v2272 = vsub.s32 1, %v2271
        %v2273 = vrot.slane %v2198, %v2272
        %v2274 = vlaneseq
        %v2275 = vshrl.u32 %v2274, 7
        %v2276 = vsub.s32 0, %v2275
        %v2277 = vrot.slane %v2199, %v2276
        %v2278 = vlaneseq
        %v2279 = vshrl.u32 %v2278, 7
        %v2280 = vsub.s32 1, %v2279
        %v2281 = vrot.slane %v2199, %v2280
        %v2282 = vlaneseq
        %v2283 = vshrl.u32 %v2282, 7
        %v2284 = vsub.s32 0, %v2283
        %v2285 = vrot.slane %v2200, %v2284
        %v2286 = vlaneseq
        %v2287 = vshrl.u32 %v2286, 7
        %v2288 = vsub.s32 1, %v2287
        %v2289 = vrot.slane %v2200, %v2288
        %v2290 = vlaneseq
        %v2291 = vshrl.u32 %v2290, 7
        %v2292 = vsub.s32 0, %v2291
        %v2293 = vrot.slane %v2201, %v2292
        %v2294 = vlaneseq
        %v2295 = vshrl.u32 %v2294, 7
        %v2296 = vsub.s32 1, %v2295
        %v2297 = vrot.slane %v2201, %v2296
        %v2306 = vadd.f32 %v2246, %v2269
        %v2307 = vadd.f32 %v2247, %v2273
        %v2308 = vadd.f32 %v2248, %v2269
        %v2309 = vadd.f32 %v2249, %v2273
        %v2310 = vadd.f32 %v2250, %v2277
        %v2311 = vadd.f32 %v2251, %v2281
        %v2312 = vadd.f32 %v2252, %v2277
        %v2313 = vadd.f32 %v2253, %v2281
        %v2314 = vadd.f32 %v2254, %v2285
        %v2315 = vadd.f32 %v2255, %v2289
        %v2316 = vadd.f32 %v2256, %v2285
        %v2317 = vadd.f32 %v2257, %v2289
        %v2318 = vadd.f32 %v2258, %v2293
        %v2319 = vadd.f32 %v2259, %v2297
        %v2320 = vadd.f32 %v2260, %v2293
        %v2321 = vadd.f32 %v2261, %v2297
        %v2322 = vadd.f32 %v2306, 3.0
        %v2323 = vadd.f32 %v2307, 3.0
        %v2324 = vadd.f32 %v2308, 3.0
        %v2325 = vadd.f32 %v2309, 3.0
        %v2326 = vadd.f32 %v2310, 3.0
        %v2327 = vadd.f32 %v2311, 3.0
        %v2328 = vadd.f32 %v2312, 3.0
        %v2329 = vadd.f32 %v2313, 3.0
        %v2330 = vadd.f32 %v2314, 3.0
        %v2331 = vadd.f32 %v2315, 3.0
        %v2332 = vadd.f32 %v2316, 3.0
        %v2333 = vadd.f32 %v2317, 3.0
        %v2334 = vadd.f32 %v2318, 3.0
        %v2335 = vadd.f32 %v2319, 3.0
        %v2336 = vadd.f32 %v2320, 3.0
        %v2337 = vadd.f32 %v2321, 3.0
        %v2338 = vmax.f32 %v2322, 0.0
        %v2339 = vmax.f32 %v2323, 0.0
        %v2340 = vmax.f32 %v2324, 0.0
        %v2341 = vmax.f32 %v2325, 0.0
        %v2342 = vmax.f32 %v2326, 0.0
        %v2343 = vmax.f32 %v2327, 0.0
        %v2344 = vmax.f32 %v2328, 0.0
        %v2345 = vmax.f32 %v2329, 0.0
        %v2346 = vmax.f32 %v2330, 0.0
        %v2347 = vmax.f32 %v2331, 0.0
        %v2348 = vmax.f32 %v2332, 0.0
        %v2349 = vmax.f32 %v2333, 0.0
        %v2350 = vmax.f32 %v2334, 0.0
        %v2351 = vmax.f32 %v2335, 0.0
        %v2352 = vmax.f32 %v2336, 0.0
        %v2353 = vmax.f32 %v2337, 0.0
        %v2354 = vmin.f32 %v2338, 6.0
        %v2355 = vmin.f32 %v2339, 6.0
        %v2356 = vmin.f32 %v2340, 6.0
        %v2357 = vmin.f32 %v2341, 6.0
        %v2358 = vmin.f32 %v2342, 6.0
        %v2359 = vmin.f32 %v2343, 6.0
        %v2360 = vmin.f32 %v2344, 6.0
        %v2361 = vmin.f32 %v2345, 6.0
        %v2362 = vmin.f32 %v2346, 6.0
        %v2363 = vmin.f32 %v2347, 6.0
        %v2364 = vmin.f32 %v2348, 6.0
        %v2365 = vmin.f32 %v2349, 6.0
        %v2366 = vmin.f32 %v2350, 6.0
        %v2367 = vmin.f32 %v2351, 6.0
        %v2368 = vmin.f32 %v2352, 6.0
        %v2369 = vmin.f32 %v2353, 6.0
        %v2370 = vmul.f32 %v2354, 0.16666667
        %v2371 = vmul.f32 %v2355, 0.16666667
        %v2372 = vmul.f32 %v2356, 0.16666667
        %v2373 = vmul.f32 %v2357, 0.16666667
        %v2374 = vmul.f32 %v2358, 0.16666667
        %v2375 = vmul.f32 %v2359, 0.16666667
        %v2376 = vmul.f32 %v2360, 0.16666667
        %v2377 = vmul.f32 %v2361, 0.16666667
        %v2378 = vmul.f32 %v2362, 0.16666667
        %v2379 = vmul.f32 %v2363, 0.16666667
        %v2380 = vmul.f32 %v2364, 0.16666667
        %v2381 = vmul.f32 %v2365, 0.16666667
        %v2382 = vmul.f32 %v2366, 0.16666667
        %v2383 = vmul.f32 %v2367, 0.16666667
        %v2384 = vmul.f32 %v2368, 0.16666667
        %v2385 = vmul.f32 %v2369, 0.16666667
        %v2386 = vmul.f32 %v2306, %v2370
        %v2387 = vmul.f32 %v2307, %v2371
        %v2388 = vmul.f32 %v2308, %v2372
        %v2389 = vmul.f32 %v2309, %v2373
        %v2390 = vmul.f32 %v2310, %v2374
        %v2391 = vmul.f32 %v2311, %v2375
        %v2392 = vmul.f32 %v2312, %v2376
        %v2393 = vmul.f32 %v2313, %v2377
        %v2394 = vmul.f32 %v2314, %v2378
        %v2395 = vmul.f32 %v2315, %v2379
        %v2396 = vmul.f32 %v2316, %v2380
        %v2397 = vmul.f32 %v2317, %v2381
        %v2398 = vmul.f32 %v2318, %v2382
        %v2399 = vmul.f32 %v2319, %v2383
        %v2400 = vmul.f32 %v2320, %v2384
        %v2401 = vmul.f32 %v2321, %v2385
        %2402 = vst [vmem:[%s364] sm:$0xff] %v2386
        %2403 = vst [vmem:[%s364 + $0x8] sm:$0xff] %v2387
        %2404 = vst [vmem:[%s364 + $0x10] sm:$0xff] %v2388
        %2405 = vst [vmem:[%s364 + $0x18] sm:$0xff] %v2389
        %2406 = vst [vmem:[%s364 + $0x40] sm:$0xff] %v2390
        %2407 = vst [vmem:[%s364 + $0x48] sm:$0xff] %v2391
        %2408 = vst [vmem:[%s364 + $0x50] sm:$0xff] %v2392
        %2409 = vst [vmem:[%s364 + $0x58] sm:$0xff] %v2393
        %2410 = vst [vmem:[%s364 + $0x80] sm:$0xff] %v2394
        %2411 = vst [vmem:[%s364 + $0x88] sm:$0xff] %v2395
        %2412 = vst [vmem:[%s364 + $0x90] sm:$0xff] %v2396
        %2413 = vst [vmem:[%s364 + $0x98] sm:$0xff] %v2397
        %2414 = vst [vmem:[%s364 + $0xc0] sm:$0xff] %v2398
        %2415 = vst [vmem:[%s364 + $0xc8] sm:$0xff] %v2399
        %2416 = vst [vmem:[%s364 + $0xd0] sm:$0xff] %v2400
        %2417 = vst [vmem:[%s364 + $0xd8] sm:$0xff] %v2401
        %2418 = vst [vmem:[#allocation2 + $0x10] sm:$0xff] %v946
        %2419 = vst [vmem:[#allocation2 + $0x18] sm:$0xff] %v947
        %2420 = vst [vmem:[#allocation2 + $0x20] sm:$0xff] %v948
        %2421 = vst [vmem:[#allocation2 + $0x28] sm:$0xff] %v949
        %2422 = vst [vmem:[#allocation2 + $0x50] sm:$0xff] %v950
        %2423 = vst [vmem:[#allocation2 + $0x58] sm:$0xff] %v951
        %2424 = vst [vmem:[#allocation2 + $0x60] sm:$0xff] %v952
        %2425 = vst [vmem:[#allocation2 + $0x68] sm:$0xff] %v953
        %2426 = vst [vmem:[#allocation2 + $0x90] sm:$0xff] %v954
        %2427 = vst [vmem:[#allocation2 + $0x98] sm:$0xff] %v955
        %2428 = vst [vmem:[#allocation2 + $0xa0] sm:$0xff] %v956
        %2429 = vst [vmem:[#allocation2 + $0xa8] sm:$0xff] %v957
        %2430 = vst [vmem:[#allocation2 + $0xd0] sm:$0xff] %v958
        %2431 = vst [vmem:[#allocation2 + $0xd8] sm:$0xff] %v959
        %2432 = vst [vmem:[#allocation2 + $0xe0] sm:$0xff] %v960
        %2433 = vst [vmem:[#allocation2 + $0xe8] sm:$0xff] %v961
        %v2434 = vld [vmem:[#allocation2] sm:$0x80]
        %v2435 = vld [vmem:[#allocation2 + $0x8] sm:$0x80]
        %v2436 = vld [vmem:[#allocation2 + $0x10] sm:$0xff]
        %v2437 = vld [vmem:[#allocation2 + $0x18] sm:$0xff]
        %v2438 = vld [vmem:[#allocation2 + $0x20] sm:$0x7f]
        %v2439 = vld [vmem:[#allocation2 + $0x28] sm:$0x7f]
        %v2440 = vld [vmem:[#allocation2 + $0x40] sm:$0x80]
        %v2441 = vld [vmem:[#allocation2 + $0x48] sm:$0x80]
        %v2442 = vld [vmem:[#allocation2 + $0x50] sm:$0xff]
        %v2443 = vld [vmem:[#allocation2 + $0x58] sm:$0xff]
        %v2444 = vld [vmem:[#allocation2 + $0x60] sm:$0x7f]
        %v2445 = vld [vmem:[#allocation2 + $0x68] sm:$0x7f]
        %v2446 = vld [vmem:[#allocation2 + $0x80] sm:$0x80]
        %v2447 = vld [vmem:[#allocation2 + $0x88] sm:$0x80]
        %v2448 = vld [vmem:[#allocation2 + $0x90] sm:$0xff]
        %v2449 = vld [vmem:[#allocation2 + $0x98] sm:$0xff]
        %v2450 = vld [vmem:[#allocation2 + $0xa0] sm:$0x7f]
        %v2451 = vld [vmem:[#allocation2 + $0xa8] sm:$0x7f]
        %v2452 = vld [vmem:[#allocation2 + $0xc0] sm:$0x80]
        %v2453 = vld [vmem:[#allocation2 + $0xc8] sm:$0x80]
        %v2454 = vld [vmem:[#allocation2 + $0xd0] sm:$0xff]
        %v2455 = vld [vmem:[#allocation2 + $0xd8] sm:$0xff]
        %v2456 = vld [vmem:[#allocation2 + $0xe0] sm:$0x7f]
        %v2457 = vld [vmem:[#allocation2 + $0xe8] sm:$0x7f]
        %v2482 = vrot.slane %v2434, 7
        %v2483 = vrot.slane %v2436, 7
        %v2484 = vsel %vm1026, %v2482, %v2483
        %v2485 = vrot.slane %v2435, 7
        %v2486 = vrot.slane %v2437, 7
        %v2487 = vsel %vm1026, %v2485, %v2486
        %v2488 = vrot.slane %v2438, 7
        %v2489 = vsel %vm1026, %v2483, %v2488
        %v2490 = vrot.slane %v2439, 7
        %v2491 = vsel %vm1026, %v2486, %v2490
        %v2492 = vrot.slane %v2440, 7
        %v2493 = vrot.slane %v2442, 7
        %v2494 = vsel %vm1026, %v2492, %v2493
        %v2495 = vrot.slane %v2441, 7
        %v2496 = vrot.slane %v2443, 7
        %v2497 = vsel %vm1026, %v2495, %v2496
        %v2498 = vrot.slane %v2444, 7
        %v2499 = vsel %vm1026, %v2493, %v2498
        %v2500 = vrot.slane %v2445, 7
        %v2501 = vsel %vm1026, %v2496, %v2500
        %v2502 = vrot.slane %v2446, 7
        %v2503 = vrot.slane %v2448, 7
        %v2504 = vsel %vm1026, %v2502, %v2503
        %v2505 = vrot.slane %v2447, 7
        %v2506 = vrot.slane %v2449, 7
        %v2507 = vsel %vm1026, %v2505, %v2506
        %v2508 = vrot.slane %v2450, 7
        %v2509 = vsel %vm1026, %v2503, %v2508
        %v2510 = vrot.slane %v2451, 7
        %v2511 = vsel %vm1026, %v2506, %v2510
        %v2512 = vrot.slane %v2452, 7
        %v2513 = vrot.slane %v2454, 7
        %v2514 = vsel %vm1026, %v2512, %v2513
        %v2515 = vrot.slane %v2453, 7
        %v2516 = vrot.slane %v2455, 7
        %v2517 = vsel %vm1026, %v2515, %v2516
        %v2518 = vrot.slane %v2456, 7
        %v2519 = vsel %vm1026, %v2513, %v2518
        %v2520 = vrot.slane %v2457, 7
        %v2521 = vsel %vm1026, %v2516, %v2520
        %2538 = vrot.lane.b32.xlu0 %v2484, 16
        %v2539 = vpop.permute.xlu0 %2538
        %2540 = vrot.lane.b32.xlu0 %v2489, 16
        %v2541 = vpop.permute.xlu0 %2540
        %2542 = vrot.lane.b32.xlu0 %v2494, 16
        %v2543 = vpop.permute.xlu0 %2542
        %2544 = vrot.lane.b32.xlu0 %v2499, 16
        %v2545 = vpop.permute.xlu0 %2544
        %2546 = vrot.lane.b32.xlu0 %v2504, 16
        %v2547 = vpop.permute.xlu0 %2546
        %2548 = vrot.lane.b32.xlu0 %v2509, 16
        %v2549 = vpop.permute.xlu0 %2548
        %2550 = vrot.lane.b32.xlu0 %v2514, 16
        %v2551 = vpop.permute.xlu0 %2550
        %2552 = vrot.lane.b32.xlu0 %v2519, 16
        %v2553 = vpop.permute.xlu0 %2552
        %2554 = vrot.lane.b32.xlu0 %v2487, 16
        %v2555 = vpop.permute.xlu0 %2554
        %2556 = vrot.lane.b32.xlu0 %v2491, 16
        %v2557 = vpop.permute.xlu0 %2556
        %2558 = vrot.lane.b32.xlu0 %v2497, 16
        %v2559 = vpop.permute.xlu0 %2558
        %2560 = vrot.lane.b32.xlu0 %v2501, 16
        %v2561 = vpop.permute.xlu0 %2560
        %2562 = vrot.lane.b32.xlu0 %v2507, 16
        %v2563 = vpop.permute.xlu0 %2562
        %2564 = vrot.lane.b32.xlu0 %v2511, 16
        %v2565 = vpop.permute.xlu0 %2564
        %2566 = vrot.lane.b32.xlu0 %v2517, 16
        %v2567 = vpop.permute.xlu0 %2566
        %2568 = vrot.lane.b32.xlu0 %v2521, 16
        %v2569 = vpop.permute.xlu0 %2568
        %v2570 = vsel %vm1117, %v2539, %v2555
        %v2571 = vsel %vm1117, %v2541, %v2557
        %v2572 = vsel %vm1117, %v2543, %v2559
        %v2573 = vsel %vm1117, %v2545, %v2561
        %v2574 = vsel %vm1117, %v2547, %v2563
        %v2575 = vsel %vm1117, %v2549, %v2565
        %v2576 = vsel %vm1117, %v2551, %v2567
        %v2577 = vsel %vm1117, %v2553, %v2569
        %v2578 = vsel %vm1117, %v2555, %v2539
        %v2579 = vsel %vm1117, %v2557, %v2541
        %v2580 = vsel %vm1117, %v2559, %v2543
        %v2581 = vsel %vm1117, %v2561, %v2545
        %v2582 = vsel %vm1117, %v2563, %v2547
        %v2583 = vsel %vm1117, %v2565, %v2549
        %v2584 = vsel %vm1117, %v2567, %v2551
        %v2585 = vsel %vm1117, %v2569, %v2553
        %s2586 = scalar_lea.vmem [#allocation11], 17
        %v2587 = vld [vmem:[%s2586] ss:$8 sm:$0x3]
        %v2589 = vlaneseq
        %v2590 = vshrl.u32 %v2589, 7
        %v2591 = vsub.s32 0, %v2590
        %v2592 = vrot.slane %v2587, %v2591
        %v2593 = vlaneseq
        %v2594 = vshrl.u32 %v2593, 7
        %v2595 = vsub.s32 1, %v2594
        %v2596 = vrot.slane %v2587, %v2595
        %v2599 = vmul.f32 %v2578, %v2592
        %v2600 = vmul.f32 %v2570, %v2596
        %v2601 = vmul.f32 %v2579, %v2592
        %v2602 = vmul.f32 %v2571, %v2596
        %v2603 = vmul.f32 %v2580, %v2592
        %v2604 = vmul.f32 %v2572, %v2596
        %v2605 = vmul.f32 %v2581, %v2592
        %v2606 = vmul.f32 %v2573, %v2596
        %v2607 = vmul.f32 %v2582, %v2592
        %v2608 = vmul.f32 %v2574, %v2596
        %v2609 = vmul.f32 %v2583, %v2592
        %v2610 = vmul.f32 %v2575, %v2596
        %v2611 = vmul.f32 %v2584, %v2592
        %v2612 = vmul.f32 %v2576, %v2596
        %v2613 = vmul.f32 %v2585, %v2592
        %v2614 = vmul.f32 %v2577, %v2596
        %s2615 = scalar_lea.vmem [#allocation11], 18
        %v2616 = vld [vmem:[%s2615] ss:$8 sm:$0x3]
        %v2618 = vlaneseq
        %v2619 = vshrl.u32 %v2618, 7
        %v2620 = vsub.s32 0, %v2619
        %v2621 = vrot.slane %v2616, %v2620
        %v2622 = vlaneseq
        %v2623 = vshrl.u32 %v2622, 7
        %v2624 = vsub.s32 1, %v2623
        %v2625 = vrot.slane %v2616, %v2624
        %v2628 = vmul.f32 %v2434, %v2621
        %v2629 = vmul.f32 %v2435, %v2625
        %v2630 = vmul.f32 %v2436, %v2621
        %v2631 = vmul.f32 %v2437, %v2625
        %v2632 = vmul.f32 %v2438, %v2621
        %v2633 = vmul.f32 %v2439, %v2625
        %v2634 = vmul.f32 %v2440, %v2621
        %v2635 = vmul.f32 %v2441, %v2625
        %v2636 = vmul.f32 %v2442, %v2621
        %v2637 = vmul.f32 %v2443, %v2625
        %v2638 = vmul.f32 %v2444, %v2621
        %v2639 = vmul.f32 %v2445, %v2625
        %v2640 = vmul.f32 %v2446, %v2621
        %v2641 = vmul.f32 %v2447, %v2625
        %v2642 = vmul.f32 %v2448, %v2621
        %v2643 = vmul.f32 %v2449, %v2625
        %v2644 = vmul.f32 %v2450, %v2621
        %v2645 = vmul.f32 %v2451, %v2625
        %v2646 = vmul.f32 %v2452, %v2621
        %v2647 = vmul.f32 %v2453, %v2625
        %v2648 = vmul.f32 %v2454, %v2621
        %v2649 = vmul.f32 %v2455, %v2625
        %v2650 = vmul.f32 %v2456, %v2621
        %v2651 = vmul.f32 %v2457, %v2625
        %v2676 = vrot.slane %v2628, 7
        %v2677 = vrot.slane %v2630, 7
        %v2678 = vsel %vm1026, %v2676, %v2677
        %v2679 = vrot.slane %v2629, 7
        %v2680 = vrot.slane %v2631, 7
        %v2681 = vsel %vm1026, %v2679, %v2680
        %v2682 = vrot.slane %v2632, 7
        %v2683 = vsel %vm1026, %v2677, %v2682
        %v2684 = vrot.slane %v2633, 7
        %v2685 = vsel %vm1026, %v2680, %v2684
        %v2686 = vrot.slane %v2634, 7
        %v2687 = vrot.slane %v2636, 7
        %v2688 = vsel %vm1026, %v2686, %v2687
        %v2689 = vrot.slane %v2635, 7
        %v2690 = vrot.slane %v2637, 7
        %v2691 = vsel %vm1026, %v2689, %v2690
        %v2692 = vrot.slane %v2638, 7
        %v2693 = vsel %vm1026, %v2687, %v2692
        %v2694 = vrot.slane %v2639, 7
        %v2695 = vsel %vm1026, %v2690, %v2694
        %v2696 = vrot.slane %v2640, 7
        %v2697 = vrot.slane %v2642, 7
        %v2698 = vsel %vm1026, %v2696, %v2697
        %v2699 = vrot.slane %v2641, 7
        %v2700 = vrot.slane %v2643, 7
        %v2701 = vsel %vm1026, %v2699, %v2700
        %v2702 = vrot.slane %v2644, 7
        %v2703 = vsel %vm1026, %v2697, %v2702
        %v2704 = vrot.slane %v2645, 7
        %v2705 = vsel %vm1026, %v2700, %v2704
        %v2706 = vrot.slane %v2646, 7
        %v2707 = vrot.slane %v2648, 7
        %v2708 = vsel %vm1026, %v2706, %v2707
        %v2709 = vrot.slane %v2647, 7
        %v2710 = vrot.slane %v2649, 7
        %v2711 = vsel %vm1026, %v2709, %v2710
        %v2712 = vrot.slane %v2650, 7
        %v2713 = vsel %vm1026, %v2707, %v2712
        %v2714 = vrot.slane %v2651, 7
        %v2715 = vsel %vm1026, %v2710, %v2714
        %v2732 = vadd.f32 %v2599, %v2678
        %v2733 = vadd.f32 %v2600, %v2681
        %v2734 = vadd.f32 %v2601, %v2683
        %v2735 = vadd.f32 %v2602, %v2685
        %v2736 = vadd.f32 %v2603, %v2688
        %v2737 = vadd.f32 %v2604, %v2691
        %v2738 = vadd.f32 %v2605, %v2693
        %v2739 = vadd.f32 %v2606, %v2695
        %v2740 = vadd.f32 %v2607, %v2698
        %v2741 = vadd.f32 %v2608, %v2701
        %v2742 = vadd.f32 %v2609, %v2703
        %v2743 = vadd.f32 %v2610, %v2705
        %v2744 = vadd.f32 %v2611, %v2708
        %v2745 = vadd.f32 %v2612, %v2711
        %v2746 = vadd.f32 %v2613, %v2713
        %v2747 = vadd.f32 %v2614, %v2715
        %2748 = vrot.lane.b32.xlu0 %v2484, 112
        %v2749 = vpop.permute.xlu0 %2748
        %2750 = vrot.lane.b32.xlu0 %v2489, 112
        %v2751 = vpop.permute.xlu0 %2750
        %2752 = vrot.lane.b32.xlu0 %v2494, 112
        %v2753 = vpop.permute.xlu0 %2752
        %2754 = vrot.lane.b32.xlu0 %v2499, 112
        %v2755 = vpop.permute.xlu0 %2754
        %2756 = vrot.lane.b32.xlu0 %v2504, 112
        %v2757 = vpop.permute.xlu0 %2756
        %2758 = vrot.lane.b32.xlu0 %v2509, 112
        %v2759 = vpop.permute.xlu0 %2758
        %2760 = vrot.lane.b32.xlu0 %v2514, 112
        %v2761 = vpop.permute.xlu0 %2760
        %2762 = vrot.lane.b32.xlu0 %v2519, 112
        %v2763 = vpop.permute.xlu0 %2762
        %2764 = vrot.lane.b32.xlu0 %v2487, 112
        %v2765 = vpop.permute.xlu0 %2764
        %2766 = vrot.lane.b32.xlu0 %v2491, 112
        %v2767 = vpop.permute.xlu0 %2766
        %2768 = vrot.lane.b32.xlu0 %v2497, 112
        %v2769 = vpop.permute.xlu0 %2768
        %2770 = vrot.lane.b32.xlu0 %v2501, 112
        %v2771 = vpop.permute.xlu0 %2770
        %2772 = vrot.lane.b32.xlu0 %v2507, 112
        %v2773 = vpop.permute.xlu0 %2772
        %2774 = vrot.lane.b32.xlu0 %v2511, 112
        %v2775 = vpop.permute.xlu0 %2774
        %2776 = vrot.lane.b32.xlu0 %v2517, 112
        %v2777 = vpop.permute.xlu0 %2776
        %2778 = vrot.lane.b32.xlu0 %v2521, 112
        %v2779 = vpop.permute.xlu0 %2778
        %v2780 = vsel %vm1327, %v2749, %v2765
        %v2781 = vsel %vm1327, %v2751, %v2767
        %v2782 = vsel %vm1327, %v2753, %v2769
        %v2783 = vsel %vm1327, %v2755, %v2771
        %v2784 = vsel %vm1327, %v2757, %v2773
        %v2785 = vsel %vm1327, %v2759, %v2775
        %v2786 = vsel %vm1327, %v2761, %v2777
        %v2787 = vsel %vm1327, %v2763, %v2779
        %v2788 = vsel %vm1327, %v2765, %v2749
        %v2789 = vsel %vm1327, %v2767, %v2751
        %v2790 = vsel %vm1327, %v2769, %v2753
        %v2791 = vsel %vm1327, %v2771, %v2755
        %v2792 = vsel %vm1327, %v2773, %v2757
        %v2793 = vsel %vm1327, %v2775, %v2759
        %v2794 = vsel %vm1327, %v2777, %v2761
        %v2795 = vsel %vm1327, %v2779, %v2763
        %s2796 = scalar_lea.vmem [#allocation11], 19
        %v2797 = vld [vmem:[%s2796] ss:$8 sm:$0x3]
        %v2799 = vlaneseq
        %v2800 = vshrl.u32 %v2799, 7
        %v2801 = vsub.s32 0, %v2800
        %v2802 = vrot.slane %v2797, %v2801
        %v2803 = vlaneseq
        %v2804 = vshrl.u32 %v2803, 7
        %v2805 = vsub.s32 1, %v2804
        %v2806 = vrot.slane %v2797, %v2805
        %v2809 = vmul.f32 %v2780, %v2802
        %v2810 = vmul.f32 %v2788, %v2806
        %v2811 = vmul.f32 %v2781, %v2802
        %v2812 = vmul.f32 %v2789, %v2806
        %v2813 = vmul.f32 %v2782, %v2802
        %v2814 = vmul.f32 %v2790, %v2806
        %v2815 = vmul.f32 %v2783, %v2802
        %v2816 = vmul.f32 %v2791, %v2806
        %v2817 = vmul.f32 %v2784, %v2802
        %v2818 = vmul.f32 %v2792, %v2806
        %v2819 = vmul.f32 %v2785, %v2802
        %v2820 = vmul.f32 %v2793, %v2806
        %v2821 = vmul.f32 %v2786, %v2802
        %v2822 = vmul.f32 %v2794, %v2806
        %v2823 = vmul.f32 %v2787, %v2802
        %v2824 = vmul.f32 %v2795, %v2806
        %v2825 = vadd.f32 %v2732, %v2809
        %v2826 = vadd.f32 %v2733, %v2810
        %v2827 = vadd.f32 %v2734, %v2811
        %v2828 = vadd.f32 %v2735, %v2812
        %v2829 = vadd.f32 %v2736, %v2813
        %v2830 = vadd.f32 %v2737, %v2814
        %v2831 = vadd.f32 %v2738, %v2815
        %v2832 = vadd.f32 %v2739, %v2816
        %v2833 = vadd.f32 %v2740, %v2817
        %v2834 = vadd.f32 %v2741, %v2818
        %v2835 = vadd.f32 %v2742, %v2819
        %v2836 = vadd.f32 %v2743, %v2820
        %v2837 = vadd.f32 %v2744, %v2821
        %v2838 = vadd.f32 %v2745, %v2822
        %v2839 = vadd.f32 %v2746, %v2823
        %v2840 = vadd.f32 %v2747, %v2824
        %s2841 = scalar_lea.vmem [#allocation11], 20
        %v2842 = vld [vmem:[%s2841] ss:$8 sm:$0x3]
        %v2844 = vlaneseq
        %v2845 = vshrl.u32 %v2844, 7
        %v2846 = vsub.s32 0, %v2845
        %v2847 = vrot.slane %v2842, %v2846
        %v2848 = vlaneseq
        %v2849 = vshrl.u32 %v2848, 7
        %v2850 = vsub.s32 1, %v2849
        %v2851 = vrot.slane %v2842, %v2850
        %v2854 = vmul.f32 %v1429, %v2847
        %v2855 = vmul.f32 %v1421, %v2851
        %v2856 = vmul.f32 %v1430, %v2847
        %v2857 = vmul.f32 %v1422, %v2851
        %v2858 = vmul.f32 %v1431, %v2847
        %v2859 = vmul.f32 %v1423, %v2851
        %v2860 = vmul.f32 %v1432, %v2847
        %v2861 = vmul.f32 %v1424, %v2851
        %v2862 = vmul.f32 %v1433, %v2847
        %v2863 = vmul.f32 %v1425, %v2851
        %v2864 = vmul.f32 %v1434, %v2847
        %v2865 = vmul.f32 %v1426, %v2851
        %v2866 = vmul.f32 %v1435, %v2847
        %v2867 = vmul.f32 %v1427, %v2851
        %v2868 = vmul.f32 %v1436, %v2847
        %v2869 = vmul.f32 %v1428, %v2851
        %v2870 = vadd.f32 %v2825, %v2854
        %v2871 = vadd.f32 %v2826, %v2855
        %v2872 = vadd.f32 %v2827, %v2856
        %v2873 = vadd.f32 %v2828, %v2857
        %v2874 = vadd.f32 %v2829, %v2858
        %v2875 = vadd.f32 %v2830, %v2859
        %v2876 = vadd.f32 %v2831, %v2860
        %v2877 = vadd.f32 %v2832, %v2861
        %v2878 = vadd.f32 %v2833, %v2862
        %v2879 = vadd.f32 %v2834, %v2863
        %v2880 = vadd.f32 %v2835, %v2864
        %v2881 = vadd.f32 %v2836, %v2865
        %v2882 = vadd.f32 %v2837, %v2866
        %v2883 = vadd.f32 %v2838, %v2867
        %v2884 = vadd.f32 %v2839, %v2868
        %v2885 = vadd.f32 %v2840, %v2869
        %s2886 = scalar_lea.vmem [#allocation11], 21
        %v2887 = vld [vmem:[%s2886] ss:$8 sm:$0x3]
        %v2889 = vlaneseq
        %v2890 = vshrl.u32 %v2889, 7
        %v2891 = vsub.s32 0, %v2890
        %v2892 = vrot.slane %v2887, %v2891
        %v2893 = vlaneseq
        %v2894 = vshrl.u32 %v2893, 7
        %v2895 = vsub.s32 1, %v2894
        %v2896 = vrot.slane %v2887, %v2895
        %v2899 = vmul.f32 %v946, %v2892
        %v2900 = vmul.f32 %v947, %v2896
        %v2901 = vmul.f32 %v948, %v2892
        %v2902 = vmul.f32 %v949, %v2896
        %v2903 = vmul.f32 %v950, %v2892
        %v2904 = vmul.f32 %v951, %v2896
        %v2905 = vmul.f32 %v952, %v2892
        %v2906 = vmul.f32 %v953, %v2896
        %v2907 = vmul.f32 %v954, %v2892
        %v2908 = vmul.f32 %v955, %v2896
        %v2909 = vmul.f32 %v956, %v2892
        %v2910 = vmul.f32 %v957, %v2896
        %v2911 = vmul.f32 %v958, %v2892
        %v2912 = vmul.f32 %v959, %v2896
        %v2913 = vmul.f32 %v960, %v2892
        %v2914 = vmul.f32 %v961, %v2896
        %v2915 = vadd.f32 %v2870, %v2899
        %v2916 = vadd.f32 %v2871, %v2900
        %v2917 = vadd.f32 %v2872, %v2901
        %v2918 = vadd.f32 %v2873, %v2902
        %v2919 = vadd.f32 %v2874, %v2903
        %v2920 = vadd.f32 %v2875, %v2904
        %v2921 = vadd.f32 %v2876, %v2905
        %v2922 = vadd.f32 %v2877, %v2906
        %v2923 = vadd.f32 %v2878, %v2907
        %v2924 = vadd.f32 %v2879, %v2908
        %v2925 = vadd.f32 %v2880, %v2909
        %v2926 = vadd.f32 %v2881, %v2910
        %v2927 = vadd.f32 %v2882, %v2911
        %v2928 = vadd.f32 %v2883, %v2912
        %v2929 = vadd.f32 %v2884, %v2913
        %v2930 = vadd.f32 %v2885, %v2914
        %s2931 = scalar_lea.vmem [#allocation11], 22
        %v2932 = vld [vmem:[%s2931] ss:$8 sm:$0x3]
        %v2934 = vlaneseq
        %v2935 = vshrl.u32 %v2934, 7
        %v2936 = vsub.s32 0, %v2935
        %v2937 = vrot.slane %v2932, %v2936
        %v2938 = vlaneseq
        %v2939 = vshrl.u32 %v2938, 7
        %v2940 = vsub.s32 1, %v2939
        %v2941 = vrot.slane %v2932, %v2940
        %v2944 = vmul.f32 %v1559, %v2937
        %v2945 = vmul.f32 %v1567, %v2941
        %v2946 = vmul.f32 %v1560, %v2937
        %v2947 = vmul.f32 %v1568, %v2941
        %v2948 = vmul.f32 %v1561, %v2937
        %v2949 = vmul.f32 %v1569, %v2941
        %v2950 = vmul.f32 %v1562, %v2937
        %v2951 = vmul.f32 %v1570, %v2941
        %v2952 = vmul.f32 %v1563, %v2937
        %v2953 = vmul.f32 %v1571, %v2941
        %v2954 = vmul.f32 %v1564, %v2937
        %v2955 = vmul.f32 %v1572, %v2941
        %v2956 = vmul.f32 %v1565, %v2937
        %v2957 = vmul.f32 %v1573, %v2941
        %v2958 = vmul.f32 %v1566, %v2937
        %v2959 = vmul.f32 %v1574, %v2941
        %v2960 = vadd.f32 %v2915, %v2944
        %v2961 = vadd.f32 %v2916, %v2945
        %v2962 = vadd.f32 %v2917, %v2946
        %v2963 = vadd.f32 %v2918, %v2947
        %v2964 = vadd.f32 %v2919, %v2948
        %v2965 = vadd.f32 %v2920, %v2949
        %v2966 = vadd.f32 %v2921, %v2950
        %v2967 = vadd.f32 %v2922, %v2951
        %v2968 = vadd.f32 %v2923, %v2952
        %v2969 = vadd.f32 %v2924, %v2953
        %v2970 = vadd.f32 %v2925, %v2954
        %v2971 = vadd.f32 %v2926, %v2955
        %v2972 = vadd.f32 %v2927, %v2956
        %v2973 = vadd.f32 %v2928, %v2957
        %v2974 = vadd.f32 %v2929, %v2958
        %v2975 = vadd.f32 %v2930, %v2959
        %v2976 = vld [vmem:[#allocation2 + $0x10] sm:$0xfe]
        %v2977 = vld [vmem:[#allocation2 + $0x18] sm:$0xfe]
        %v2978 = vld [vmem:[#allocation2 + $0x20] sm:$0xff]
        %v2979 = vld [vmem:[#allocation2 + $0x28] sm:$0xff]
        %v2980 = vld [vmem:[#allocation2 + $0x30] sm:$0x1]
        %v2981 = vld [vmem:[#allocation2 + $0x38] sm:$0x1]
        %v2982 = vld [vmem:[#allocation2 + $0x50] sm:$0xfe]
        %v2983 = vld [vmem:[#allocation2 + $0x58] sm:$0xfe]
        %v2984 = vld [vmem:[#allocation2 + $0x60] sm:$0xff]
        %v2985 = vld [vmem:[#allocation2 + $0x68] sm:$0xff]
        %v2986 = vld [vmem:[#allocation2 + $0x70] sm:$0x1]
        %v2987 = vld [vmem:[#allocation2 + $0x78] sm:$0x1]
        %v2988 = vld [vmem:[#allocation2 + $0x90] sm:$0xfe]
        %v2989 = vld [vmem:[#allocation2 + $0x98] sm:$0xfe]
        %v2990 = vld [vmem:[#allocation2 + $0xa0] sm:$0xff]
        %v2991 = vld [vmem:[#allocation2 + $0xa8] sm:$0xff]
        %v2992 = vld [vmem:[#allocation2 + $0xb0] sm:$0x1]
        %v2993 = vld [vmem:[#allocation2 + $0xb8] sm:$0x1]
        %v2994 = vld [vmem:[#allocation2 + $0xd0] sm:$0xfe]
        %v2995 = vld [vmem:[#allocation2 + $0xd8] sm:$0xfe]
        %v2996 = vld [vmem:[#allocation2 + $0xe0] sm:$0xff]
        %v2997 = vld [vmem:[#allocation2 + $0xe8] sm:$0xff]
        %v2998 = vld [vmem:[#allocation2 + $0xf0] sm:$0x1]
        %v2999 = vld [vmem:[#allocation2 + $0xf8] sm:$0x1]
        %v3024 = vrot.slane %v2976, 1
        %v3025 = vrot.slane %v2978, 1
        %v3026 = vsel %vm1668, %v3024, %v3025
        %v3027 = vrot.slane %v2977, 1
        %v3028 = vrot.slane %v2979, 1
        %v3029 = vsel %vm1668, %v3027, %v3028
        %v3030 = vrot.slane %v2980, 1
        %v3031 = vsel %vm1668, %v3025, %v3030
        %v3032 = vrot.slane %v2981, 1
        %v3033 = vsel %vm1668, %v3028, %v3032
        %v3034 = vrot.slane %v2982, 1
        %v3035 = vrot.slane %v2984, 1
        %v3036 = vsel %vm1668, %v3034, %v3035
        %v3037 = vrot.slane %v2983, 1
        %v3038 = vrot.slane %v2985, 1
        %v3039 = vsel %vm1668, %v3037, %v3038
        %v3040 = vrot.slane %v2986, 1
        %v3041 = vsel %vm1668, %v3035, %v3040
        %v3042 = vrot.slane %v2987, 1
        %v3043 = vsel %vm1668, %v3038, %v3042
        %v3044 = vrot.slane %v2988, 1
        %v3045 = vrot.slane %v2990, 1
        %v3046 = vsel %vm1668, %v3044, %v3045
        %v3047 = vrot.slane %v2989, 1
        %v3048 = vrot.slane %v2991, 1
        %v3049 = vsel %vm1668, %v3047, %v3048
        %v3050 = vrot.slane %v2992, 1
        %v3051 = vsel %vm1668, %v3045, %v3050
        %v3052 = vrot.slane %v2993, 1
        %v3053 = vsel %vm1668, %v3048, %v3052
        %v3054 = vrot.slane %v2994, 1
        %v3055 = vrot.slane %v2996, 1
        %v3056 = vsel %vm1668, %v3054, %v3055
        %v3057 = vrot.slane %v2995, 1
        %v3058 = vrot.slane %v2997, 1
        %v3059 = vsel %vm1668, %v3057, %v3058
        %v3060 = vrot.slane %v2998, 1
        %v3061 = vsel %vm1668, %v3055, %v3060
        %v3062 = vrot.slane %v2999, 1
        %v3063 = vsel %vm1668, %v3058, %v3062
        %3080 = vrot.lane.b32.xlu0 %v3026, 16
        %v3081 = vpop.permute.xlu0 %3080
        %3082 = vrot.lane.b32.xlu0 %v3031, 16
        %v3083 = vpop.permute.xlu0 %3082
        %3084 = vrot.lane.b32.xlu0 %v3036, 16
        %v3085 = vpop.permute.xlu0 %3084
        %3086 = vrot.lane.b32.xlu0 %v3041, 16
        %v3087 = vpop.permute.xlu0 %3086
        %3088 = vrot.lane.b32.xlu0 %v3046, 16
        %v3089 = vpop.permute.xlu0 %3088
        %3090 = vrot.lane.b32.xlu0 %v3051, 16
        %v3091 = vpop.permute.xlu0 %3090
        %3092 = vrot.lane.b32.xlu0 %v3056, 16
        %v3093 = vpop.permute.xlu0 %3092
        %3094 = vrot.lane.b32.xlu0 %v3061, 16
        %v3095 = vpop.permute.xlu0 %3094
        %3096 = vrot.lane.b32.xlu0 %v3029, 16
        %v3097 = vpop.permute.xlu0 %3096
        %3098 = vrot.lane.b32.xlu0 %v3033, 16
        %v3099 = vpop.permute.xlu0 %3098
        %3100 = vrot.lane.b32.xlu0 %v3039, 16
        %v3101 = vpop.permute.xlu0 %3100
        %3102 = vrot.lane.b32.xlu0 %v3043, 16
        %v3103 = vpop.permute.xlu0 %3102
        %3104 = vrot.lane.b32.xlu0 %v3049, 16
        %v3105 = vpop.permute.xlu0 %3104
        %3106 = vrot.lane.b32.xlu0 %v3053, 16
        %v3107 = vpop.permute.xlu0 %3106
        %3108 = vrot.lane.b32.xlu0 %v3059, 16
        %v3109 = vpop.permute.xlu0 %3108
        %3110 = vrot.lane.b32.xlu0 %v3063, 16
        %v3111 = vpop.permute.xlu0 %3110
        %v3112 = vsel %vm1117, %v3081, %v3097
        %v3113 = vsel %vm1117, %v3083, %v3099
        %v3114 = vsel %vm1117, %v3085, %v3101
        %v3115 = vsel %vm1117, %v3087, %v3103
        %v3116 = vsel %vm1117, %v3089, %v3105
        %v3117 = vsel %vm1117, %v3091, %v3107
        %v3118 = vsel %vm1117, %v3093, %v3109
        %v3119 = vsel %vm1117, %v3095, %v3111
        %v3120 = vsel %vm1117, %v3097, %v3081
        %v3121 = vsel %vm1117, %v3099, %v3083
        %v3122 = vsel %vm1117, %v3101, %v3085
        %v3123 = vsel %vm1117, %v3103, %v3087
        %v3124 = vsel %vm1117, %v3105, %v3089
        %v3125 = vsel %vm1117, %v3107, %v3091
        %v3126 = vsel %vm1117, %v3109, %v3093
        %v3127 = vsel %vm1117, %v3111, %v3095
        %s3128 = scalar_lea.vmem [#allocation11], 23
        %v3129 = vld [vmem:[%s3128] ss:$8 sm:$0x3]
        %v3131 = vlaneseq
        %v3132 = vshrl.u32 %v3131, 7
        %v3133 = vsub.s32 0, %v3132
        %v3134 = vrot.slane %v3129, %v3133
        %v3135 = vlaneseq
        %v3136 = vshrl.u32 %v3135, 7
        %v3137 = vsub.s32 1, %v3136
        %v3138 = vrot.slane %v3129, %v3137
        %v3141 = vmul.f32 %v3120, %v3134
        %v3142 = vmul.f32 %v3112, %v3138
        %v3143 = vmul.f32 %v3121, %v3134
        %v3144 = vmul.f32 %v3113, %v3138
        %v3145 = vmul.f32 %v3122, %v3134
        %v3146 = vmul.f32 %v3114, %v3138
        %v3147 = vmul.f32 %v3123, %v3134
        %v3148 = vmul.f32 %v3115, %v3138
        %v3149 = vmul.f32 %v3124, %v3134
        %v3150 = vmul.f32 %v3116, %v3138
        %v3151 = vmul.f32 %v3125, %v3134
        %v3152 = vmul.f32 %v3117, %v3138
        %v3153 = vmul.f32 %v3126, %v3134
        %v3154 = vmul.f32 %v3118, %v3138
        %v3155 = vmul.f32 %v3127, %v3134
        %v3156 = vmul.f32 %v3119, %v3138
        %v3157 = vadd.f32 %v2960, %v3141
        %v3158 = vadd.f32 %v2961, %v3142
        %v3159 = vadd.f32 %v2962, %v3143
        %v3160 = vadd.f32 %v2963, %v3144
        %v3161 = vadd.f32 %v2964, %v3145
        %v3162 = vadd.f32 %v2965, %v3146
        %v3163 = vadd.f32 %v2966, %v3147
        %v3164 = vadd.f32 %v2967, %v3148
        %v3165 = vadd.f32 %v2968, %v3149
        %v3166 = vadd.f32 %v2969, %v3150
        %v3167 = vadd.f32 %v2970, %v3151
        %v3168 = vadd.f32 %v2971, %v3152
        %v3169 = vadd.f32 %v2972, %v3153
        %v3170 = vadd.f32 %v2973, %v3154
        %v3171 = vadd.f32 %v2974, %v3155
        %v3172 = vadd.f32 %v2975, %v3156
        %s3173 = scalar_lea.vmem [#allocation11], 32
        %v3174 = vld [vmem:[%s3173] ss:$8 sm:$0x3]
        %v3176 = vlaneseq
        %v3177 = vshrl.u32 %v3176, 7
        %v3178 = vsub.s32 0, %v3177
        %v3179 = vrot.slane %v3174, %v3178
        %v3180 = vlaneseq
        %v3181 = vshrl.u32 %v3180, 7
        %v3182 = vsub.s32 1, %v3181
        %v3183 = vrot.slane %v3174, %v3182
        %v3186 = vmul.f32 %v2976, %v3179
        %v3187 = vmul.f32 %v2977, %v3183
        %v3188 = vmul.f32 %v2978, %v3179
        %v3189 = vmul.f32 %v2979, %v3183
        %v3190 = vmul.f32 %v2980, %v3179
        %v3191 = vmul.f32 %v2981, %v3183
        %v3192 = vmul.f32 %v2982, %v3179
        %v3193 = vmul.f32 %v2983, %v3183
        %v3194 = vmul.f32 %v2984, %v3179
        %v3195 = vmul.f32 %v2985, %v3183
        %v3196 = vmul.f32 %v2986, %v3179
        %v3197 = vmul.f32 %v2987, %v3183
        %v3198 = vmul.f32 %v2988, %v3179
        %v3199 = vmul.f32 %v2989, %v3183
        %v3200 = vmul.f32 %v2990, %v3179
        %v3201 = vmul.f32 %v2991, %v3183
        %v3202 = vmul.f32 %v2992, %v3179
        %v3203 = vmul.f32 %v2993, %v3183
        %v3204 = vmul.f32 %v2994, %v3179
        %v3205 = vmul.f32 %v2995, %v3183
        %v3206 = vmul.f32 %v2996, %v3179
        %v3207 = vmul.f32 %v2997, %v3183
        %v3208 = vmul.f32 %v2998, %v3179
        %v3209 = vmul.f32 %v2999, %v3183
        %v3234 = vrot.slane %v3186, 1
        %v3235 = vrot.slane %v3188, 1
        %v3236 = vsel %vm1668, %v3234, %v3235
        %v3237 = vrot.slane %v3187, 1
        %v3238 = vrot.slane %v3189, 1
        %v3239 = vsel %vm1668, %v3237, %v3238
        %v3240 = vrot.slane %v3190, 1
        %v3241 = vsel %vm1668, %v3235, %v3240
        %v3242 = vrot.slane %v3191, 1
        %v3243 = vsel %vm1668, %v3238, %v3242
        %v3244 = vrot.slane %v3192, 1
        %v3245 = vrot.slane %v3194, 1
        %v3246 = vsel %vm1668, %v3244, %v3245
        %v3247 = vrot.slane %v3193, 1
        %v3248 = vrot.slane %v3195, 1
        %v3249 = vsel %vm1668, %v3247, %v3248
        %v3250 = vrot.slane %v3196, 1
        %v3251 = vsel %vm1668, %v3245, %v3250
        %v3252 = vrot.slane %v3197, 1
        %v3253 = vsel %vm1668, %v3248, %v3252
        %v3254 = vrot.slane %v3198, 1
        %v3255 = vrot.slane %v3200, 1
        %v3256 = vsel %vm1668, %v3254, %v3255
        %v3257 = vrot.slane %v3199, 1
        %v3258 = vrot.slane %v3201, 1
        %v3259 = vsel %vm1668, %v3257, %v3258
        %v3260 = vrot.slane %v3202, 1
        %v3261 = vsel %vm1668, %v3255, %v3260
        %v3262 = vrot.slane %v3203, 1
        %v3263 = vsel %vm1668, %v3258, %v3262
        %v3264 = vrot.slane %v3204, 1
        %v3265 = vrot.slane %v3206, 1
        %v3266 = vsel %vm1668, %v3264, %v3265
        %v3267 = vrot.slane %v3205, 1
        %v3268 = vrot.slane %v3207, 1
        %v3269 = vsel %vm1668, %v3267, %v3268
        %v3270 = vrot.slane %v3208, 1
        %v3271 = vsel %vm1668, %v3265, %v3270
        %v3272 = vrot.slane %v3209, 1
        %v3273 = vsel %vm1668, %v3268, %v3272
        %v3290 = vadd.f32 %v3157, %v3236
        %v3291 = vadd.f32 %v3158, %v3239
        %v3292 = vadd.f32 %v3159, %v3241
        %v3293 = vadd.f32 %v3160, %v3243
        %v3294 = vadd.f32 %v3161, %v3246
        %v3295 = vadd.f32 %v3162, %v3249
        %v3296 = vadd.f32 %v3163, %v3251
        %v3297 = vadd.f32 %v3164, %v3253
        %v3298 = vadd.f32 %v3165, %v3256
        %v3299 = vadd.f32 %v3166, %v3259
        %v3300 = vadd.f32 %v3167, %v3261
        %v3301 = vadd.f32 %v3168, %v3263
        %v3302 = vadd.f32 %v3169, %v3266
        %v3303 = vadd.f32 %v3170, %v3269
        %v3304 = vadd.f32 %v3171, %v3271
        %v3305 = vadd.f32 %v3172, %v3273
        %3306 = vrot.lane.b32.xlu0 %v3026, 112
        %v3307 = vpop.permute.xlu0 %3306
        %3308 = vrot.lane.b32.xlu0 %v3031, 112
        %v3309 = vpop.permute.xlu0 %3308
        %3310 = vrot.lane.b32.xlu0 %v3036, 112
        %v3311 = vpop.permute.xlu0 %3310
        %3312 = vrot.lane.b32.xlu0 %v3041, 112
        %v3313 = vpop.permute.xlu0 %3312
        %3314 = vrot.lane.b32.xlu0 %v3046, 112
        %v3315 = vpop.permute.xlu0 %3314
        %3316 = vrot.lane.b32.xlu0 %v3051, 112
        %v3317 = vpop.permute.xlu0 %3316
        %3318 = vrot.lane.b32.xlu0 %v3056, 112
        %v3319 = vpop.permute.xlu0 %3318
        %3320 = vrot.lane.b32.xlu0 %v3061, 112
        %v3321 = vpop.permute.xlu0 %3320
        %3322 = vrot.lane.b32.xlu0 %v3029, 112
        %v3323 = vpop.permute.xlu0 %3322
        %3324 = vrot.lane.b32.xlu0 %v3033, 112
        %v3325 = vpop.permute.xlu0 %3324
        %3326 = vrot.lane.b32.xlu0 %v3039, 112
        %v3327 = vpop.permute.xlu0 %3326
        %3328 = vrot.lane.b32.xlu0 %v3043, 112
        %v3329 = vpop.permute.xlu0 %3328
        %3330 = vrot.lane.b32.xlu0 %v3049, 112
        %v3331 = vpop.permute.xlu0 %3330
        %3332 = vrot.lane.b32.xlu0 %v3053, 112
        %v3333 = vpop.permute.xlu0 %3332
        %3334 = vrot.lane.b32.xlu0 %v3059, 112
        %v3335 = vpop.permute.xlu0 %3334
        %3336 = vrot.lane.b32.xlu0 %v3063, 112
        %v3337 = vpop.permute.xlu0 %3336
        %v3338 = vsel %vm1327, %v3307, %v3323
        %v3339 = vsel %vm1327, %v3309, %v3325
        %v3340 = vsel %vm1327, %v3311, %v3327
        %v3341 = vsel %vm1327, %v3313, %v3329
        %v3342 = vsel %vm1327, %v3315, %v3331
        %v3343 = vsel %vm1327, %v3317, %v3333
        %v3344 = vsel %vm1327, %v3319, %v3335
        %v3345 = vsel %vm1327, %v3321, %v3337
        %v3346 = vsel %vm1327, %v3323, %v3307
        %v3347 = vsel %vm1327, %v3325, %v3309
        %v3348 = vsel %vm1327, %v3327, %v3311
        %v3349 = vsel %vm1327, %v3329, %v3313
        %v3350 = vsel %vm1327, %v3331, %v3315
        %v3351 = vsel %vm1327, %v3333, %v3317
        %v3352 = vsel %vm1327, %v3335, %v3319
        %v3353 = vsel %vm1327, %v3337, %v3321
        %s3354 = scalar_lea.vmem [#allocation11], 33
        %v3355 = vld [vmem:[%s3354] ss:$8 sm:$0x3]
        %v3357 = vlaneseq
        %v3358 = vshrl.u32 %v3357, 7
        %v3359 = vsub.s32 0, %v3358
        %v3360 = vrot.slane %v3355, %v3359
        %v3361 = vlaneseq
        %v3362 = vshrl.u32 %v3361, 7
        %v3363 = vsub.s32 1, %v3362
        %v3364 = vrot.slane %v3355, %v3363
        %v3367 = vmul.f32 %v3338, %v3360
        %v3368 = vmul.f32 %v3346, %v3364
        %v3369 = vmul.f32 %v3339, %v3360
        %v3370 = vmul.f32 %v3347, %v3364
        %v3371 = vmul.f32 %v3340, %v3360
        %v3372 = vmul.f32 %v3348, %v3364
        %v3373 = vmul.f32 %v3341, %v3360
        %v3374 = vmul.f32 %v3349, %v3364
        %v3375 = vmul.f32 %v3342, %v3360
        %v3376 = vmul.f32 %v3350, %v3364
        %v3377 = vmul.f32 %v3343, %v3360
        %v3378 = vmul.f32 %v3351, %v3364
        %v3379 = vmul.f32 %v3344, %v3360
        %v3380 = vmul.f32 %v3352, %v3364
        %v3381 = vmul.f32 %v3345, %v3360
        %v3382 = vmul.f32 %v3353, %v3364
        %v3383 = vadd.f32 %v3290, %v3367
        %v3384 = vadd.f32 %v3291, %v3368
        %v3385 = vadd.f32 %v3292, %v3369
        %v3386 = vadd.f32 %v3293, %v3370
        %v3387 = vadd.f32 %v3294, %v3371
        %v3388 = vadd.f32 %v3295, %v3372
        %v3389 = vadd.f32 %v3296, %v3373
        %v3390 = vadd.f32 %v3297, %v3374
        %v3391 = vadd.f32 %v3298, %v3375
        %v3392 = vadd.f32 %v3299, %v3376
        %v3393 = vadd.f32 %v3300, %v3377
        %v3394 = vadd.f32 %v3301, %v3378
        %v3395 = vadd.f32 %v3302, %v3379
        %v3396 = vadd.f32 %v3303, %v3380
        %v3397 = vadd.f32 %v3304, %v3381
        %v3398 = vadd.f32 %v3305, %v3382
        %s3399 = scalar_lea.vmem %s5, 1
        %v3400 = vld [vmem:[%s3399] ss:$4 sm:$0x3]
        %s3401 = scalar_lea.vmem [#allocation12], 1
        %v3402 = vld [vmem:[%s3401] ss:$4 sm:$0x3]
        %v3403 = vadd.f32 %v3383, %v3384
        %3404 = vadd.xlane.f32.xlu0 %v3403
        %v3405 = vpop.xlane.xlu0 %3404
        %v3406 = vadd.f32 %v3385, %v3386
        %3407 = vadd.xlane.f32.xlu0 %v3406
        %v3408 = vpop.xlane.xlu0 %3407
        %v3409 = vadd.f32 %v3387, %v3388
        %3410 = vadd.xlane.f32.xlu0 %v3409
        %v3411 = vpop.xlane.xlu0 %3410
        %v3412 = vadd.f32 %v3389, %v3390
        %3413 = vadd.xlane.f32.xlu0 %v3412
        %v3414 = vpop.xlane.xlu0 %3413
        %v3415 = vadd.f32 %v3391, %v3392
        %3416 = vadd.xlane.f32.xlu0 %v3415
        %v3417 = vpop.xlane.xlu0 %3416
        %v3418 = vadd.f32 %v3393, %v3394
        %3419 = vadd.xlane.f32.xlu0 %v3418
        %v3420 = vpop.xlane.xlu0 %3419
        %v3421 = vadd.f32 %v3395, %v3396
        %3422 = vadd.xlane.f32.xlu0 %v3421
        %v3423 = vpop.xlane.xlu0 %3422
        %v3424 = vadd.f32 %v3397, %v3398
        %3425 = vadd.xlane.f32.xlu0 %v3424
        %v3426 = vpop.xlane.xlu0 %3425
        %v3427 = vadd.f32 %v3405, %v3408
        %v3428 = vrot.slane %v3427, 4
        %v3429 = vadd.f32 %v3427, %v3428
        %v3430 = vrot.slane %v3429, 2
        %v3431 = vadd.f32 %v3429, %v3430
        %v3432 = vrot.slane %v3431, 1
        %v3433 = vadd.f32 %v3431, %v3432
        %v3434 = vadd.f32 %v3411, %v3414
        %v3435 = vrot.slane %v3434, 4
        %v3436 = vadd.f32 %v3434, %v3435
        %v3437 = vrot.slane %v3436, 2
        %v3438 = vadd.f32 %v3436, %v3437
        %v3439 = vrot.slane %v3438, 1
        %v3440 = vadd.f32 %v3438, %v3439
        %v3441 = vadd.f32 %v3417, %v3420
        %v3442 = vrot.slane %v3441, 4
        %v3443 = vadd.f32 %v3441, %v3442
        %v3444 = vrot.slane %v3443, 2
        %v3445 = vadd.f32 %v3443, %v3444
        %v3446 = vrot.slane %v3445, 1
        %v3447 = vadd.f32 %v3445, %v3446
        %v3448 = vadd.f32 %v3423, %v3426
        %v3449 = vrot.slane %v3448, 4
        %v3450 = vadd.f32 %v3448, %v3449
        %v3451 = vrot.slane %v3450, 2
        %v3452 = vadd.f32 %v3450, %v3451
        %v3453 = vrot.slane %v3452, 1
        %v3454 = vadd.f32 %v3452, %v3453
        %v3455 = vmul.f32 %v3383, %v3383
        %v3456 = vmul.f32 %v3384, %v3384
        %v3457 = vmul.f32 %v3385, %v3385
        %v3458 = vmul.f32 %v3386, %v3386
        %v3459 = vmul.f32 %v3387, %v3387
        %v3460 = vmul.f32 %v3388, %v3388
        %v3461 = vmul.f32 %v3389, %v3389
        %v3462 = vmul.f32 %v3390, %v3390
        %v3463 = vmul.f32 %v3391, %v3391
        %v3464 = vmul.f32 %v3392, %v3392
        %v3465 = vmul.f32 %v3393, %v3393
        %v3466 = vmul.f32 %v3394, %v3394
        %v3467 = vmul.f32 %v3395, %v3395
        %v3468 = vmul.f32 %v3396, %v3396
        %v3469 = vmul.f32 %v3397, %v3397
        %v3470 = vmul.f32 %v3398, %v3398
        %v3471 = vadd.f32 %v3455, %v3456
        %3472 = vadd.xlane.f32.xlu0 %v3471
        %v3473 = vpop.xlane.xlu0 %3472
        %v3474 = vadd.f32 %v3457, %v3458
        %3475 = vadd.xlane.f32.xlu0 %v3474
        %v3476 = vpop.xlane.xlu0 %3475
        %v3477 = vadd.f32 %v3459, %v3460
        %3478 = vadd.xlane.f32.xlu0 %v3477
        %v3479 = vpop.xlane.xlu0 %3478
        %v3480 = vadd.f32 %v3461, %v3462
        %3481 = vadd.xlane.f32.xlu0 %v3480
        %v3482 = vpop.xlane.xlu0 %3481
        %v3483 = vadd.f32 %v3463, %v3464
        %3484 = vadd.xlane.f32.xlu0 %v3483
        %v3485 = vpop.xlane.xlu0 %3484
        %v3486 = vadd.f32 %v3465, %v3466
        %3487 = vadd.xlane.f32.xlu0 %v3486
        %v3488 = vpop.xlane.xlu0 %3487
        %v3489 = vadd.f32 %v3467, %v3468
        %3490 = vadd.xlane.f32.xlu0 %v3489
        %v3491 = vpop.xlane.xlu0 %3490
        %v3492 = vadd.f32 %v3469, %v3470
        %3493 = vadd.xlane.f32.xlu0 %v3492
        %v3494 = vpop.xlane.xlu0 %3493
        %v3495 = vadd.f32 %v3473, %v3476
        %v3496 = vrot.slane %v3495, 4
        %v3497 = vadd.f32 %v3495, %v3496
        %v3498 = vrot.slane %v3497, 2
        %v3499 = vadd.f32 %v3497, %v3498
        %v3500 = vrot.slane %v3499, 1
        %v3501 = vadd.f32 %v3499, %v3500
        %v3502 = vadd.f32 %v3479, %v3482
        %v3503 = vrot.slane %v3502, 4
        %v3504 = vadd.f32 %v3502, %v3503
        %v3505 = vrot.slane %v3504, 2
        %v3506 = vadd.f32 %v3504, %v3505
        %v3507 = vrot.slane %v3506, 1
        %v3508 = vadd.f32 %v3506, %v3507
        %v3509 = vadd.f32 %v3485, %v3488
        %v3510 = vrot.slane %v3509, 4
        %v3511 = vadd.f32 %v3509, %v3510
        %v3512 = vrot.slane %v3511, 2
        %v3513 = vadd.f32 %v3511, %v3512
        %v3514 = vrot.slane %v3513, 1
        %v3515 = vadd.f32 %v3513, %v3514
        %v3516 = vadd.f32 %v3491, %v3494
        %v3517 = vrot.slane %v3516, 4
        %v3518 = vadd.f32 %v3516, %v3517
        %v3519 = vrot.slane %v3518, 2
        %v3520 = vadd.f32 %v3518, %v3519
        %v3521 = vrot.slane %v3520, 1
        %v3522 = vadd.f32 %v3520, %v3521
        %v3523 = vmul.f32 %v3433, 0.00024414063
        %v3524 = vmul.f32 %v3440, 0.00024414063
        %v3525 = vmul.f32 %v3447, 0.00024414063
        %v3526 = vmul.f32 %v3454, 0.00024414063
        %v3527 = vmul.f32 %v3501, 0.00024414063
        %v3528 = vmul.f32 %v3508, 0.00024414063
        %v3529 = vmul.f32 %v3515, 0.00024414063
        %v3530 = vmul.f32 %v3522, 0.00024414063
        %v3531 = vmul.f32 %v3523, %v3523
        %v3532 = vmul.f32 %v3524, %v3524
        %v3533 = vmul.f32 %v3525, %v3525
        %v3534 = vmul.f32 %v3526, %v3526
        %v3535 = vsub.f32 %v3527, %v3531
        %v3536 = vsub.f32 %v3528, %v3532
        %v3537 = vsub.f32 %v3529, %v3533
        %v3538 = vsub.f32 %v3530, %v3534
        %v3539 = vadd.f32 %v3535, 1e-05
        %v3540 = vadd.f32 %v3536, 1e-05
        %v3541 = vadd.f32 %v3537, 1e-05
        %v3542 = vadd.f32 %v3538, 1e-05
        %v3543 = vrsqrt.pop %v3539
        %v3544 = vrsqrt.pop %v3540
        %v3545 = vrsqrt.pop %v3541
        %v3546 = vrsqrt.pop %v3542
        %v3547 = vmul.f32 %v3400, %v3543
        %v3548 = vmul.f32 %v3400, %v3544
        %v3549 = vmul.f32 %v3400, %v3545
        %v3550 = vmul.f32 %v3400, %v3546
        %v3551 = vmul.f32 %v3523, %v3547
        %v3552 = vmul.f32 %v3524, %v3548
        %v3553 = vmul.f32 %v3525, %v3549
        %v3554 = vmul.f32 %v3526, %v3550
        %v3555 = vsub.f32 %v3402, %v3551
        %v3556 = vsub.f32 %v3402, %v3552
        %v3557 = vsub.f32 %v3402, %v3553
        %v3558 = vsub.f32 %v3402, %v3554
        %v3563 = vlaneseq
        %v3564 = vshrl.u32 %v3563, 7
        %v3565 = vsub.s32 0, %v3564
        %v3566 = vrot.slane %v3547, %v3565
        %v3567 = vlaneseq
        %v3568 = vshrl.u32 %v3567, 7
        %v3569 = vsub.s32 1, %v3568
        %v3570 = vrot.slane %v3547, %v3569
        %v3571 = vlaneseq
        %v3572 = vshrl.u32 %v3571, 7
        %v3573 = vsub.s32 0, %v3572
        %v3574 = vrot.slane %v3548, %v3573
        %v3575 = vlaneseq
        %v3576 = vshrl.u32 %v3575, 7
        %v3577 = vsub.s32 1, %v3576
        %v3578 = vrot.slane %v3548, %v3577
        %v3579 = vlaneseq
        %v3580 = vshrl.u32 %v3579, 7
        %v3581 = vsub.s32 0, %v3580
        %v3582 = vrot.slane %v3549, %v3581
        %v3583 = vlaneseq
        %v3584 = vshrl.u32 %v3583, 7
        %v3585 = vsub.s32 1, %v3584
        %v3586 = vrot.slane %v3549, %v3585
        %v3587 = vlaneseq
        %v3588 = vshrl.u32 %v3587, 7
        %v3589 = vsub.s32 0, %v3588
        %v3590 = vrot.slane %v3550, %v3589
        %v3591 = vlaneseq
        %v3592 = vshrl.u32 %v3591, 7
        %v3593 = vsub.s32 1, %v3592
        %v3594 = vrot.slane %v3550, %v3593
        %v3603 = vmul.f32 %v3383, %v3566
        %v3604 = vmul.f32 %v3384, %v3570
        %v3605 = vmul.f32 %v3385, %v3566
        %v3606 = vmul.f32 %v3386, %v3570
        %v3607 = vmul.f32 %v3387, %v3574
        %v3608 = vmul.f32 %v3388, %v3578
        %v3609 = vmul.f32 %v3389, %v3574
        %v3610 = vmul.f32 %v3390, %v3578
        %v3611 = vmul.f32 %v3391, %v3582
        %v3612 = vmul.f32 %v3392, %v3586
        %v3613 = vmul.f32 %v3393, %v3582
        %v3614 = vmul.f32 %v3394, %v3586
        %v3615 = vmul.f32 %v3395, %v3590
        %v3616 = vmul.f32 %v3396, %v3594
        %v3617 = vmul.f32 %v3397, %v3590
        %v3618 = vmul.f32 %v3398, %v3594
        %v3623 = vlaneseq
        %v3624 = vshrl.u32 %v3623, 7
        %v3625 = vsub.s32 0, %v3624
        %v3626 = vrot.slane %v3555, %v3625
        %v3627 = vlaneseq
        %v3628 = vshrl.u32 %v3627, 7
        %v3629 = vsub.s32 1, %v3628
        %v3630 = vrot.slane %v3555, %v3629
        %v3631 = vlaneseq
        %v3632 = vshrl.u32 %v3631, 7
        %v3633 = vsub.s32 0, %v3632
        %v3634 = vrot.slane %v3556, %v3633
        %v3635 = vlaneseq
        %v3636 = vshrl.u32 %v3635, 7
        %v3637 = vsub.s32 1, %v3636
        %v3638 = vrot.slane %v3556, %v3637
        %v3639 = vlaneseq
        %v3640 = vshrl.u32 %v3639, 7
        %v3641 = vsub.s32 0, %v3640
        %v3642 = vrot.slane %v3557, %v3641
        %v3643 = vlaneseq
        %v3644 = vshrl.u32 %v3643, 7
        %v3645 = vsub.s32 1, %v3644
        %v3646 = vrot.slane %v3557, %v3645
        %v3647 = vlaneseq
        %v3648 = vshrl.u32 %v3647, 7
        %v3649 = vsub.s32 0, %v3648
        %v3650 = vrot.slane %v3558, %v3649
        %v3651 = vlaneseq
        %v3652 = vshrl.u32 %v3651, 7
        %v3653 = vsub.s32 1, %v3652
        %v3654 = vrot.slane %v3558, %v3653
        %v3663 = vadd.f32 %v3603, %v3626
        %v3664 = vadd.f32 %v3604, %v3630
        %v3665 = vadd.f32 %v3605, %v3626
        %v3666 = vadd.f32 %v3606, %v3630
        %v3667 = vadd.f32 %v3607, %v3634
        %v3668 = vadd.f32 %v3608, %v3638
        %v3669 = vadd.f32 %v3609, %v3634
        %v3670 = vadd.f32 %v3610, %v3638
        %v3671 = vadd.f32 %v3611, %v3642
        %v3672 = vadd.f32 %v3612, %v3646
        %v3673 = vadd.f32 %v3613, %v3642
        %v3674 = vadd.f32 %v3614, %v3646
        %v3675 = vadd.f32 %v3615, %v3650
        %v3676 = vadd.f32 %v3616, %v3654
        %v3677 = vadd.f32 %v3617, %v3650
        %v3678 = vadd.f32 %v3618, %v3654
        %3679 = vst [vmem:[#allocation2 + $0x10] sm:$0xff] %v3663
        %3680 = vst [vmem:[#allocation2 + $0x18] sm:$0xff] %v3664
        %3681 = vst [vmem:[#allocation2 + $0x20] sm:$0xff] %v3665
        %3682 = vst [vmem:[#allocation2 + $0x28] sm:$0xff] %v3666
        %3683 = vst [vmem:[#allocation2 + $0x50] sm:$0xff] %v3667
        %3684 = vst [vmem:[#allocation2 + $0x58] sm:$0xff] %v3668
        %3685 = vst [vmem:[#allocation2 + $0x60] sm:$0xff] %v3669
        %3686 = vst [vmem:[#allocation2 + $0x68] sm:$0xff] %v3670
        %3687 = vst [vmem:[#allocation2 + $0x90] sm:$0xff] %v3671
        %3688 = vst [vmem:[#allocation2 + $0x98] sm:$0xff] %v3672
        %3689 = vst [vmem:[#allocation2 + $0xa0] sm:$0xff] %v3673
        %3690 = vst [vmem:[#allocation2 + $0xa8] sm:$0xff] %v3674
        %3691 = vst [vmem:[#allocation2 + $0xd0] sm:$0xff] %v3675
        %3692 = vst [vmem:[#allocation2 + $0xd8] sm:$0xff] %v3676
        %3693 = vst [vmem:[#allocation2 + $0xe0] sm:$0xff] %v3677
        %3694 = vst [vmem:[#allocation2 + $0xe8] sm:$0xff] %v3678
        %v3695 = vld [vmem:[#allocation2] sm:$0x80]
        %v3696 = vld [vmem:[#allocation2 + $0x8] sm:$0x80]
        %v3697 = vld [vmem:[#allocation2 + $0x10] sm:$0xff]
        %v3698 = vld [vmem:[#allocation2 + $0x18] sm:$0xff]
        %v3699 = vld [vmem:[#allocation2 + $0x20] sm:$0x7f]
        %v3700 = vld [vmem:[#allocation2 + $0x28] sm:$0x7f]
        %v3701 = vld [vmem:[#allocation2 + $0x40] sm:$0x80]
        %v3702 = vld [vmem:[#allocation2 + $0x48] sm:$0x80]
        %v3703 = vld [vmem:[#allocation2 + $0x50] sm:$0xff]
        %v3704 = vld [vmem:[#allocation2 + $0x58] sm:$0xff]
        %v3705 = vld [vmem:[#allocation2 + $0x60] sm:$0x7f]
        %v3706 = vld [vmem:[#allocation2 + $0x68] sm:$0x7f]
        %v3707 = vld [vmem:[#allocation2 + $0x80] sm:$0x80]
        %v3708 = vld [vmem:[#allocation2 + $0x88] sm:$0x80]
        %v3709 = vld [vmem:[#allocation2 + $0x90] sm:$0xff]
        %v3710 = vld [vmem:[#allocation2 + $0x98] sm:$0xff]
        %v3711 = vld [vmem:[#allocation2 + $0xa0] sm:$0x7f]
        %v3712 = vld [vmem:[#allocation2 + $0xa8] sm:$0x7f]
        %v3713 = vld [vmem:[#allocation2 + $0xc0] sm:$0x80]
        %v3714 = vld [vmem:[#allocation2 + $0xc8] sm:$0x80]
        %v3715 = vld [vmem:[#allocation2 + $0xd0] sm:$0xff]
        %v3716 = vld [vmem:[#allocation2 + $0xd8] sm:$0xff]
        %v3717 = vld [vmem:[#allocation2 + $0xe0] sm:$0x7f]
        %v3718 = vld [vmem:[#allocation2 + $0xe8] sm:$0x7f]
        %v3743 = vrot.slane %v3695, 7
        %v3744 = vrot.slane %v3697, 7
        %v3745 = vsel %vm1026, %v3743, %v3744
        %v3746 = vrot.slane %v3696, 7
        %v3747 = vrot.slane %v3698, 7
        %v3748 = vsel %vm1026, %v3746, %v3747
        %v3749 = vrot.slane %v3699, 7
        %v3750 = vsel %vm1026, %v3744, %v3749
        %v3751 = vrot.slane %v3700, 7
        %v3752 = vsel %vm1026, %v3747, %v3751
        %v3753 = vrot.slane %v3701, 7
        %v3754 = vrot.slane %v3703, 7
        %v3755 = vsel %vm1026, %v3753, %v3754
        %v3756 = vrot.slane %v3702, 7
        %v3757 = vrot.slane %v3704, 7
        %v3758 = vsel %vm1026, %v3756, %v3757
        %v3759 = vrot.slane %v3705, 7
        %v3760 = vsel %vm1026, %v3754, %v3759
        %v3761 = vrot.slane %v3706, 7
        %v3762 = vsel %vm1026, %v3757, %v3761
        %v3763 = vrot.slane %v3707, 7
        %v3764 = vrot.slane %v3709, 7
        %v3765 = vsel %vm1026, %v3763, %v3764
        %v3766 = vrot.slane %v3708, 7
        %v3767 = vrot.slane %v3710, 7
        %v3768 = vsel %vm1026, %v3766, %v3767
        %v3769 = vrot.slane %v3711, 7
        %v3770 = vsel %vm1026, %v3764, %v3769
        %v3771 = vrot.slane %v3712, 7
        %v3772 = vsel %vm1026, %v3767, %v3771
        %v3773 = vrot.slane %v3713, 7
        %v3774 = vrot.slane %v3715, 7
        %v3775 = vsel %vm1026, %v3773, %v3774
        %v3776 = vrot.slane %v3714, 7
        %v3777 = vrot.slane %v3716, 7
        %v3778 = vsel %vm1026, %v3776, %v3777
        %v3779 = vrot.slane %v3717, 7
        %v3780 = vsel %vm1026, %v3774, %v3779
        %v3781 = vrot.slane %v3718, 7
        %v3782 = vsel %vm1026, %v3777, %v3781
        %3799 = vrot.lane.b32.xlu0 %v3745, 16
        %v3800 = vpop.permute.xlu0 %3799
        %3801 = vrot.lane.b32.xlu0 %v3750, 16
        %v3802 = vpop.permute.xlu0 %3801
        %3803 = vrot.lane.b32.xlu0 %v3755, 16
        %v3804 = vpop.permute.xlu0 %3803
        %3805 = vrot.lane.b32.xlu0 %v3760, 16
        %v3806 = vpop.permute.xlu0 %3805
        %3807 = vrot.lane.b32.xlu0 %v3765, 16
        %v3808 = vpop.permute.xlu0 %3807
        %3809 = vrot.lane.b32.xlu0 %v3770, 16
        %v3810 = vpop.permute.xlu0 %3809
        %3811 = vrot.lane.b32.xlu0 %v3775, 16
        %v3812 = vpop.permute.xlu0 %3811
        %3813 = vrot.lane.b32.xlu0 %v3780, 16
        %v3814 = vpop.permute.xlu0 %3813
        %3815 = vrot.lane.b32.xlu0 %v3748, 16
        %v3816 = vpop.permute.xlu0 %3815
        %3817 = vrot.lane.b32.xlu0 %v3752, 16
        %v3818 = vpop.permute.xlu0 %3817
        %3819 = vrot.lane.b32.xlu0 %v3758, 16
        %v3820 = vpop.permute.xlu0 %3819
        %3821 = vrot.lane.b32.xlu0 %v3762, 16
        %v3822 = vpop.permute.xlu0 %3821
        %3823 = vrot.lane.b32.xlu0 %v3768, 16
        %v3824 = vpop.permute.xlu0 %3823
        %3825 = vrot.lane.b32.xlu0 %v3772, 16
        %v3826 = vpop.permute.xlu0 %3825
        %3827 = vrot.lane.b32.xlu0 %v3778, 16
        %v3828 = vpop.permute.xlu0 %3827
        %3829 = vrot.lane.b32.xlu0 %v3782, 16
        %v3830 = vpop.permute.xlu0 %3829
        %v3831 = vsel %vm1117, %v3800, %v3816
        %v3832 = vsel %vm1117, %v3802, %v3818
        %v3833 = vsel %vm1117, %v3804, %v3820
        %v3834 = vsel %vm1117, %v3806, %v3822
        %v3835 = vsel %vm1117, %v3808, %v3824
        %v3836 = vsel %vm1117, %v3810, %v3826
        %v3837 = vsel %vm1117, %v3812, %v3828
        %v3838 = vsel %vm1117, %v3814, %v3830
        %v3839 = vsel %vm1117, %v3816, %v3800
        %v3840 = vsel %vm1117, %v3818, %v3802
        %v3841 = vsel %vm1117, %v3820, %v3804
        %v3842 = vsel %vm1117, %v3822, %v3806
        %v3843 = vsel %vm1117, %v3824, %v3808
        %v3844 = vsel %vm1117, %v3826, %v3810
        %v3845 = vsel %vm1117, %v3828, %v3812
        %v3846 = vsel %vm1117, %v3830, %v3814
        %s3847 = scalar_lea.vmem [#allocation11], 34
        %v3848 = vld [vmem:[%s3847] ss:$8 sm:$0x3]
        %v3850 = vlaneseq
        %v3851 = vshrl.u32 %v3850, 7
        %v3852 = vsub.s32 0, %v3851
        %v3853 = vrot.slane %v3848, %v3852
        %v3854 = vlaneseq
        %v3855 = vshrl.u32 %v3854, 7
        %v3856 = vsub.s32 1, %v3855
        %v3857 = vrot.slane %v3848, %v3856
        %v3860 = vmul.f32 %v3839, %v3853
        %v3861 = vmul.f32 %v3831, %v3857
        %v3862 = vmul.f32 %v3840, %v3853
        %v3863 = vmul.f32 %v3832, %v3857
        %v3864 = vmul.f32 %v3841, %v3853
        %v3865 = vmul.f32 %v3833, %v3857
        %v3866 = vmul.f32 %v3842, %v3853
        %v3867 = vmul.f32 %v3834, %v3857
        %v3868 = vmul.f32 %v3843, %v3853
        %v3869 = vmul.f32 %v3835, %v3857
        %v3870 = vmul.f32 %v3844, %v3853
        %v3871 = vmul.f32 %v3836, %v3857
        %v3872 = vmul.f32 %v3845, %v3853
        %v3873 = vmul.f32 %v3837, %v3857
        %v3874 = vmul.f32 %v3846, %v3853
        %v3875 = vmul.f32 %v3838, %v3857
        %s3876 = scalar_lea.vmem [#allocation11], 35
        %v3877 = vld [vmem:[%s3876] ss:$8 sm:$0x3]
        %v3879 = vlaneseq
        %v3880 = vshrl.u32 %v3879, 7
        %v3881 = vsub.s32 0, %v3880
        %v3882 = vrot.slane %v3877, %v3881
        %v3883 = vlaneseq
        %v3884 = vshrl.u32 %v3883, 7
        %v3885 = vsub.s32 1, %v3884
        %v3886 = vrot.slane %v3877, %v3885
        %v3889 = vmul.f32 %v3695, %v3882
        %v3890 = vmul.f32 %v3696, %v3886
        %v3891 = vmul.f32 %v3697, %v3882
        %v3892 = vmul.f32 %v3698, %v3886
        %v3893 = vmul.f32 %v3699, %v3882
        %v3894 = vmul.f32 %v3700, %v3886
        %v3895 = vmul.f32 %v3701, %v3882
        %v3896 = vmul.f32 %v3702, %v3886
        %v3897 = vmul.f32 %v3703, %v3882
        %v3898 = vmul.f32 %v3704, %v3886
        %v3899 = vmul.f32 %v3705, %v3882
        %v3900 = vmul.f32 %v3706, %v3886
        %v3901 = vmul.f32 %v3707, %v3882
        %v3902 = vmul.f32 %v3708, %v3886
        %v3903 = vmul.f32 %v3709, %v3882
        %v3904 = vmul.f32 %v3710, %v3886
        %v3905 = vmul.f32 %v3711, %v3882
        %v3906 = vmul.f32 %v3712, %v3886
        %v3907 = vmul.f32 %v3713, %v3882
        %v3908 = vmul.f32 %v3714, %v3886
        %v3909 = vmul.f32 %v3715, %v3882
        %v3910 = vmul.f32 %v3716, %v3886
        %v3911 = vmul.f32 %v3717, %v3882
        %v3912 = vmul.f32 %v3718, %v3886
        %v3937 = vrot.slane %v3889, 7
        %v3938 = vrot.slane %v3891, 7
        %v3939 = vsel %vm1026, %v3937, %v3938
        %v3940 = vrot.slane %v3890, 7
        %v3941 = vrot.slane %v3892, 7
        %v3942 = vsel %vm1026, %v3940, %v3941
        %v3943 = vrot.slane %v3893, 7
        %v3944 = vsel %vm1026, %v3938, %v3943
        %v3945 = vrot.slane %v3894, 7
        %v3946 = vsel %vm1026, %v3941, %v3945
        %v3947 = vrot.slane %v3895, 7
        %v3948 = vrot.slane %v3897, 7
        %v3949 = vsel %vm1026, %v3947, %v3948
        %v3950 = vrot.slane %v3896, 7
        %v3951 = vrot.slane %v3898, 7
        %v3952 = vsel %vm1026, %v3950, %v3951
        %v3953 = vrot.slane %v3899, 7
        %v3954 = vsel %vm1026, %v3948, %v3953
        %v3955 = vrot.slane %v3900, 7
        %v3956 = vsel %vm1026, %v3951, %v3955
        %v3957 = vrot.slane %v3901, 7
        %v3958 = vrot.slane %v3903, 7
        %v3959 = vsel %vm1026, %v3957, %v3958
        %v3960 = vrot.slane %v3902, 7
        %v3961 = vrot.slane %v3904, 7
        %v3962 = vsel %vm1026, %v3960, %v3961
        %v3963 = vrot.slane %v3905, 7
        %v3964 = vsel %vm1026, %v3958, %v3963
        %v3965 = vrot.slane %v3906, 7
        %v3966 = vsel %vm1026, %v3961, %v3965
        %v3967 = vrot.slane %v3907, 7
        %v3968 = vrot.slane %v3909, 7
        %v3969 = vsel %vm1026, %v3967, %v3968
        %v3970 = vrot.slane %v3908, 7
        %v3971 = vrot.slane %v3910, 7
        %v3972 = vsel %vm1026, %v3970, %v3971
        %v3973 = vrot.slane %v3911, 7
        %v3974 = vsel %vm1026, %v3968, %v3973
        %v3975 = vrot.slane %v3912, 7
        %v3976 = vsel %vm1026, %v3971, %v3975
        %v3993 = vadd.f32 %v3860, %v3939
        %v3994 = vadd.f32 %v3861, %v3942
        %v3995 = vadd.f32 %v3862, %v3944
        %v3996 = vadd.f32 %v3863, %v3946
        %v3997 = vadd.f32 %v3864, %v3949
        %v3998 = vadd.f32 %v3865, %v3952
        %v3999 = vadd.f32 %v3866, %v3954
        %v4000 = vadd.f32 %v3867, %v3956
        %v4001 = vadd.f32 %v3868, %v3959
        %v4002 = vadd.f32 %v3869, %v3962
        %v4003 = vadd.f32 %v3870, %v3964
        %v4004 = vadd.f32 %v3871, %v3966
        %v4005 = vadd.f32 %v3872, %v3969
        %v4006 = vadd.f32 %v3873, %v3972
        %v4007 = vadd.f32 %v3874, %v3974
        %v4008 = vadd.f32 %v3875, %v3976
        %4009 = vrot.lane.b32.xlu0 %v3745, 112
        %v4010 = vpop.permute.xlu0 %4009
        %4011 = vrot.lane.b32.xlu0 %v3750, 112
        %v4012 = vpop.permute.xlu0 %4011
        %4013 = vrot.lane.b32.xlu0 %v3755, 112
        %v4014 = vpop.permute.xlu0 %4013
        %4015 = vrot.lane.b32.xlu0 %v3760, 112
        %v4016 = vpop.permute.xlu0 %4015
        %4017 = vrot.lane.b32.xlu0 %v3765, 112
        %v4018 = vpop.permute.xlu0 %4017
        %4019 = vrot.lane.b32.xlu0 %v3770, 112
        %v4020 = vpop.permute.xlu0 %4019
        %4021 = vrot.lane.b32.xlu0 %v3775, 112
        %v4022 = vpop.permute.xlu0 %4021
        %4023 = vrot.lane.b32.xlu0 %v3780, 112
        %v4024 = vpop.permute.xlu0 %4023
        %4025 = vrot.lane.b32.xlu0 %v3748, 112
        %v4026 = vpop.permute.xlu0 %4025
        %4027 = vrot.lane.b32.xlu0 %v3752, 112
        %v4028 = vpop.permute.xlu0 %4027
        %4029 = vrot.lane.b32.xlu0 %v3758, 112
        %v4030 = vpop.permute.xlu0 %4029
        %4031 = vrot.lane.b32.xlu0 %v3762, 112
        %v4032 = vpop.permute.xlu0 %4031
        %4033 = vrot.lane.b32.xlu0 %v3768, 112
        %v4034 = vpop.permute.xlu0 %4033
        %4035 = vrot.lane.b32.xlu0 %v3772, 112
        %v4036 = vpop.permute.xlu0 %4035
        %4037 = vrot.lane.b32.xlu0 %v3778, 112
        %v4038 = vpop.permute.xlu0 %4037
        %4039 = vrot.lane.b32.xlu0 %v3782, 112
        %v4040 = vpop.permute.xlu0 %4039
        %v4041 = vsel %vm1327, %v4010, %v4026
        %v4042 = vsel %vm1327, %v4012, %v4028
        %v4043 = vsel %vm1327, %v4014, %v4030
        %v4044 = vsel %vm1327, %v4016, %v4032
        %v4045 = vsel %vm1327, %v4018, %v4034
        %v4046 = vsel %vm1327, %v4020, %v4036
        %v4047 = vsel %vm1327, %v4022, %v4038
        %v4048 = vsel %vm1327, %v4024, %v4040
        %v4049 = vsel %vm1327, %v4026, %v4010
        %v4050 = vsel %vm1327, %v4028, %v4012
        %v4051 = vsel %vm1327, %v4030, %v4014
        %v4052 = vsel %vm1327, %v4032, %v4016
        %v4053 = vsel %vm1327, %v4034, %v4018
        %v4054 = vsel %vm1327, %v4036, %v4020
        %v4055 = vsel %vm1327, %v4038, %v4022
        %v4056 = vsel %vm1327, %v4040, %v4024
        %s4057 = scalar_lea.vmem [#allocation11], 36
        %v4058 = vld [vmem:[%s4057] ss:$8 sm:$0x3]
        %v4060 = vlaneseq
        %v4061 = vshrl.u32 %v4060, 7
        %v4062 = vsub.s32 0, %v4061
        %v4063 = vrot.slane %v4058, %v4062
        %v4064 = vlaneseq
        %v4065 = vshrl.u32 %v4064, 7
        %v4066 = vsub.s32 1, %v4065
        %v4067 = vrot.slane %v4058, %v4066
        %v4070 = vmul.f32 %v4041, %v4063
        %v4071 = vmul.f32 %v4049, %v4067
        %v4072 = vmul.f32 %v4042, %v4063
        %v4073 = vmul.f32 %v4050, %v4067
        %v4074 = vmul.f32 %v4043, %v4063
        %v4075 = vmul.f32 %v4051, %v4067
        %v4076 = vmul.f32 %v4044, %v4063
        %v4077 = vmul.f32 %v4052, %v4067
        %v4078 = vmul.f32 %v4045, %v4063
        %v4079 = vmul.f32 %v4053, %v4067
        %v4080 = vmul.f32 %v4046, %v4063
        %v4081 = vmul.f32 %v4054, %v4067
        %v4082 = vmul.f32 %v4047, %v4063
        %v4083 = vmul.f32 %v4055, %v4067
        %v4084 = vmul.f32 %v4048, %v4063
        %v4085 = vmul.f32 %v4056, %v4067
        %v4086 = vadd.f32 %v3993, %v4070
        %v4087 = vadd.f32 %v3994, %v4071
        %v4088 = vadd.f32 %v3995, %v4072
        %v4089 = vadd.f32 %v3996, %v4073
        %v4090 = vadd.f32 %v3997, %v4074
        %v4091 = vadd.f32 %v3998, %v4075
        %v4092 = vadd.f32 %v3999, %v4076
        %v4093 = vadd.f32 %v4000, %v4077
        %v4094 = vadd.f32 %v4001, %v4078
        %v4095 = vadd.f32 %v4002, %v4079
        %v4096 = vadd.f32 %v4003, %v4080
        %v4097 = vadd.f32 %v4004, %v4081
        %v4098 = vadd.f32 %v4005, %v4082
        %v4099 = vadd.f32 %v4006, %v4083
        %v4100 = vadd.f32 %v4007, %v4084
        %v4101 = vadd.f32 %v4008, %v4085
        %4102 = vrot.lane.b32.xlu0 %v3663, 16
        %v4103 = vpop.permute.xlu0 %4102
        %4104 = vrot.lane.b32.xlu0 %v3665, 16
        %v4105 = vpop.permute.xlu0 %4104
        %4106 = vrot.lane.b32.xlu0 %v3667, 16
        %v4107 = vpop.permute.xlu0 %4106
        %4108 = vrot.lane.b32.xlu0 %v3669, 16
        %v4109 = vpop.permute.xlu0 %4108
        %4110 = vrot.lane.b32.xlu0 %v3671, 16
        %v4111 = vpop.permute.xlu0 %4110
        %4112 = vrot.lane.b32.xlu0 %v3673, 16
        %v4113 = vpop.permute.xlu0 %4112
        %4114 = vrot.lane.b32.xlu0 %v3675, 16
        %v4115 = vpop.permute.xlu0 %4114
        %4116 = vrot.lane.b32.xlu0 %v3677, 16
        %v4117 = vpop.permute.xlu0 %4116
        %4118 = vrot.lane.b32.xlu0 %v3664, 16
        %v4119 = vpop.permute.xlu0 %4118
        %4120 = vrot.lane.b32.xlu0 %v3666, 16
        %v4121 = vpop.permute.xlu0 %4120
        %4122 = vrot.lane.b32.xlu0 %v3668, 16
        %v4123 = vpop.permute.xlu0 %4122
        %4124 = vrot.lane.b32.xlu0 %v3670, 16
        %v4125 = vpop.permute.xlu0 %4124
        %4126 = vrot.lane.b32.xlu0 %v3672, 16
        %v4127 = vpop.permute.xlu0 %4126
        %4128 = vrot.lane.b32.xlu0 %v3674, 16
        %v4129 = vpop.permute.xlu0 %4128
        %4130 = vrot.lane.b32.xlu0 %v3676, 16
        %v4131 = vpop.permute.xlu0 %4130
        %4132 = vrot.lane.b32.xlu0 %v3678, 16
        %v4133 = vpop.permute.xlu0 %4132
        %v4134 = vsel %vm1117, %v4103, %v4119
        %v4135 = vsel %vm1117, %v4105, %v4121
        %v4136 = vsel %vm1117, %v4107, %v4123
        %v4137 = vsel %vm1117, %v4109, %v4125
        %v4138 = vsel %vm1117, %v4111, %v4127
        %v4139 = vsel %vm1117, %v4113, %v4129
        %v4140 = vsel %vm1117, %v4115, %v4131
        %v4141 = vsel %vm1117, %v4117, %v4133
        %v4142 = vsel %vm1117, %v4119, %v4103
        %v4143 = vsel %vm1117, %v4121, %v4105
        %v4144 = vsel %vm1117, %v4123, %v4107
        %v4145 = vsel %vm1117, %v4125, %v4109
        %v4146 = vsel %vm1117, %v4127, %v4111
        %v4147 = vsel %vm1117, %v4129, %v4113
        %v4148 = vsel %vm1117, %v4131, %v4115
        %v4149 = vsel %vm1117, %v4133, %v4117
        %s4150 = scalar_lea.vmem [#allocation11], 37
        %v4151 = vld [vmem:[%s4150] ss:$8 sm:$0x3]
        %v4153 = vlaneseq
        %v4154 = vshrl.u32 %v4153, 7
        %v4155 = vsub.s32 0, %v4154
        %v4156 = vrot.slane %v4151, %v4155
        %v4157 = vlaneseq
        %v4158 = vshrl.u32 %v4157, 7
        %v4159 = vsub.s32 1, %v4158
        %v4160 = vrot.slane %v4151, %v4159
        %v4163 = vmul.f32 %v4142, %v4156
        %v4164 = vmul.f32 %v4134, %v4160
        %v4165 = vmul.f32 %v4143, %v4156
        %v4166 = vmul.f32 %v4135, %v4160
        %v4167 = vmul.f32 %v4144, %v4156
        %v4168 = vmul.f32 %v4136, %v4160
        %v4169 = vmul.f32 %v4145, %v4156
        %v4170 = vmul.f32 %v4137, %v4160
        %v4171 = vmul.f32 %v4146, %v4156
        %v4172 = vmul.f32 %v4138, %v4160
        %v4173 = vmul.f32 %v4147, %v4156
        %v4174 = vmul.f32 %v4139, %v4160
        %v4175 = vmul.f32 %v4148, %v4156
        %v4176 = vmul.f32 %v4140, %v4160
        %v4177 = vmul.f32 %v4149, %v4156
        %v4178 = vmul.f32 %v4141, %v4160
        %v4179 = vadd.f32 %v4086, %v4163
        %v4180 = vadd.f32 %v4087, %v4164
        %v4181 = vadd.f32 %v4088, %v4165
        %v4182 = vadd.f32 %v4089, %v4166
        %v4183 = vadd.f32 %v4090, %v4167
        %v4184 = vadd.f32 %v4091, %v4168
        %v4185 = vadd.f32 %v4092, %v4169
        %v4186 = vadd.f32 %v4093, %v4170
        %v4187 = vadd.f32 %v4094, %v4171
        %v4188 = vadd.f32 %v4095, %v4172
        %v4189 = vadd.f32 %v4096, %v4173
        %v4190 = vadd.f32 %v4097, %v4174
        %v4191 = vadd.f32 %v4098, %v4175
        %v4192 = vadd.f32 %v4099, %v4176
        %v4193 = vadd.f32 %v4100, %v4177
        %v4194 = vadd.f32 %v4101, %v4178
        %s4195 = scalar_lea.vmem [#allocation11], 38
        %v4196 = vld [vmem:[%s4195] ss:$8 sm:$0x3]
        %v4198 = vlaneseq
        %v4199 = vshrl.u32 %v4198, 7
        %v4200 = vsub.s32 0, %v4199
        %v4201 = vrot.slane %v4196, %v4200
        %v4202 = vlaneseq
        %v4203 = vshrl.u32 %v4202, 7
        %v4204 = vsub.s32 1, %v4203
        %v4205 = vrot.slane %v4196, %v4204
        %v4208 = vmul.f32 %v3663, %v4201
        %v4209 = vmul.f32 %v3664, %v4205
        %v4210 = vmul.f32 %v3665, %v4201
        %v4211 = vmul.f32 %v3666, %v4205
        %v4212 = vmul.f32 %v3667, %v4201
        %v4213 = vmul.f32 %v3668, %v4205
        %v4214 = vmul.f32 %v3669, %v4201
        %v4215 = vmul.f32 %v3670, %v4205
        %v4216 = vmul.f32 %v3671, %v4201
        %v4217 = vmul.f32 %v3672, %v4205
        %v4218 = vmul.f32 %v3673, %v4201
        %v4219 = vmul.f32 %v3674, %v4205
        %v4220 = vmul.f32 %v3675, %v4201
        %v4221 = vmul.f32 %v3676, %v4205
        %v4222 = vmul.f32 %v3677, %v4201
        %v4223 = vmul.f32 %v3678, %v4205
        %v4224 = vadd.f32 %v4179, %v4208
        %v4225 = vadd.f32 %v4180, %v4209
        %v4226 = vadd.f32 %v4181, %v4210
        %v4227 = vadd.f32 %v4182, %v4211
        %v4228 = vadd.f32 %v4183, %v4212
        %v4229 = vadd.f32 %v4184, %v4213
        %v4230 = vadd.f32 %v4185, %v4214
        %v4231 = vadd.f32 %v4186, %v4215
        %v4232 = vadd.f32 %v4187, %v4216
        %v4233 = vadd.f32 %v4188, %v4217
        %v4234 = vadd.f32 %v4189, %v4218
        %v4235 = vadd.f32 %v4190, %v4219
        %v4236 = vadd.f32 %v4191, %v4220
        %v4237 = vadd.f32 %v4192, %v4221
        %v4238 = vadd.f32 %v4193, %v4222
        %v4239 = vadd.f32 %v4194, %v4223
        %4240 = vrot.lane.b32.xlu0 %v3663, 112
        %v4241 = vpop.permute.xlu0 %4240
        %4242 = vrot.lane.b32.xlu0 %v3665, 112
        %v4243 = vpop.permute.xlu0 %4242
        %4244 = vrot.lane.b32.xlu0 %v3667, 112
        %v4245 = vpop.permute.xlu0 %4244
        %4246 = vrot.lane.b32.xlu0 %v3669, 112
        %v4247 = vpop.permute.xlu0 %4246
        %4248 = vrot.lane.b32.xlu0 %v3671, 112
        %v4249 = vpop.permute.xlu0 %4248
        %4250 = vrot.lane.b32.xlu0 %v3673, 112
        %v4251 = vpop.permute.xlu0 %4250
        %4252 = vrot.lane.b32.xlu0 %v3675, 112
        %v4253 = vpop.permute.xlu0 %4252
        %4254 = vrot.lane.b32.xlu0 %v3677, 112
        %v4255 = vpop.permute.xlu0 %4254
        %4256 = vrot.lane.b32.xlu0 %v3664, 112
        %v4257 = vpop.permute.xlu0 %4256
        %4258 = vrot.lane.b32.xlu0 %v3666, 112
        %v4259 = vpop.permute.xlu0 %4258
        %4260 = vrot.lane.b32.xlu0 %v3668, 112
        %v4261 = vpop.permute.xlu0 %4260
        %4262 = vrot.lane.b32.xlu0 %v3670, 112
        %v4263 = vpop.permute.xlu0 %4262
        %4264 = vrot.lane.b32.xlu0 %v3672, 112
        %v4265 = vpop.permute.xlu0 %4264
        %4266 = vrot.lane.b32.xlu0 %v3674, 112
        %v4267 = vpop.permute.xlu0 %4266
        %4268 = vrot.lane.b32.xlu0 %v3676, 112
        %v4269 = vpop.permute.xlu0 %4268
        %4270 = vrot.lane.b32.xlu0 %v3678, 112
        %v4271 = vpop.permute.xlu0 %4270
        %v4272 = vsel %vm1327, %v4241, %v4257
        %v4273 = vsel %vm1327, %v4243, %v4259
        %v4274 = vsel %vm1327, %v4245, %v4261
        %v4275 = vsel %vm1327, %v4247, %v4263
        %v4276 = vsel %vm1327, %v4249, %v4265
        %v4277 = vsel %vm1327, %v4251, %v4267
        %v4278 = vsel %vm1327, %v4253, %v4269
        %v4279 = vsel %vm1327, %v4255, %v4271
        %v4280 = vsel %vm1327, %v4257, %v4241
        %v4281 = vsel %vm1327, %v4259, %v4243
        %v4282 = vsel %vm1327, %v4261, %v4245
        %v4283 = vsel %vm1327, %v4263, %v4247
        %v4284 = vsel %vm1327, %v4265, %v4249
        %v4285 = vsel %vm1327, %v4267, %v4251
        %v4286 = vsel %vm1327, %v4269, %v4253
        %v4287 = vsel %vm1327, %v4271, %v4255
        %s4288 = scalar_lea.vmem [#allocation11], 39
        %v4289 = vld [vmem:[%s4288] ss:$8 sm:$0x3]
        %v4291 = vlaneseq
        %v4292 = vshrl.u32 %v4291, 7
        %v4293 = vsub.s32 0, %v4292
        %v4294 = vrot.slane %v4289, %v4293
        %v4295 = vlaneseq
        %v4296 = vshrl.u32 %v4295, 7
        %v4297 = vsub.s32 1, %v4296
        %v4298 = vrot.slane %v4289, %v4297
        %v4301 = vmul.f32 %v4272, %v4294
        %v4302 = vmul.f32 %v4280, %v4298
        %v4303 = vmul.f32 %v4273, %v4294
        %v4304 = vmul.f32 %v4281, %v4298
        %v4305 = vmul.f32 %v4274, %v4294
        %v4306 = vmul.f32 %v4282, %v4298
        %v4307 = vmul.f32 %v4275, %v4294
        %v4308 = vmul.f32 %v4283, %v4298
        %v4309 = vmul.f32 %v4276, %v4294
        %v4310 = vmul.f32 %v4284, %v4298
        %v4311 = vmul.f32 %v4277, %v4294
        %v4312 = vmul.f32 %v4285, %v4298
        %v4313 = vmul.f32 %v4278, %v4294
        %v4314 = vmul.f32 %v4286, %v4298
        %v4315 = vmul.f32 %v4279, %v4294
        %v4316 = vmul.f32 %v4287, %v4298
        %v4317 = vadd.f32 %v4224, %v4301
        %v4318 = vadd.f32 %v4225, %v4302
        %v4319 = vadd.f32 %v4226, %v4303
        %v4320 = vadd.f32 %v4227, %v4304
        %v4321 = vadd.f32 %v4228, %v4305
        %v4322 = vadd.f32 %v4229, %v4306
        %v4323 = vadd.f32 %v4230, %v4307
        %v4324 = vadd.f32 %v4231, %v4308
        %v4325 = vadd.f32 %v4232, %v4309
        %v4326 = vadd.f32 %v4233, %v4310
        %v4327 = vadd.f32 %v4234, %v4311
        %v4328 = vadd.f32 %v4235, %v4312
        %v4329 = vadd.f32 %v4236, %v4313
        %v4330 = vadd.f32 %v4237, %v4314
        %v4331 = vadd.f32 %v4238, %v4315
        %v4332 = vadd.f32 %v4239, %v4316
        %v4333 = vld [vmem:[#allocation2 + $0x10] sm:$0xfe]
        %v4334 = vld [vmem:[#allocation2 + $0x18] sm:$0xfe]
        %v4335 = vld [vmem:[#allocation2 + $0x20] sm:$0xff]
        %v4336 = vld [vmem:[#allocation2 + $0x28] sm:$0xff]
        %v4337 = vld [vmem:[#allocation2 + $0x30] sm:$0x1]
        %v4338 = vld [vmem:[#allocation2 + $0x38] sm:$0x1]
        %v4339 = vld [vmem:[#allocation2 + $0x50] sm:$0xfe]
        %v4340 = vld [vmem:[#allocation2 + $0x58] sm:$0xfe]
        %v4341 = vld [vmem:[#allocation2 + $0x60] sm:$0xff]
        %v4342 = vld [vmem:[#allocation2 + $0x68] sm:$0xff]
        %v4343 = vld [vmem:[#allocation2 + $0x70] sm:$0x1]
        %v4344 = vld [vmem:[#allocation2 + $0x78] sm:$0x1]
        %v4345 = vld [vmem:[#allocation2 + $0x90] sm:$0xfe]
        %v4346 = vld [vmem:[#allocation2 + $0x98] sm:$0xfe]
        %v4347 = vld [vmem:[#allocation2 + $0xa0] sm:$0xff]
        %v4348 = vld [vmem:[#allocation2 + $0xa8] sm:$0xff]
        %v4349 = vld [vmem:[#allocation2 + $0xb0] sm:$0x1]
        %v4350 = vld [vmem:[#allocation2 + $0xb8] sm:$0x1]
        %v4351 = vld [vmem:[#allocation2 + $0xd0] sm:$0xfe]
        %v4352 = vld [vmem:[#allocation2 + $0xd8] sm:$0xfe]
        %v4353 = vld [vmem:[#allocation2 + $0xe0] sm:$0xff]
        %v4354 = vld [vmem:[#allocation2 + $0xe8] sm:$0xff]
        %v4355 = vld [vmem:[#allocation2 + $0xf0] sm:$0x1]
        %v4356 = vld [vmem:[#allocation2 + $0xf8] sm:$0x1]
        %v4381 = vrot.slane %v4333, 1
        %v4382 = vrot.slane %v4335, 1
        %v4383 = vsel %vm1668, %v4381, %v4382
        %v4384 = vrot.slane %v4334, 1
        %v4385 = vrot.slane %v4336, 1
        %v4386 = vsel %vm1668, %v4384, %v4385
        %v4387 = vrot.slane %v4337, 1
        %v4388 = vsel %vm1668, %v4382, %v4387
        %v4389 = vrot.slane %v4338, 1
        %v4390 = vsel %vm1668, %v4385, %v4389
        %v4391 = vrot.slane %v4339, 1
        %v4392 = vrot.slane %v4341, 1
        %v4393 = vsel %vm1668, %v4391, %v4392
        %v4394 = vrot.slane %v4340, 1
        %v4395 = vrot.slane %v4342, 1
        %v4396 = vsel %vm1668, %v4394, %v4395
        %v4397 = vrot.slane %v4343, 1
        %v4398 = vsel %vm1668, %v4392, %v4397
        %v4399 = vrot.slane %v4344, 1
        %v4400 = vsel %vm1668, %v4395, %v4399
        %v4401 = vrot.slane %v4345, 1
        %v4402 = vrot.slane %v4347, 1
        %v4403 = vsel %vm1668, %v4401, %v4402
        %v4404 = vrot.slane %v4346, 1
        %v4405 = vrot.slane %v4348, 1
        %v4406 = vsel %vm1668, %v4404, %v4405
        %v4407 = vrot.slane %v4349, 1
        %v4408 = vsel %vm1668, %v4402, %v4407
        %v4409 = vrot.slane %v4350, 1
        %v4410 = vsel %vm1668, %v4405, %v4409
        %v4411 = vrot.slane %v4351, 1
        %v4412 = vrot.slane %v4353, 1
        %v4413 = vsel %vm1668, %v4411, %v4412
        %v4414 = vrot.slane %v4352, 1
        %v4415 = vrot.slane %v4354, 1
        %v4416 = vsel %vm1668, %v4414, %v4415
        %v4417 = vrot.slane %v4355, 1
        %v4418 = vsel %vm1668, %v4412, %v4417
        %v4419 = vrot.slane %v4356, 1
        %v4420 = vsel %vm1668, %v4415, %v4419
        %4437 = vrot.lane.b32.xlu0 %v4383, 16
        %v4438 = vpop.permute.xlu0 %4437
        %4439 = vrot.lane.b32.xlu0 %v4388, 16
        %v4440 = vpop.permute.xlu0 %4439
        %4441 = vrot.lane.b32.xlu0 %v4393, 16
        %v4442 = vpop.permute.xlu0 %4441
        %4443 = vrot.lane.b32.xlu0 %v4398, 16
        %v4444 = vpop.permute.xlu0 %4443
        %4445 = vrot.lane.b32.xlu0 %v4403, 16
        %v4446 = vpop.permute.xlu0 %4445
        %4447 = vrot.lane.b32.xlu0 %v4408, 16
        %v4448 = vpop.permute.xlu0 %4447
        %4449 = vrot.lane.b32.xlu0 %v4413, 16
        %v4450 = vpop.permute.xlu0 %4449
        %4451 = vrot.lane.b32.xlu0 %v4418, 16
        %v4452 = vpop.permute.xlu0 %4451
        %4453 = vrot.lane.b32.xlu0 %v4386, 16
        %v4454 = vpop.permute.xlu0 %4453
        %4455 = vrot.lane.b32.xlu0 %v4390, 16
        %v4456 = vpop.permute.xlu0 %4455
        %4457 = vrot.lane.b32.xlu0 %v4396, 16
        %v4458 = vpop.permute.xlu0 %4457
        %4459 = vrot.lane.b32.xlu0 %v4400, 16
        %v4460 = vpop.permute.xlu0 %4459
        %4461 = vrot.lane.b32.xlu0 %v4406, 16
        %v4462 = vpop.permute.xlu0 %4461
        %4463 = vrot.lane.b32.xlu0 %v4410, 16
        %v4464 = vpop.permute.xlu0 %4463
        %4465 = vrot.lane.b32.xlu0 %v4416, 16
        %v4466 = vpop.permute.xlu0 %4465
        %4467 = vrot.lane.b32.xlu0 %v4420, 16
        %v4468 = vpop.permute.xlu0 %4467
        %v4469 = vsel %vm1117, %v4438, %v4454
        %v4470 = vsel %vm1117, %v4440, %v4456
        %v4471 = vsel %vm1117, %v4442, %v4458
        %v4472 = vsel %vm1117, %v4444, %v4460
        %v4473 = vsel %vm1117, %v4446, %v4462
        %v4474 = vsel %vm1117, %v4448, %v4464
        %v4475 = vsel %vm1117, %v4450, %v4466
        %v4476 = vsel %vm1117, %v4452, %v4468
        %v4477 = vsel %vm1117, %v4454, %v4438
        %v4478 = vsel %vm1117, %v4456, %v4440
        %v4479 = vsel %vm1117, %v4458, %v4442
        %v4480 = vsel %vm1117, %v4460, %v4444
        %v4481 = vsel %vm1117, %v4462, %v4446
        %v4482 = vsel %vm1117, %v4464, %v4448
        %v4483 = vsel %vm1117, %v4466, %v4450
        %v4484 = vsel %vm1117, %v4468, %v4452
        %s4485 = scalar_lea.vmem [#allocation11], 48
        %v4486 = vld [vmem:[%s4485] ss:$8 sm:$0x3]
        %v4488 = vlaneseq
        %v4489 = vshrl.u32 %v4488, 7
        %v4490 = vsub.s32 0, %v4489
        %v4491 = vrot.slane %v4486, %v4490
        %v4492 = vlaneseq
        %v4493 = vshrl.u32 %v4492, 7
        %v4494 = vsub.s32 1, %v4493
        %v4495 = vrot.slane %v4486, %v4494
        %v4498 = vmul.f32 %v4477, %v4491
        %v4499 = vmul.f32 %v4469, %v4495
        %v4500 = vmul.f32 %v4478, %v4491
        %v4501 = vmul.f32 %v4470, %v4495
        %v4502 = vmul.f32 %v4479, %v4491
        %v4503 = vmul.f32 %v4471, %v4495
        %v4504 = vmul.f32 %v4480, %v4491
        %v4505 = vmul.f32 %v4472, %v4495
        %v4506 = vmul.f32 %v4481, %v4491
        %v4507 = vmul.f32 %v4473, %v4495
        %v4508 = vmul.f32 %v4482, %v4491
        %v4509 = vmul.f32 %v4474, %v4495
        %v4510 = vmul.f32 %v4483, %v4491
        %v4511 = vmul.f32 %v4475, %v4495
        %v4512 = vmul.f32 %v4484, %v4491
        %v4513 = vmul.f32 %v4476, %v4495
        %v4514 = vadd.f32 %v4317, %v4498
        %v4515 = vadd.f32 %v4318, %v4499
        %v4516 = vadd.f32 %v4319, %v4500
        %v4517 = vadd.f32 %v4320, %v4501
        %v4518 = vadd.f32 %v4321, %v4502
        %v4519 = vadd.f32 %v4322, %v4503
        %v4520 = vadd.f32 %v4323, %v4504
        %v4521 = vadd.f32 %v4324, %v4505
        %v4522 = vadd.f32 %v4325, %v4506
        %v4523 = vadd.f32 %v4326, %v4507
        %v4524 = vadd.f32 %v4327, %v4508
        %v4525 = vadd.f32 %v4328, %v4509
        %v4526 = vadd.f32 %v4329, %v4510
        %v4527 = vadd.f32 %v4330, %v4511
        %v4528 = vadd.f32 %v4331, %v4512
        %v4529 = vadd.f32 %v4332, %v4513
        %s4530 = scalar_lea.vmem [#allocation11], 49
        %v4531 = vld [vmem:[%s4530] ss:$8 sm:$0x3]
        %v4533 = vlaneseq
        %v4534 = vshrl.u32 %v4533, 7
        %v4535 = vsub.s32 0, %v4534
        %v4536 = vrot.slane %v4531, %v4535
        %v4537 = vlaneseq
        %v4538 = vshrl.u32 %v4537, 7
        %v4539 = vsub.s32 1, %v4538
        %v4540 = vrot.slane %v4531, %v4539
        %v4543 = vmul.f32 %v4333, %v4536
        %v4544 = vmul.f32 %v4334, %v4540
        %v4545 = vmul.f32 %v4335, %v4536
        %v4546 = vmul.f32 %v4336, %v4540
        %v4547 = vmul.f32 %v4337, %v4536
        %v4548 = vmul.f32 %v4338, %v4540
        %v4549 = vmul.f32 %v4339, %v4536
        %v4550 = vmul.f32 %v4340, %v4540
        %v4551 = vmul.f32 %v4341, %v4536
        %v4552 = vmul.f32 %v4342, %v4540
        %v4553 = vmul.f32 %v4343, %v4536
        %v4554 = vmul.f32 %v4344, %v4540
        %v4555 = vmul.f32 %v4345, %v4536
        %v4556 = vmul.f32 %v4346, %v4540
        %v4557 = vmul.f32 %v4347, %v4536
        %v4558 = vmul.f32 %v4348, %v4540
        %v4559 = vmul.f32 %v4349, %v4536
        %v4560 = vmul.f32 %v4350, %v4540
        %v4561 = vmul.f32 %v4351, %v4536
        %v4562 = vmul.f32 %v4352, %v4540
        %v4563 = vmul.f32 %v4353, %v4536
        %v4564 = vmul.f32 %v4354, %v4540
        %v4565 = vmul.f32 %v4355, %v4536
        %v4566 = vmul.f32 %v4356, %v4540
        %v4591 = vrot.slane %v4543, 1
        %v4592 = vrot.slane %v4545, 1
        %v4593 = vsel %vm1668, %v4591, %v4592
        %v4594 = vrot.slane %v4544, 1
        %v4595 = vrot.slane %v4546, 1
        %v4596 = vsel %vm1668, %v4594, %v4595
        %v4597 = vrot.slane %v4547, 1
        %v4598 = vsel %vm1668, %v4592, %v4597
        %v4599 = vrot.slane %v4548, 1
        %v4600 = vsel %vm1668, %v4595, %v4599
        %v4601 = vrot.slane %v4549, 1
        %v4602 = vrot.slane %v4551, 1
        %v4603 = vsel %vm1668, %v4601, %v4602
        %v4604 = vrot.slane %v4550, 1
        %v4605 = vrot.slane %v4552, 1
        %v4606 = vsel %vm1668, %v4604, %v4605
        %v4607 = vrot.slane %v4553, 1
        %v4608 = vsel %vm1668, %v4602, %v4607
        %v4609 = vrot.slane %v4554, 1
        %v4610 = vsel %vm1668, %v4605, %v4609
        %v4611 = vrot.slane %v4555, 1
        %v4612 = vrot.slane %v4557, 1
        %v4613 = vsel %vm1668, %v4611, %v4612
        %v4614 = vrot.slane %v4556, 1
        %v4615 = vrot.slane %v4558, 1
        %v4616 = vsel %vm1668, %v4614, %v4615
        %v4617 = vrot.slane %v4559, 1
        %v4618 = vsel %vm1668, %v4612, %v4617
        %v4619 = vrot.slane %v4560, 1
        %v4620 = vsel %vm1668, %v4615, %v4619
        %v4621 = vrot.slane %v4561, 1
        %v4622 = vrot.slane %v4563, 1
        %v4623 = vsel %vm1668, %v4621, %v4622
        %v4624 = vrot.slane %v4562, 1
        %v4625 = vrot.slane %v4564, 1
        %v4626 = vsel %vm1668, %v4624, %v4625
        %v4627 = vrot.slane %v4565, 1
        %v4628 = vsel %vm1668, %v4622, %v4627
        %v4629 = vrot.slane %v4566, 1
        %v4630 = vsel %vm1668, %v4625, %v4629
        %v4647 = vadd.f32 %v4514, %v4593
        %v4648 = vadd.f32 %v4515, %v4596
        %v4649 = vadd.f32 %v4516, %v4598
        %v4650 = vadd.f32 %v4517, %v4600
        %v4651 = vadd.f32 %v4518, %v4603
        %v4652 = vadd.f32 %v4519, %v4606
        %v4653 = vadd.f32 %v4520, %v4608
        %v4654 = vadd.f32 %v4521, %v4610
        %v4655 = vadd.f32 %v4522, %v4613
        %v4656 = vadd.f32 %v4523, %v4616
        %v4657 = vadd.f32 %v4524, %v4618
        %v4658 = vadd.f32 %v4525, %v4620
        %v4659 = vadd.f32 %v4526, %v4623
        %v4660 = vadd.f32 %v4527, %v4626
        %v4661 = vadd.f32 %v4528, %v4628
        %v4662 = vadd.f32 %v4529, %v4630
        %4663 = vrot.lane.b32.xlu0 %v4383, 112
        %v4664 = vpop.permute.xlu0 %4663
        %4665 = vrot.lane.b32.xlu0 %v4388, 112
        %v4666 = vpop.permute.xlu0 %4665
        %4667 = vrot.lane.b32.xlu0 %v4393, 112
        %v4668 = vpop.permute.xlu0 %4667
        %4669 = vrot.lane.b32.xlu0 %v4398, 112
        %v4670 = vpop.permute.xlu0 %4669
        %4671 = vrot.lane.b32.xlu0 %v4403, 112
        %v4672 = vpop.permute.xlu0 %4671
        %4673 = vrot.lane.b32.xlu0 %v4408, 112
        %v4674 = vpop.permute.xlu0 %4673
        %4675 = vrot.lane.b32.xlu0 %v4413, 112
        %v4676 = vpop.permute.xlu0 %4675
        %4677 = vrot.lane.b32.xlu0 %v4418, 112
        %v4678 = vpop.permute.xlu0 %4677
        %4679 = vrot.lane.b32.xlu0 %v4386, 112
        %v4680 = vpop.permute.xlu0 %4679
        %4681 = vrot.lane.b32.xlu0 %v4390, 112
        %v4682 = vpop.permute.xlu0 %4681
        %4683 = vrot.lane.b32.xlu0 %v4396, 112
        %v4684 = vpop.permute.xlu0 %4683
        %4685 = vrot.lane.b32.xlu0 %v4400, 112
        %v4686 = vpop.permute.xlu0 %4685
        %4687 = vrot.lane.b32.xlu0 %v4406, 112
        %v4688 = vpop.permute.xlu0 %4687
        %4689 = vrot.lane.b32.xlu0 %v4410, 112
        %v4690 = vpop.permute.xlu0 %4689
        %4691 = vrot.lane.b32.xlu0 %v4416, 112
        %v4692 = vpop.permute.xlu0 %4691
        %4693 = vrot.lane.b32.xlu0 %v4420, 112
        %v4694 = vpop.permute.xlu0 %4693
        %v4695 = vsel %vm1327, %v4664, %v4680
        %v4696 = vsel %vm1327, %v4666, %v4682
        %v4697 = vsel %vm1327, %v4668, %v4684
        %v4698 = vsel %vm1327, %v4670, %v4686
        %v4699 = vsel %vm1327, %v4672, %v4688
        %v4700 = vsel %vm1327, %v4674, %v4690
        %v4701 = vsel %vm1327, %v4676, %v4692
        %v4702 = vsel %vm1327, %v4678, %v4694
        %v4703 = vsel %vm1327, %v4680, %v4664
        %v4704 = vsel %vm1327, %v4682, %v4666
        %v4705 = vsel %vm1327, %v4684, %v4668
        %v4706 = vsel %vm1327, %v4686, %v4670
        %v4707 = vsel %vm1327, %v4688, %v4672
        %v4708 = vsel %vm1327, %v4690, %v4674
        %v4709 = vsel %vm1327, %v4692, %v4676
        %v4710 = vsel %vm1327, %v4694, %v4678
        %s4711 = scalar_lea.vmem [#allocation11], 50
        %v4712 = vld [vmem:[%s4711] ss:$8 sm:$0x3]
        %v4714 = vlaneseq
        %v4715 = vshrl.u32 %v4714, 7
        %v4716 = vsub.s32 0, %v4715
        %v4717 = vrot.slane %v4712, %v4716
        %v4718 = vlaneseq
        %v4719 = vshrl.u32 %v4718, 7
        %v4720 = vsub.s32 1, %v4719
        %v4721 = vrot.slane %v4712, %v4720
        %v4724 = vmul.f32 %v4695, %v4717
        %v4725 = vmul.f32 %v4703, %v4721
        %v4726 = vmul.f32 %v4696, %v4717
        %v4727 = vmul.f32 %v4704, %v4721
        %v4728 = vmul.f32 %v4697, %v4717
        %v4729 = vmul.f32 %v4705, %v4721
        %v4730 = vmul.f32 %v4698, %v4717
        %v4731 = vmul.f32 %v4706, %v4721
        %v4732 = vmul.f32 %v4699, %v4717
        %v4733 = vmul.f32 %v4707, %v4721
        %v4734 = vmul.f32 %v4700, %v4717
        %v4735 = vmul.f32 %v4708, %v4721
        %v4736 = vmul.f32 %v4701, %v4717
        %v4737 = vmul.f32 %v4709, %v4721
        %v4738 = vmul.f32 %v4702, %v4717
        %v4739 = vmul.f32 %v4710, %v4721
        %v4740 = vadd.f32 %v4647, %v4724
        %v4741 = vadd.f32 %v4648, %v4725
        %v4742 = vadd.f32 %v4649, %v4726
        %v4743 = vadd.f32 %v4650, %v4727
        %v4744 = vadd.f32 %v4651, %v4728
        %v4745 = vadd.f32 %v4652, %v4729
        %v4746 = vadd.f32 %v4653, %v4730
        %v4747 = vadd.f32 %v4654, %v4731
        %v4748 = vadd.f32 %v4655, %v4732
        %v4749 = vadd.f32 %v4656, %v4733
        %v4750 = vadd.f32 %v4657, %v4734
        %v4751 = vadd.f32 %v4658, %v4735
        %v4752 = vadd.f32 %v4659, %v4736
        %v4753 = vadd.f32 %v4660, %v4737
        %v4754 = vadd.f32 %v4661, %v4738
        %v4755 = vadd.f32 %v4662, %v4739
        %s4756 = scalar_lea.vmem %s5, 2
        %v4757 = vld [vmem:[%s4756] ss:$4 sm:$0x3]
        %s4758 = scalar_lea.vmem [#allocation12], 2
        %v4759 = vld [vmem:[%s4758] ss:$4 sm:$0x3]
        %v4760 = vadd.f32 %v4740, %v4741
        %4761 = vadd.xlane.f32.xlu0 %v4760
        %v4762 = vpop.xlane.xlu0 %4761
        %v4763 = vadd.f32 %v4742, %v4743
        %4764 = vadd.xlane.f32.xlu0 %v4763
        %v4765 = vpop.xlane.xlu0 %4764
        %v4766 = vadd.f32 %v4744, %v4745
        %4767 = vadd.xlane.f32.xlu0 %v4766
        %v4768 = vpop.xlane.xlu0 %4767
        %v4769 = vadd.f32 %v4746, %v4747
        %4770 = vadd.xlane.f32.xlu0 %v4769
        %v4771 = vpop.xlane.xlu0 %4770
        %v4772 = vadd.f32 %v4748, %v4749
        %4773 = vadd.xlane.f32.xlu0 %v4772
        %v4774 = vpop.xlane.xlu0 %4773
        %v4775 = vadd.f32 %v4750, %v4751
        %4776 = vadd.xlane.f32.xlu0 %v4775
        %v4777 = vpop.xlane.xlu0 %4776
        %v4778 = vadd.f32 %v4752, %v4753
        %4779 = vadd.xlane.f32.xlu0 %v4778
        %v4780 = vpop.xlane.xlu0 %4779
        %v4781 = vadd.f32 %v4754, %v4755
        %4782 = vadd.xlane.f32.xlu0 %v4781
        %v4783 = vpop.xlane.xlu0 %4782
        %v4784 = vadd.f32 %v4762, %v4765
        %v4785 = vrot.slane %v4784, 4
        %v4786 = vadd.f32 %v4784, %v4785
        %v4787 = vrot.slane %v4786, 2
        %v4788 = vadd.f32 %v4786, %v4787
        %v4789 = vrot.slane %v4788, 1
        %v4790 = vadd.f32 %v4788, %v4789
        %v4791 = vadd.f32 %v4768, %v4771
        %v4792 = vrot.slane %v4791, 4
        %v4793 = vadd.f32 %v4791, %v4792
        %v4794 = vrot.slane %v4793, 2
        %v4795 = vadd.f32 %v4793, %v4794
        %v4796 = vrot.slane %v4795, 1
        %v4797 = vadd.f32 %v4795, %v4796
        %v4798 = vadd.f32 %v4774, %v4777
        %v4799 = vrot.slane %v4798, 4
        %v4800 = vadd.f32 %v4798, %v4799
        %v4801 = vrot.slane %v4800, 2
        %v4802 = vadd.f32 %v4800, %v4801
        %v4803 = vrot.slane %v4802, 1
        %v4804 = vadd.f32 %v4802, %v4803
        %v4805 = vadd.f32 %v4780, %v4783
        %v4806 = vrot.slane %v4805, 4
        %v4807 = vadd.f32 %v4805, %v4806
        %v4808 = vrot.slane %v4807, 2
        %v4809 = vadd.f32 %v4807, %v4808
        %v4810 = vrot.slane %v4809, 1
        %v4811 = vadd.f32 %v4809, %v4810
        %v4812 = vmul.f32 %v4740, %v4740
        %v4813 = vmul.f32 %v4741, %v4741
        %v4814 = vmul.f32 %v4742, %v4742
        %v4815 = vmul.f32 %v4743, %v4743
        %v4816 = vmul.f32 %v4744, %v4744
        %v4817 = vmul.f32 %v4745, %v4745
        %v4818 = vmul.f32 %v4746, %v4746
        %v4819 = vmul.f32 %v4747, %v4747
        %v4820 = vmul.f32 %v4748, %v4748
        %v4821 = vmul.f32 %v4749, %v4749
        %v4822 = vmul.f32 %v4750, %v4750
        %v4823 = vmul.f32 %v4751, %v4751
        %v4824 = vmul.f32 %v4752, %v4752
        %v4825 = vmul.f32 %v4753, %v4753
        %v4826 = vmul.f32 %v4754, %v4754
        %v4827 = vmul.f32 %v4755, %v4755
        %v4828 = vadd.f32 %v4812, %v4813
        %4829 = vadd.xlane.f32.xlu0 %v4828
        %v4830 = vpop.xlane.xlu0 %4829
        %v4831 = vadd.f32 %v4814, %v4815
        %4832 = vadd.xlane.f32.xlu0 %v4831
        %v4833 = vpop.xlane.xlu0 %4832
        %v4834 = vadd.f32 %v4816, %v4817
        %4835 = vadd.xlane.f32.xlu0 %v4834
        %v4836 = vpop.xlane.xlu0 %4835
        %v4837 = vadd.f32 %v4818, %v4819
        %4838 = vadd.xlane.f32.xlu0 %v4837
        %v4839 = vpop.xlane.xlu0 %4838
        %v4840 = vadd.f32 %v4820, %v4821
        %4841 = vadd.xlane.f32.xlu0 %v4840
        %v4842 = vpop.xlane.xlu0 %4841
        %v4843 = vadd.f32 %v4822, %v4823
        %4844 = vadd.xlane.f32.xlu0 %v4843
        %v4845 = vpop.xlane.xlu0 %4844
        %v4846 = vadd.f32 %v4824, %v4825
        %4847 = vadd.xlane.f32.xlu0 %v4846
        %v4848 = vpop.xlane.xlu0 %4847
        %v4849 = vadd.f32 %v4826, %v4827
        %4850 = vadd.xlane.f32.xlu0 %v4849
        %v4851 = vpop.xlane.xlu0 %4850
        %v4852 = vadd.f32 %v4830, %v4833
        %v4853 = vrot.slane %v4852, 4
        %v4854 = vadd.f32 %v4852, %v4853
        %v4855 = vrot.slane %v4854, 2
        %v4856 = vadd.f32 %v4854, %v4855
        %v4857 = vrot.slane %v4856, 1
        %v4858 = vadd.f32 %v4856, %v4857
        %v4859 = vadd.f32 %v4836, %v4839
        %v4860 = vrot.slane %v4859, 4
        %v4861 = vadd.f32 %v4859, %v4860
        %v4862 = vrot.slane %v4861, 2
        %v4863 = vadd.f32 %v4861, %v4862
        %v4864 = vrot.slane %v4863, 1
        %v4865 = vadd.f32 %v4863, %v4864
        %v4866 = vadd.f32 %v4842, %v4845
        %v4867 = vrot.slane %v4866, 4
        %v4868 = vadd.f32 %v4866, %v4867
        %v4869 = vrot.slane %v4868, 2
        %v4870 = vadd.f32 %v4868, %v4869
        %v4871 = vrot.slane %v4870, 1
        %v4872 = vadd.f32 %v4870, %v4871
        %v4873 = vadd.f32 %v4848, %v4851
        %v4874 = vrot.slane %v4873, 4
        %v4875 = vadd.f32 %v4873, %v4874
        %v4876 = vrot.slane %v4875, 2
        %v4877 = vadd.f32 %v4875, %v4876
        %v4878 = vrot.slane %v4877, 1
        %v4879 = vadd.f32 %v4877, %v4878
        %v4880 = vmul.f32 %v4790, 0.00024414063
        %v4881 = vmul.f32 %v4797, 0.00024414063
        %v4882 = vmul.f32 %v4804, 0.00024414063
        %v4883 = vmul.f32 %v4811, 0.00024414063
        %v4884 = vmul.f32 %v4858, 0.00024414063
        %v4885 = vmul.f32 %v4865, 0.00024414063
        %v4886 = vmul.f32 %v4872, 0.00024414063
        %v4887 = vmul.f32 %v4879, 0.00024414063
        %v4888 = vmul.f32 %v4880, %v4880
        %v4889 = vmul.f32 %v4881, %v4881
        %v4890 = vmul.f32 %v4882, %v4882
        %v4891 = vmul.f32 %v4883, %v4883
        %v4892 = vsub.f32 %v4884, %v4888
        %v4893 = vsub.f32 %v4885, %v4889
        %v4894 = vsub.f32 %v4886, %v4890
        %v4895 = vsub.f32 %v4887, %v4891
        %v4896 = vadd.f32 %v4892, 1e-05
        %v4897 = vadd.f32 %v4893, 1e-05
        %v4898 = vadd.f32 %v4894, 1e-05
        %v4899 = vadd.f32 %v4895, 1e-05
        %v4900 = vrsqrt.pop %v4896
        %v4901 = vrsqrt.pop %v4897
        %v4902 = vrsqrt.pop %v4898
        %v4903 = vrsqrt.pop %v4899
        %v4904 = vmul.f32 %v4757, %v4900
        %v4905 = vmul.f32 %v4757, %v4901
        %v4906 = vmul.f32 %v4757, %v4902
        %v4907 = vmul.f32 %v4757, %v4903
        %v4908 = vmul.f32 %v4880, %v4904
        %v4909 = vmul.f32 %v4881, %v4905
        %v4910 = vmul.f32 %v4882, %v4906
        %v4911 = vmul.f32 %v4883, %v4907
        %v4912 = vsub.f32 %v4759, %v4908
        %v4913 = vsub.f32 %v4759, %v4909
        %v4914 = vsub.f32 %v4759, %v4910
        %v4915 = vsub.f32 %v4759, %v4911
        %v4920 = vlaneseq
        %v4921 = vshrl.u32 %v4920, 7
        %v4922 = vsub.s32 0, %v4921
        %v4923 = vrot.slane %v4904, %v4922
        %v4924 = vlaneseq
        %v4925 = vshrl.u32 %v4924, 7
        %v4926 = vsub.s32 1, %v4925
        %v4927 = vrot.slane %v4904, %v4926
        %v4928 = vlaneseq
        %v4929 = vshrl.u32 %v4928, 7
        %v4930 = vsub.s32 0, %v4929
        %v4931 = vrot.slane %v4905, %v4930
        %v4932 = vlaneseq
        %v4933 = vshrl.u32 %v4932, 7
        %v4934 = vsub.s32 1, %v4933
        %v4935 = vrot.slane %v4905, %v4934
        %v4936 = vlaneseq
        %v4937 = vshrl.u32 %v4936, 7
        %v4938 = vsub.s32 0, %v4937
        %v4939 = vrot.slane %v4906, %v4938
        %v4940 = vlaneseq
        %v4941 = vshrl.u32 %v4940, 7
        %v4942 = vsub.s32 1, %v4941
        %v4943 = vrot.slane %v4906, %v4942
        %v4944 = vlaneseq
        %v4945 = vshrl.u32 %v4944, 7
        %v4946 = vsub.s32 0, %v4945
        %v4947 = vrot.slane %v4907, %v4946
        %v4948 = vlaneseq
        %v4949 = vshrl.u32 %v4948, 7
        %v4950 = vsub.s32 1, %v4949
        %v4951 = vrot.slane %v4907, %v4950
        %v4960 = vmul.f32 %v4740, %v4923
        %v4961 = vmul.f32 %v4741, %v4927
        %v4962 = vmul.f32 %v4742, %v4923
        %v4963 = vmul.f32 %v4743, %v4927
        %v4964 = vmul.f32 %v4744, %v4931
        %v4965 = vmul.f32 %v4745, %v4935
        %v4966 = vmul.f32 %v4746, %v4931
        %v4967 = vmul.f32 %v4747, %v4935
        %v4968 = vmul.f32 %v4748, %v4939
        %v4969 = vmul.f32 %v4749, %v4943
        %v4970 = vmul.f32 %v4750, %v4939
        %v4971 = vmul.f32 %v4751, %v4943
        %v4972 = vmul.f32 %v4752, %v4947
        %v4973 = vmul.f32 %v4753, %v4951
        %v4974 = vmul.f32 %v4754, %v4947
        %v4975 = vmul.f32 %v4755, %v4951
        %v4980 = vlaneseq
        %v4981 = vshrl.u32 %v4980, 7
        %v4982 = vsub.s32 0, %v4981
        %v4983 = vrot.slane %v4912, %v4982
        %v4984 = vlaneseq
        %v4985 = vshrl.u32 %v4984, 7
        %v4986 = vsub.s32 1, %v4985
        %v4987 = vrot.slane %v4912, %v4986
        %v4988 = vlaneseq
        %v4989 = vshrl.u32 %v4988, 7
        %v4990 = vsub.s32 0, %v4989
        %v4991 = vrot.slane %v4913, %v4990
        %v4992 = vlaneseq
        %v4993 = vshrl.u32 %v4992, 7
        %v4994 = vsub.s32 1, %v4993
        %v4995 = vrot.slane %v4913, %v4994
        %v4996 = vlaneseq
        %v4997 = vshrl.u32 %v4996, 7
        %v4998 = vsub.s32 0, %v4997
        %v4999 = vrot.slane %v4914, %v4998
        %v5000 = vlaneseq
        %v5001 = vshrl.u32 %v5000, 7
        %v5002 = vsub.s32 1, %v5001
        %v5003 = vrot.slane %v4914, %v5002
        %v5004 = vlaneseq
        %v5005 = vshrl.u32 %v5004, 7
        %v5006 = vsub.s32 0, %v5005
        %v5007 = vrot.slane %v4915, %v5006
        %v5008 = vlaneseq
        %v5009 = vshrl.u32 %v5008, 7
        %v5010 = vsub.s32 1, %v5009
        %v5011 = vrot.slane %v4915, %v5010
        %v5020 = vadd.f32 %v4960, %v4983
        %v5021 = vadd.f32 %v4961, %v4987
        %v5022 = vadd.f32 %v4962, %v4983
        %v5023 = vadd.f32 %v4963, %v4987
        %v5024 = vadd.f32 %v4964, %v4991
        %v5025 = vadd.f32 %v4965, %v4995
        %v5026 = vadd.f32 %v4966, %v4991
        %v5027 = vadd.f32 %v4967, %v4995
        %v5028 = vadd.f32 %v4968, %v4999
        %v5029 = vadd.f32 %v4969, %v5003
        %v5030 = vadd.f32 %v4970, %v4999
        %v5031 = vadd.f32 %v4971, %v5003
        %v5032 = vadd.f32 %v4972, %v5007
        %v5033 = vadd.f32 %v4973, %v5011
        %v5034 = vadd.f32 %v4974, %v5007
        %v5035 = vadd.f32 %v4975, %v5011
        %v5036 = vadd.f32 %v5020, 3.0
        %v5037 = vadd.f32 %v5021, 3.0
        %v5038 = vadd.f32 %v5022, 3.0
        %v5039 = vadd.f32 %v5023, 3.0
        %v5040 = vadd.f32 %v5024, 3.0
        %v5041 = vadd.f32 %v5025, 3.0
        %v5042 = vadd.f32 %v5026, 3.0
        %v5043 = vadd.f32 %v5027, 3.0
        %v5044 = vadd.f32 %v5028, 3.0
        %v5045 = vadd.f32 %v5029, 3.0
        %v5046 = vadd.f32 %v5030, 3.0
        %v5047 = vadd.f32 %v5031, 3.0
        %v5048 = vadd.f32 %v5032, 3.0
        %v5049 = vadd.f32 %v5033, 3.0
        %v5050 = vadd.f32 %v5034, 3.0
        %v5051 = vadd.f32 %v5035, 3.0
        %v5052 = vmax.f32 %v5036, 0.0
        %v5053 = vmax.f32 %v5037, 0.0
        %v5054 = vmax.f32 %v5038, 0.0
        %v5055 = vmax.f32 %v5039, 0.0
        %v5056 = vmax.f32 %v5040, 0.0
        %v5057 = vmax.f32 %v5041, 0.0
        %v5058 = vmax.f32 %v5042, 0.0
        %v5059 = vmax.f32 %v5043, 0.0
        %v5060 = vmax.f32 %v5044, 0.0
        %v5061 = vmax.f32 %v5045, 0.0
        %v5062 = vmax.f32 %v5046, 0.0
        %v5063 = vmax.f32 %v5047, 0.0
        %v5064 = vmax.f32 %v5048, 0.0
        %v5065 = vmax.f32 %v5049, 0.0
        %v5066 = vmax.f32 %v5050, 0.0
        %v5067 = vmax.f32 %v5051, 0.0
        %v5068 = vmin.f32 %v5052, 6.0
        %v5069 = vmin.f32 %v5053, 6.0
        %v5070 = vmin.f32 %v5054, 6.0
        %v5071 = vmin.f32 %v5055, 6.0
        %v5072 = vmin.f32 %v5056, 6.0
        %v5073 = vmin.f32 %v5057, 6.0
        %v5074 = vmin.f32 %v5058, 6.0
        %v5075 = vmin.f32 %v5059, 6.0
        %v5076 = vmin.f32 %v5060, 6.0
        %v5077 = vmin.f32 %v5061, 6.0
        %v5078 = vmin.f32 %v5062, 6.0
        %v5079 = vmin.f32 %v5063, 6.0
        %v5080 = vmin.f32 %v5064, 6.0
        %v5081 = vmin.f32 %v5065, 6.0
        %v5082 = vmin.f32 %v5066, 6.0
        %v5083 = vmin.f32 %v5067, 6.0
        %v5084 = vmul.f32 %v5068, 0.16666667
        %v5085 = vmul.f32 %v5069, 0.16666667
        %v5086 = vmul.f32 %v5070, 0.16666667
        %v5087 = vmul.f32 %v5071, 0.16666667
        %v5088 = vmul.f32 %v5072, 0.16666667
        %v5089 = vmul.f32 %v5073, 0.16666667
        %v5090 = vmul.f32 %v5074, 0.16666667
        %v5091 = vmul.f32 %v5075, 0.16666667
        %v5092 = vmul.f32 %v5076, 0.16666667
        %v5093 = vmul.f32 %v5077, 0.16666667
        %v5094 = vmul.f32 %v5078, 0.16666667
        %v5095 = vmul.f32 %v5079, 0.16666667
        %v5096 = vmul.f32 %v5080, 0.16666667
        %v5097 = vmul.f32 %v5081, 0.16666667
        %v5098 = vmul.f32 %v5082, 0.16666667
        %v5099 = vmul.f32 %v5083, 0.16666667
        %v5100 = vmul.f32 %v5020, %v5084
        %v5101 = vmul.f32 %v5021, %v5085
        %v5102 = vmul.f32 %v5022, %v5086
        %v5103 = vmul.f32 %v5023, %v5087
        %v5104 = vmul.f32 %v5024, %v5088
        %v5105 = vmul.f32 %v5025, %v5089
        %v5106 = vmul.f32 %v5026, %v5090
        %v5107 = vmul.f32 %v5027, %v5091
        %v5108 = vmul.f32 %v5028, %v5092
        %v5109 = vmul.f32 %v5029, %v5093
        %v5110 = vmul.f32 %v5030, %v5094
        %v5111 = vmul.f32 %v5031, %v5095
        %v5112 = vmul.f32 %v5032, %v5096
        %v5113 = vmul.f32 %v5033, %v5097
        %v5114 = vmul.f32 %v5034, %v5098
        %v5115 = vmul.f32 %v5035, %v5099
        %s5116 = scalar_lea.vmem %s364, 32 [#allocation14]
        %5117 = vst [vmem:[%s5116] sm:$0xff] %v5100
        %5118 = vst [vmem:[%s5116 + $0x8] sm:$0xff] %v5101
        %5119 = vst [vmem:[%s5116 + $0x10] sm:$0xff] %v5102
        %5120 = vst [vmem:[%s5116 + $0x18] sm:$0xff] %v5103
        %5121 = vst [vmem:[%s5116 + $0x40] sm:$0xff] %v5104
        %5122 = vst [vmem:[%s5116 + $0x48] sm:$0xff] %v5105
        %5123 = vst [vmem:[%s5116 + $0x50] sm:$0xff] %v5106
        %5124 = vst [vmem:[%s5116 + $0x58] sm:$0xff] %v5107
        %5125 = vst [vmem:[%s5116 + $0x80] sm:$0xff] %v5108
        %5126 = vst [vmem:[%s5116 + $0x88] sm:$0xff] %v5109
        %5127 = vst [vmem:[%s5116 + $0x90] sm:$0xff] %v5110
        %5128 = vst [vmem:[%s5116 + $0x98] sm:$0xff] %v5111
        %5129 = vst [vmem:[%s5116 + $0xc0] sm:$0xff] %v5112
        %5130 = vst [vmem:[%s5116 + $0xc8] sm:$0xff] %v5113
        %5131 = vst [vmem:[%s5116 + $0xd0] sm:$0xff] %v5114
        %5132 = vst [vmem:[%s5116 + $0xd8] sm:$0xff] %v5115
        %s5133 = sand.u32 %s187, 1
        %s5134 = scalar_lea.sflag [#allocation5], %s5133
        %s5135 = sand.u32 %s187, 1
        %s5136 = smul.addr %s5135, 256
        %s5137 = scalar_lea.vmem [#allocation14], %s5136
        // Predicated region
        $region73: #{tpu_custom_call.1} parent=47 // pred_check
          %p5138 = pneg %p197
        $region74: #{tpu_custom_call.1} parent=47 // pred_check_branch
          %5140 = sbr.rel (%p5138) target = $region76
        $region75: #{tpu_custom_call.1} parent=47 // pred_region
          %s5141 = smul.u32 4, %s27
          %s5143 = ssub.s32 4096, 4096
          %5144 = vsyncadd %s5134, %s5143
          %s5145 = smul.addr %s5141, 8
          %s5146 = smul.addr %s5145, 128
          %s5147 = scalar_lea.hbm %s7, %s5146
          %s5148 = sshll.u32 %s5137, 4
          %s5149 = int_to_ptr.vmem [resolvable:$true] %s5148
          %5154 = dma.vmem_to_hbm [thread:$0]  %s5149, 4096, %s5147, %s5134, 256, 256, 16
        $region76: #{tpu_custom_call.1} parent=47 // pred_fallthru
          _
      $region48: #{tpu_custom_call.1} parent=5 // pred_fallthru
        _
      %p5155 = scmp.le.s32.totalorder 2, %s22
      // Predicated region
      $region77: #{tpu_custom_call.1} parent=5 // pred_check
        %p5156 = pneg %p5155
      $region78: #{tpu_custom_call.1} parent=5 // pred_check_branch
        %5158 = sbr.rel (%p5156) target = $region80
      $region79: #{tpu_custom_call.1} parent=5 // pred_region
        %s5159 = ssub.s32 %s22, 2
        // Predicated region
        $region81: #{tpu_custom_call.1} parent=79 // pred_check
          %p5160 = pneg %p203
        $region82: #{tpu_custom_call.1} parent=79 // pred_check_branch
          %5162 = sbr.rel (%p5160) target = $region84
        $region83: #{tpu_custom_call.1} parent=79 // pred_region
          %s5163 = sand.u32 %s188, 1
          %s5164 = scalar_lea.sflag [#allocation5], %s5163
          %s5165 = sand.u32 %s188, 1
          %s5166 = smul.addr %s5165, 256
          %s5167 = scalar_lea.vmem [#allocation14], %s5166
          %5168 = dma.done %s5164, 4096
        $region84: #{tpu_custom_call.1} parent=79 // pred_fallthru
          _
      $region80: #{tpu_custom_call.1} parent=5 // pred_fallthru
        _
    $region6: #{tpu_custom_call.1} parent=1 // loop_footer
      %s26 = sadd.s32 1, %s22
    $region7: #{tpu_custom_call.1} parent=1 // loop_footer_branch
      %21 = sbr.rel target = $region3
    $region8: #{tpu_custom_call.1} parent=1 // loop_exit
      _
    %5169 = vsyncpa [#allocation4], 1
    %s5170 = scalar_lea.sflag [#allocation4], 1
    %5171 = vsyncpa %s5170, 1
    %5172 = vsyncpa [#allocation7], 1
    %5173 = vsyncpa [#allocation10], 1
    %5174 = vsyncpa [#allocation13], 1
    %5175 = vsyncpa [#allocation5], 1
    %s5176 = scalar_lea.sflag [#allocation5], 1
    %5177 = vsyncpa %s5176, 1

</llo_original>
